<compile_context>
chip_gen: v5e
topology: v5e:2x2
jax: 0.10.0
libtpu: 0.0.40
codegen_flags: <defaults>
</compile_context>

<pallas_src>
import functools

import jax
import jax.numpy as jnp
from jax.experimental import pallas as pl
from jax.experimental.pallas import tpu as pltpu


_BN_EPS = 1e-5


def _round_up(x, m):
    return ((x + m - 1) // m) * m


def _pick_tile_n(n, target=512):
    """Largest point-tile <= target that divides N (multiple of 8), else N."""
    if n <= target:
        return n
    for t in range(target, 7, -1):
        if t % 8 == 0 and n % t == 0:
            return t
    return n  # whole axis as one block (always a legal block shape)


# ---------------------------------------------------------------------------
# Kernel 1: fused  conv1 -> conv2 -> conv3 -> max-over-points  (one stage)
#   x tile:  (1, tn, Cin) f32          (Cin = 3, no padding to 128)
#   w1:      (1, Cin, 64) f32          (per-batch for the encoder stage)
#   w2:      (64, 128)   bf16          w3: (128, 1024) bf16
#   scales / shifts: f32, BN(eval)+bias folded
#   out:     (1, 1, 1024) f32 accumulator, resident across the N grid axis
# ---------------------------------------------------------------------------
def _stage_kernel(x_ref, w1_ref, s1_ref, b1_ref,
                  w2_ref, s2_ref, b2_ref,
                  w3_ref, s3_ref, b3_ref,
                  o_ref, *, relu3):
    x = x_ref[0]          # (tn, Cin) f32
    w1 = w1_ref[0]        # (Cin, 64) f32
    cin = w1.shape[0]

    # Layer 1 (Cin -> 64): tiny-K contraction as broadcast FMAs on the VPU.
    h = jnp.zeros((x.shape[0], w1.shape[1]), jnp.float32)
    for k in range(cin):  # static, unrolled (Cin == 3)
        h = h + x[:, k:k + 1] * w1[k:k + 1, :]
    h = jnp.maximum(h * s1_ref[...] + b1_ref[...], 0.0)        # (tn, 64)

    # Layer 2 (64 -> 128): bf16 operands on the MXU, f32 accumulate.
    h = jnp.dot(h.astype(jnp.bfloat16), w2_ref[...],
                preferred_element_type=jnp.float32)
    h = jnp.maximum(h * s2_ref[...] + b2_ref[...], 0.0)        # (tn, 128)

    # Layer 3 (128 -> 1024).
    h = jnp.dot(h.astype(jnp.bfloat16), w3_ref[...],
                preferred_element_type=jnp.float32)
    h = h * s3_ref[...] + b3_ref[...]                          # (tn, 1024)
    if relu3:
        h = jnp.maximum(h, 0.0)

    m = jnp.max(h, axis=0, keepdims=True)                      # (1, 1024)

    @pl.when(pl.program_id(1) == 0)
    def _init():
        o_ref[...] = jnp.full_like(o_ref, -jnp.inf)

    o_ref[...] = jnp.maximum(o_ref[...], m[None])


def fused_conv_max_stage(pts, layer1, layer2, layer3, relu3, tile_n=512):
    """pts: (B, N, Cin) f32 -> (B, 1024) f32 global feature."""
    B, N, Cin = pts.shape
    w1, s1, b1 = layer1          # w1: (Bw, Cin, 64) f32, Bw in {1, B}
    w2, s2, b2 = layer2          # w2: (64, 128) bf16
    w3, s3, b3 = layer3          # w3: (128, 1024) bf16
    Bw = w1.shape[0]
    tn = _pick_tile_n(N, tile_n)

    w1_map = (lambda b, n: (0, 0, 0)) if Bw == 1 else (lambda b, n: (b, 0, 0))
    const2 = lambda b, n: (0, 0)

    out = pl.pallas_call(
        functools.partial(_stage_kernel, relu3=relu3),
        out_shape=jax.ShapeDtypeStruct((B, 1, 1024), jnp.float32),
        grid_spec=pltpu.PrefetchScalarGridSpec(
            num_scalar_prefetch=0,
            grid=(B, N // tn),
            in_specs=[
                pl.BlockSpec((1, tn, Cin), lambda b, n: (b, n, 0)),
                pl.BlockSpec((1, Cin, 64), w1_map),
                pl.BlockSpec((1, 64), const2),
                pl.BlockSpec((1, 64), const2),
                pl.BlockSpec((64, 128), const2),
                pl.BlockSpec((1, 128), const2),
                pl.BlockSpec((1, 128), const2),
                pl.BlockSpec((128, 1024), const2),
                pl.BlockSpec((1, 1024), const2),
                pl.BlockSpec((1, 1024), const2),
            ],
            out_specs=pl.BlockSpec((1, 1, 1024), lambda b, n: (b, 0, 0)),
        ),
        compiler_params=pltpu.CompilerParams(
            dimension_semantics=("parallel", "arbitrary")),
    )(pts, w1, s1, b1, w2, s2, b2, w3, s3, b3)
    return out[:, 0, :]


# ---------------------------------------------------------------------------
# Kernel 2: STN FC chain  fc1 -> fc2 -> fc3 (+ eye folded into fc3 bias)
#   one pallas_call, all weights resident, rows padded to a multiple of 8.
# ---------------------------------------------------------------------------
def _stn_fc_kernel(g_ref, w1_ref, s1_ref, b1_ref,
                   w2_ref, s2_ref, b2_ref,
                   w3_ref, b3_ref, o_ref):
    h = jnp.dot(g_ref[...], w1_ref[...], preferred_element_type=jnp.float32)
    h = jnp.maximum(h * s1_ref[...] + b1_ref[...], 0.0)
    h = jnp.dot(h, w2_ref[...], preferred_element_type=jnp.float32)
    h = jnp.maximum(h * s2_ref[...] + b2_ref[...], 0.0)
    h = jnp.dot(h, w3_ref[...], preferred_element_type=jnp.float32)
    o_ref[...] = h + b3_ref[...]


def stn_fc(g, fc1, fc2, fc3):
    """g: (B, 1024) f32 -> (B, D*D) f32 transform (eye already folded in)."""
    B, K = g.shape
    w1, s1, b1 = fc1             # (1024, 512) f32
    w2, s2, b2 = fc2             # (512, 256)  f32
    w3, b3 = fc3                 # (256, D*D), (1, D*D)
    dd = w3.shape[1]
    Bp = _round_up(B, 8)
    gp = jnp.pad(g, ((0, Bp - B), (0, 0)))

    const = lambda i: (0, 0)
    out = pl.pallas_call(
        _stn_fc_kernel,
        out_shape=jax.ShapeDtypeStruct((Bp, dd), jnp.float32),
        grid_spec=pltpu.PrefetchScalarGridSpec(
            num_scalar_prefetch=0,
            grid=(1,),
            in_specs=[
                pl.BlockSpec((Bp, K), const),
                pl.BlockSpec((K, 512), const),
                pl.BlockSpec((1, 512), const),
                pl.BlockSpec((1, 512), const),
                pl.BlockSpec((512, 256), const),
                pl.BlockSpec((1, 256), const),
                pl.BlockSpec((1, 256), const),
                pl.BlockSpec((256, dd), const),
                pl.BlockSpec((1, dd), const),
            ],
            out_specs=pl.BlockSpec((Bp, dd), const),
        ),
    )(gp, w1, s1, b1, w2, s2, b2, w3, b3)
    return out[:B]


# ---------------------------------------------------------------------------
# Parameter setup (deterministic, synthetic).  BN(eval) + bias folded into
# per-channel (scale, shift); weights stored pre-transposed as (C_in, C_out).
# conv2/conv3 weights stored in bf16 (matmul operands); the rest stay f32.
# ---------------------------------------------------------------------------
def _init_layer(key, cin, cout, *, bn=True, w_dtype=jnp.float32,
                extra_shift=None):
    kw, kb, kg, kbe = jax.random.split(key, 4)
    w = 0.1 * jax.random.normal(kw, (cout, cin), jnp.float32)   # torch (out, in)
    bias = 0.05 * jax.random.normal(kb, (cout,), jnp.float32)
    if bn:
        gamma = 1.0 + 0.1 * jax.random.normal(kg, (cout,), jnp.float32)
        beta = 0.05 * jax.random.normal(kbe, (cout,), jnp.float32)
        scale = gamma / jnp.sqrt(1.0 + _BN_EPS)   # running_var = 1
        shift = bias * scale + beta               # running_mean = 0
    else:
        scale = jnp.ones((cout,), jnp.float32)
        shift = bias
    if extra_shift is not None:
        shift = shift + extra_shift
    return (jnp.asarray(w.T, dtype=w_dtype), scale[None, :], shift[None, :])


def init_params(key, channel=3):
    ks = jax.random.split(key, 9)
    eye_flat = jnp.eye(channel, dtype=jnp.float32).reshape(-1)

    w1, s1, b1 = _init_layer(ks[0], channel, 64)
    stn = {
        "c1": (w1[None], s1, b1),                                   # (1, D, 64)
        "c2": _init_layer(ks[1], 64, 128, w_dtype=jnp.bfloat16),
        "c3": _init_layer(ks[2], 128, 1024, w_dtype=jnp.bfloat16),
        "f1": _init_layer(ks[3], 1024, 512),
        "f2": _init_layer(ks[4], 512, 256),
    }
    w3, _, b3 = _init_layer(ks[5], 256, channel * channel, bn=False,
                            extra_shift=eye_flat)   # eye(D) folded into bias
    stn["f3"] = (w3, b3)

    enc = {
        "c1": _init_layer(ks[6], channel, 64),                      # (D, 64) f32
        "c2": _init_layer(ks[7], 64, 128, w_dtype=jnp.bfloat16),
        "c3": _init_layer(ks[8], 128, 1024, w_dtype=jnp.bfloat16),
    }
    return {"stn": stn, "enc": enc}


# ---------------------------------------------------------------------------
# Forward pass (hot path entirely in two fused Pallas stage kernels + one tiny
# FC kernel; only the (B,3,3)@(3,64) fold and layout glue stay in XLA).
# ---------------------------------------------------------------------------
def pointnet_encoder(x, params):
    """x: (B, D, N) float32 (PyTorch NCW Conv1d layout). Returns (B, 1024)."""
    B, D, N = x.shape
    pts = jnp.transpose(x, (0, 2, 1))                 # (B, N, D)

    # --- STN: conv1-3 + max pool fused, then fc1-3 fused ---
    stn = params["stn"]
    g = fused_conv_max_stage(pts, stn["c1"], stn["c2"], stn["c3"], relu3=True)
    t_flat = stn_fc(g, stn["f1"], stn["f2"], stn["f3"])          # (B, D*D)
    trans = t_flat.reshape(B, D, D)

    # --- fold the 3x3 input transform into the first encoder layer:
    #     (x @ trans) @ W1  ==  x @ (trans @ W1)   (trivial (B,3,3)@(3,64)) ---
    enc = params["enc"]
    w1_t, s1, b1 = enc["c1"]
    w1_eff = jnp.einsum("bij,jk->bik", trans, w1_t)              # (B, D, 64)

    # --- encoder conv1-3 + global max pool, one fused kernel ---
    return fused_conv_max_stage(pts, (w1_eff, s1, b1), enc["c2"], enc["c3"],
                                relu3=False)


# ---------------------------------------------------------------------------
# Pure-JAX (f32) reference for verification
# ---------------------------------------------------------------------------
def reference_forward(x, params):
    B, D, N = x.shape

    def lin(h, layer, relu):
        w, s, b = layer
        y = h @ w.astype(jnp.float32) * s + b
        return jnp.maximum(y, 0.0) if relu else y

    pts = jnp.transpose(x, (0, 2, 1))
    flat = pts.reshape(B * N, D)

    stn = params["stn"]
    w1, s1, b1 = stn["c1"]
    h = lin(flat, (w1[0], s1, b1), True)
    h = lin(h, stn["c2"], True)
    h = lin(h, stn["c3"], True)
    g = jnp.max(h.reshape(B, N, 1024), axis=1)
    g = lin(g, stn["f1"], True)
    g = lin(g, stn["f2"], True)
    w3, b3 = stn["f3"]
    trans = (g @ w3 + b3).reshape(B, D, D)

    xt = jnp.einsum("bnd,bde->bne", pts, trans)
    flat = xt.reshape(B * N, D)
    enc = params["enc"]
    h = lin(flat, enc["c1"], True)
    h = lin(h, enc["c2"], True)
    h = lin(h, enc["c3"], False)
    return jnp.max(h.reshape(B, N, 1024), axis=1)


if __name__ == "__main__":
    key = jax.random.PRNGKey(0)
    B, D, N = 2, 3, 16
    pkey, xkey = jax.random.split(key)
    params = init_params(pkey, channel=D)
    x = jax.random.normal(xkey, (B, D, N), dtype=jnp.float32)

    fwd = jax.jit(pointnet_encoder)
    out = jax.block_until_ready(fwd(x, params))

    ref = reference_forward(x, params)
    assert out.shape == (B, 1024), out.shape
    err = float(jnp.max(jnp.abs(out - ref)))
    scale = float(jnp.max(jnp.abs(ref)))
    # bf16 matmul operands in conv2/conv3 vs. f32 reference -> loose tolerance.
    if err > 5e-2 * (1.0 + scale):
        raise AssertionError(f"kernel/reference mismatch: max abs err = {err}")
    print("KERNEL_OK")
</pallas_src>

<mosaic_0001>
module attributes {stable_mosaic.version = 11 : i64} {
  func.func @_stn_fc_kernel(%arg0: i32, %arg1: memref<8x1024xf32, #tpu.memory_space<vmem>>, %arg2: memref<1024x512xf32, #tpu.memory_space<vmem>>, %arg3: memref<1x512xf32, #tpu.memory_space<vmem>>, %arg4: memref<1x512xf32, #tpu.memory_space<vmem>>, %arg5: memref<512x256xf32, #tpu.memory_space<vmem>>, %arg6: memref<1x256xf32, #tpu.memory_space<vmem>>, %arg7: memref<1x256xf32, #tpu.memory_space<vmem>>, %arg8: memref<256x9xf32, #tpu.memory_space<vmem>>, %arg9: memref<1x9xf32, #tpu.memory_space<vmem>>, %arg10: memref<8x9xf32, #tpu.memory_space<vmem>>) attributes {dimension_semantics = [#tpu.dimension_semantics<arbitrary>], iteration_bounds = array<i64: 1>, scalar_prefetch = 0 : i64, scratch_operands = 0 : i64, tpu.core_type = #tpu.core_type<tc>, window_params = [{pipeline_mode = #tpu.pipeline_mode<synchronous>, transform_indices = @transform_0, window_bounds = array<i64: 8, 1024>}, {pipeline_mode = #tpu.pipeline_mode<synchronous>, transform_indices = @transform_1, window_bounds = array<i64: 1024, 512>}, {pipeline_mode = #tpu.pipeline_mode<synchronous>, transform_indices = @transform_2, window_bounds = array<i64: 1, 512>}, {pipeline_mode = #tpu.pipeline_mode<synchronous>, transform_indices = @transform_3, window_bounds = array<i64: 1, 512>}, {pipeline_mode = #tpu.pipeline_mode<synchronous>, transform_indices = @transform_4, window_bounds = array<i64: 512, 256>}, {pipeline_mode = #tpu.pipeline_mode<synchronous>, transform_indices = @transform_5, window_bounds = array<i64: 1, 256>}, {pipeline_mode = #tpu.pipeline_mode<synchronous>, transform_indices = @transform_6, window_bounds = array<i64: 1, 256>}, {pipeline_mode = #tpu.pipeline_mode<synchronous>, transform_indices = @transform_7, window_bounds = array<i64: 256, 9>}, {pipeline_mode = #tpu.pipeline_mode<synchronous>, transform_indices = @transform_8, window_bounds = array<i64: 1, 9>}, {pipeline_mode = #tpu.pipeline_mode<synchronous>, transform_indices = @transform_9, window_bounds = array<i64: 8, 9>}]} {
    %c0 = arith.constant 0 : index
    %c0_0 = arith.constant 0 : index
    %0 = vector.load %arg1[%c0, %c0_0] : memref<8x1024xf32, #tpu.memory_space<vmem>>, vector<8x1024xf32>
    %c0_1 = arith.constant 0 : index
    %c0_2 = arith.constant 0 : index
    %1 = vector.load %arg2[%c0_1, %c0_2] : memref<1024x512xf32, #tpu.memory_space<vmem>>, vector<1024x512xf32>
    %cst = arith.constant dense<0.000000e+00> : vector<8x512xf32>
    %2 = tpu.matmul %0, %1, %cst {dimension_numbers = #tpu.dot_dimension_numbers<[1], [0], [0], [1], [0, 0, 1, 1], [], []>} : vector<8x1024xf32>, vector<1024x512xf32>, vector<8x512xf32> -> vector<8x512xf32>
    %c0_3 = arith.constant 0 : index
    %c0_4 = arith.constant 0 : index
    %3 = vector.load %arg3[%c0_3, %c0_4] : memref<1x512xf32, #tpu.memory_space<vmem>>, vector<1x512xf32>
    %4 = vector.broadcast %3 : vector<1x512xf32> to vector<8x512xf32>
    %5 = arith.mulf %2, %4 : vector<8x512xf32>
    %c0_5 = arith.constant 0 : index
    %c0_6 = arith.constant 0 : index
    %6 = vector.load %arg4[%c0_5, %c0_6] : memref<1x512xf32, #tpu.memory_space<vmem>>, vector<1x512xf32>
    %7 = vector.broadcast %6 : vector<1x512xf32> to vector<8x512xf32>
    %8 = arith.addf %5, %7 : vector<8x512xf32>
    %cst_7 = arith.constant 0.000000e+00 : f32
    %9 = vector.broadcast %cst_7 : f32 to vector<8x512xf32>
    %10 = arith.maximumf %8, %9 : vector<8x512xf32>
    %c0_8 = arith.constant 0 : index
    %c0_9 = arith.constant 0 : index
    %11 = vector.load %arg5[%c0_8, %c0_9] : memref<512x256xf32, #tpu.memory_space<vmem>>, vector<512x256xf32>
    %cst_10 = arith.constant dense<0.000000e+00> : vector<8x256xf32>
    %12 = tpu.matmul %10, %11, %cst_10 {dimension_numbers = #tpu.dot_dimension_numbers<[1], [0], [0], [1], [0, 0, 1, 1], [], []>} : vector<8x512xf32>, vector<512x256xf32>, vector<8x256xf32> -> vector<8x256xf32>
    %c0_11 = arith.constant 0 : index
    %c0_12 = arith.constant 0 : index
    %13 = vector.load %arg6[%c0_11, %c0_12] : memref<1x256xf32, #tpu.memory_space<vmem>>, vector<1x256xf32>
    %14 = vector.broadcast %13 : vector<1x256xf32> to vector<8x256xf32>
    %15 = arith.mulf %12, %14 : vector<8x256xf32>
    %c0_13 = arith.constant 0 : index
    %c0_14 = arith.constant 0 : index
    %16 = vector.load %arg7[%c0_13, %c0_14] : memref<1x256xf32, #tpu.memory_space<vmem>>, vector<1x256xf32>
    %17 = vector.broadcast %16 : vector<1x256xf32> to vector<8x256xf32>
    %18 = arith.addf %15, %17 : vector<8x256xf32>
    %cst_15 = arith.constant 0.000000e+00 : f32
    %19 = vector.broadcast %cst_15 : f32 to vector<8x256xf32>
    %20 = arith.maximumf %18, %19 : vector<8x256xf32>
    %c0_16 = arith.constant 0 : index
    %c0_17 = arith.constant 0 : index
    %21 = vector.load %arg8[%c0_16, %c0_17] : memref<256x9xf32, #tpu.memory_space<vmem>>, vector<256x9xf32>
    %cst_18 = arith.constant dense<0.000000e+00> : vector<8x9xf32>
    %22 = tpu.matmul %20, %21, %cst_18 {dimension_numbers = #tpu.dot_dimension_numbers<[1], [0], [0], [1], [0, 0, 1, 1], [], []>} : vector<8x256xf32>, vector<256x9xf32>, vector<8x9xf32> -> vector<8x9xf32>
    %c0_19 = arith.constant 0 : index
    %c0_20 = arith.constant 0 : index
    %23 = vector.load %arg9[%c0_19, %c0_20] : memref<1x9xf32, #tpu.memory_space<vmem>>, vector<1x9xf32>
    %24 = vector.broadcast %23 : vector<1x9xf32> to vector<8x9xf32>
    %25 = arith.addf %22, %24 : vector<8x9xf32>
    %c0_21 = arith.constant 0 : index
    %c0_22 = arith.constant 0 : index
    %26 = vector.load %arg10[%c0_21, %c0_22] : memref<8x9xf32, #tpu.memory_space<vmem>>, vector<8x9xf32>
    tpu.vector_store %arg10[%c0_21, %c0_22], %25 {strides = array<i32>} : memref<8x9xf32, #tpu.memory_space<vmem>>, vector<8x9xf32>,
    return
  }
  func.func @transform_0(%arg0: i32) -> (i32, i32) {
    %c0_i32 = arith.constant 0 : i32
    %c0_i32_0 = arith.constant 0 : i32
    %c0_i32_1 = arith.constant 0 : i32
    return %c0_i32, %c0_i32_0 : i32, i32
  }
  func.func @transform_1(%arg0: i32) -> (i32, i32) {
    %c0_i32 = arith.constant 0 : i32
    %c0_i32_0 = arith.constant 0 : i32
    %c0_i32_1 = arith.constant 0 : i32
    return %c0_i32, %c0_i32_0 : i32, i32
  }
  func.func @transform_2(%arg0: i32) -> (i32, i32) {
    %c0_i32 = arith.constant 0 : i32
    %c0_i32_0 = arith.constant 0 : i32
    %c0_i32_1 = arith.constant 0 : i32
    return %c0_i32, %c0_i32_0 : i32, i32
  }
  func.func @transform_3(%arg0: i32) -> (i32, i32) {
    %c0_i32 = arith.constant 0 : i32
    %c0_i32_0 = arith.constant 0 : i32
    %c0_i32_1 = arith.constant 0 : i32
    return %c0_i32, %c0_i32_0 : i32, i32
  }
  func.func @transform_4(%arg0: i32) -> (i32, i32) {
    %c0_i32 = arith.constant 0 : i32
    %c0_i32_0 = arith.constant 0 : i32
    %c0_i32_1 = arith.constant 0 : i32
    return %c0_i32, %c0_i32_0 : i32, i32
  }
  func.func @transform_5(%arg0: i32) -> (i32, i32) {
    %c0_i32 = arith.constant 0 : i32
    %c0_i32_0 = arith.constant 0 : i32
    %c0_i32_1 = arith.constant 0 : i32
    return %c0_i32, %c0_i32_0 : i32, i32
  }
  func.func @transform_6(%arg0: i32) -> (i32, i32) {
    %c0_i32 = arith.constant 0 : i32
    %c0_i32_0 = arith.constant 0 : i32
    %c0_i32_1 = arith.constant 0 : i32
    return %c0_i32, %c0_i32_0 : i32, i32
  }
  func.func @transform_7(%arg0: i32) -> (i32, i32) {
    %c0_i32 = arith.constant 0 : i32
    %c0_i32_0 = arith.constant 0 : i32
    %c0_i32_1 = arith.constant 0 : i32
    return %c0_i32, %c0_i32_0 : i32, i32
  }
  func.func @transform_8(%arg0: i32) -> (i32, i32) {
    %c0_i32 = arith.constant 0 : i32
    %c0_i32_0 = arith.constant 0 : i32
    %c0_i32_1 = arith.constant 0 : i32
    return %c0_i32, %c0_i32_0 : i32, i32
  }
  func.func @transform_9(%arg0: i32) -> (i32, i32) {
    %c0_i32 = arith.constant 0 : i32
    %c0_i32_0 = arith.constant 0 : i32
    %c0_i32_1 = arith.constant 0 : i32
    return %c0_i32, %c0_i32_0 : i32, i32
  }
}

module attributes {stable_mosaic.version = 11 : i64} {
  func.func @_stage_kernel(%arg0: i32, %arg1: i32, %arg2: memref<1x16x3xf32, #tpu.memory_space<vmem>>, %arg3: memref<1x3x64xf32, #tpu.memory_space<vmem>>, %arg4: memref<1x64xf32, #tpu.memory_space<vmem>>, %arg5: memref<1x64xf32, #tpu.memory_space<vmem>>, %arg6: memref<64x128xbf16, #tpu.memory_space<vmem>>, %arg7: memref<1x128xf32, #tpu.memory_space<vmem>>, %arg8: memref<1x128xf32, #tpu.memory_space<vmem>>, %arg9: memref<128x1024xbf16, #tpu.memory_space<vmem>>, %arg10: memref<1x1024xf32, #tpu.memory_space<vmem>>, %arg11: memref<1x1024xf32, #tpu.memory_space<vmem>>, %arg12: memref<1x1x1024xf32, #tpu.memory_space<vmem>>) attributes {dimension_semantics = [#tpu.dimension_semantics<parallel>, #tpu.dimension_semantics<arbitrary>], iteration_bounds = array<i64: 2, 1>, scalar_prefetch = 0 : i64, scratch_operands = 0 : i64, tpu.core_type = #tpu.core_type<tc>, window_params = [{transform_indices = @transform_0, window_bounds = array<i64: 1, 16, 3>}, {pipeline_mode = #tpu.pipeline_mode<synchronous>, transform_indices = @transform_1, window_bounds = array<i64: 1, 3, 64>}, {pipeline_mode = #tpu.pipeline_mode<synchronous>, transform_indices = @transform_2, window_bounds = array<i64: 1, 64>}, {pipeline_mode = #tpu.pipeline_mode<synchronous>, transform_indices = @transform_3, window_bounds = array<i64: 1, 64>}, {pipeline_mode = #tpu.pipeline_mode<synchronous>, transform_indices = @transform_4, window_bounds = array<i64: 64, 128>}, {pipeline_mode = #tpu.pipeline_mode<synchronous>, transform_indices = @transform_5, window_bounds = array<i64: 1, 128>}, {pipeline_mode = #tpu.pipeline_mode<synchronous>, transform_indices = @transform_6, window_bounds = array<i64: 1, 128>}, {pipeline_mode = #tpu.pipeline_mode<synchronous>, transform_indices = @transform_7, window_bounds = array<i64: 128, 1024>}, {pipeline_mode = #tpu.pipeline_mode<synchronous>, transform_indices = @transform_8, window_bounds = array<i64: 1, 1024>}, {pipeline_mode = #tpu.pipeline_mode<synchronous>, transform_indices = @transform_9, window_bounds = array<i64: 1, 1024>}, {transform_indices = @transform_10, window_bounds = array<i64: 1, 1, 1024>}]} {
    %c0 = arith.constant 0 : index
    %c0_0 = arith.constant 0 : index
    %c0_1 = arith.constant 0 : index
    %0 = vector.load %arg2[%c0, %c0_0, %c0_1] : memref<1x16x3xf32, #tpu.memory_space<vmem>>, vector<1x16x3xf32>
    %1 = vector.shape_cast %0 : vector<1x16x3xf32> to vector<16x3xf32>
    %c0_2 = arith.constant 0 : index
    %c0_3 = arith.constant 0 : index
    %c0_4 = arith.constant 0 : index
    %2 = vector.load %arg3[%c0_2, %c0_3, %c0_4] : memref<1x3x64xf32, #tpu.memory_space<vmem>>, vector<1x3x64xf32>
    %3 = vector.shape_cast %2 : vector<1x3x64xf32> to vector<3x64xf32>
    %cst = arith.constant 0.000000e+00 : f32
    %4 = vector.broadcast %cst : f32 to vector<16x64xf32>
    %5 = vector.extract_strided_slice %1 {offsets = [0, 0], sizes = [16, 1], strides = [1, 1]} : vector<16x3xf32> to vector<16x1xf32>
    %6 = vector.extract_strided_slice %3 {offsets = [0, 0], sizes = [1, 64], strides = [1, 1]} : vector<3x64xf32> to vector<1x64xf32>
    %7 = vector.broadcast %5 : vector<16x1xf32> to vector<16x64xf32>
    %8 = vector.broadcast %6 : vector<1x64xf32> to vector<16x64xf32>
    %9 = arith.mulf %7, %8 : vector<16x64xf32>
    %10 = arith.addf %4, %9 : vector<16x64xf32>
    %11 = vector.extract_strided_slice %1 {offsets = [0, 1], sizes = [16, 1], strides = [1, 1]} : vector<16x3xf32> to vector<16x1xf32>
    %12 = vector.extract_strided_slice %3 {offsets = [1, 0], sizes = [1, 64], strides = [1, 1]} : vector<3x64xf32> to vector<1x64xf32>
    %13 = vector.broadcast %11 : vector<16x1xf32> to vector<16x64xf32>
    %14 = vector.broadcast %12 : vector<1x64xf32> to vector<16x64xf32>
    %15 = arith.mulf %13, %14 : vector<16x64xf32>
    %16 = arith.addf %10, %15 : vector<16x64xf32>
    %17 = vector.extract_strided_slice %1 {offsets = [0, 2], sizes = [16, 1], strides = [1, 1]} : vector<16x3xf32> to vector<16x1xf32>
    %18 = vector.extract_strided_slice %3 {offsets = [2, 0], sizes = [1, 64], strides = [1, 1]} : vector<3x64xf32> to vector<1x64xf32>
    %19 = vector.broadcast %17 : vector<16x1xf32> to vector<16x64xf32>
    %20 = vector.broadcast %18 : vector<1x64xf32> to vector<16x64xf32>
    %21 = arith.mulf %19, %20 : vector<16x64xf32>
    %22 = arith.addf %16, %21 : vector<16x64xf32>
    %c0_5 = arith.constant 0 : index
    %c0_6 = arith.constant 0 : index
    %23 = vector.load %arg4[%c0_5, %c0_6] : memref<1x64xf32, #tpu.memory_space<vmem>>, vector<1x64xf32>
    %24 = vector.broadcast %23 : vector<1x64xf32> to vector<16x64xf32>
    %25 = arith.mulf %22, %24 : vector<16x64xf32>
    %c0_7 = arith.constant 0 : index
    %c0_8 = arith.constant 0 : index
    %26 = vector.load %arg5[%c0_7, %c0_8] : memref<1x64xf32, #tpu.memory_space<vmem>>, vector<1x64xf32>
    %27 = vector.broadcast %26 : vector<1x64xf32> to vector<16x64xf32>
    %28 = arith.addf %25, %27 : vector<16x64xf32>
    %cst_9 = arith.constant 0.000000e+00 : f32
    %29 = vector.broadcast %cst_9 : f32 to vector<16x64xf32>
    %30 = arith.maximumf %28, %29 : vector<16x64xf32>
    %31 = arith.truncf %30 : vector<16x64xf32> to vector<16x64xbf16>
    %c0_10 = arith.constant 0 : index
    %c0_11 = arith.constant 0 : index
    %32 = vector.load %arg6[%c0_10, %c0_11] : memref<64x128xbf16, #tpu.memory_space<vmem>>, vector<64x128xbf16>
    %cst_12 = arith.constant dense<0.000000e+00> : vector<16x128xf32>
    %33 = tpu.matmul %31, %32, %cst_12 {dimension_numbers = #tpu.dot_dimension_numbers<[1], [0], [0], [1], [0, 0, 1, 1], [], []>} : vector<16x64xbf16>, vector<64x128xbf16>, vector<16x128xf32> -> vector<16x128xf32>
    %c0_13 = arith.constant 0 : index
    %c0_14 = arith.constant 0 : index
    %34 = vector.load %arg7[%c0_13, %c0_14] : memref<1x128xf32, #tpu.memory_space<vmem>>, vector<1x128xf32>
    %35 = vector.broadcast %34 : vector<1x128xf32> to vector<16x128xf32>
    %36 = arith.mulf %33, %35 : vector<16x128xf32>
    %c0_15 = arith.constant 0 : index
    %c0_16 = arith.constant 0 : index
    %37 = vector.load %arg8[%c0_15, %c0_16] : memref<1x128xf32, #tpu.memory_space<vmem>>, vector<1x128xf32>
    %38 = vector.broadcast %37 : vector<1x128xf32> to vector<16x128xf32>
    %39 = arith.addf %36, %38 : vector<16x128xf32>
    %cst_17 = arith.constant 0.000000e+00 : f32
    %40 = vector.broadcast %cst_17 : f32 to vector<16x128xf32>
    %41 = arith.maximumf %39, %40 : vector<16x128xf32>
    %42 = arith.truncf %41 : vector<16x128xf32> to vector<16x128xbf16>
    %c0_18 = arith.constant 0 : index
    %c0_19 = arith.constant 0 : index
    %43 = vector.load %arg9[%c0_18, %c0_19] : memref<128x1024xbf16, #tpu.memory_space<vmem>>, vector<128x1024xbf16>
    %cst_20 = arith.constant dense<0.000000e+00> : vector<16x1024xf32>
    %44 = tpu.matmul %42, %43, %cst_20 {dimension_numbers = #tpu.dot_dimension_numbers<[1], [0], [0], [1], [0, 0, 1, 1], [], []>} : vector<16x128xbf16>, vector<128x1024xbf16>, vector<16x1024xf32> -> vector<16x1024xf32>
    %c0_21 = arith.constant 0 : index
    %c0_22 = arith.constant 0 : index
    %45 = vector.load %arg10[%c0_21, %c0_22] : memref<1x1024xf32, #tpu.memory_space<vmem>>, vector<1x1024xf32>
    %46 = vector.broadcast %45 : vector<1x1024xf32> to vector<16x1024xf32>
    %47 = arith.mulf %44, %46 : vector<16x1024xf32>
    %c0_23 = arith.constant 0 : index
    %c0_24 = arith.constant 0 : index
    %48 = vector.load %arg11[%c0_23, %c0_24] : memref<1x1024xf32, #tpu.memory_space<vmem>>, vector<1x1024xf32>
    %49 = vector.broadcast %48 : vector<1x1024xf32> to vector<16x1024xf32>
    %50 = arith.addf %47, %49 : vector<16x1024xf32>
    %cst_25 = arith.constant 0.000000e+00 : f32
    %51 = vector.broadcast %cst_25 : f32 to vector<16x1024xf32>
    %52 = arith.maximumf %50, %51 : vector<16x1024xf32>
    %cst_26 = arith.constant dense<0xFF800000> : vector<1024xf32>
    %53 = vector.multi_reduction <maximumf>, %52, %cst_26 [0] : vector<16x1024xf32> to vector<1024xf32>
    %54 = vector.shape_cast %53 : vector<1024xf32> to vector<1x1024xf32>
    %c0_i32 = arith.constant 0 : i32
    %55 = arith.cmpi eq, %arg1, %c0_i32 : i32
    %56 = arith.extui %55 : i1 to i32
    %c0_i32_27 = arith.constant 0 : i32
    %57 = arith.cmpi ne, %56, %c0_i32_27 : i32
    scf.if %57 {
      %cst_34 = arith.constant 0xFF800000 : f32
      %62 = vector.broadcast %cst_34 : f32 to vector<1x1x1024xf32>
      %c0_35 = arith.constant 0 : index
      %c0_36 = arith.constant 0 : index
      %c0_37 = arith.constant 0 : index
      %63 = vector.load %arg12[%c0_35, %c0_36, %c0_37] : memref<1x1x1024xf32, #tpu.memory_space<vmem>>, vector<1x1x1024xf32>
      tpu.vector_store %arg12[%c0_35, %c0_36, %c0_37], %62 {strides = array<i32>} : memref<1x1x1024xf32, #tpu.memory_space<vmem>>, vector<1x1x1024xf32>,
    } else {
    }
    %c0_28 = arith.constant 0 : index
    %c0_29 = arith.constant 0 : index
    %c0_30 = arith.constant 0 : index
    %58 = vector.load %arg12[%c0_28, %c0_29, %c0_30] : memref<1x1x1024xf32, #tpu.memory_space<vmem>>, vector<1x1x1024xf32>
    %59 = vector.shape_cast %54 : vector<1x1024xf32> to vector<1x1x1024xf32>
    %60 = arith.maximumf %58, %59 : vector<1x1x1024xf32>
    %c0_31 = arith.constant 0 : index
    %c0_32 = arith.constant 0 : index
    %c0_33 = arith.constant 0 : index
    %61 = vector.load %arg12[%c0_31, %c0_32, %c0_33] : memref<1x1x1024xf32, #tpu.memory_space<vmem>>, vector<1x1x1024xf32>
    tpu.vector_store %arg12[%c0_31, %c0_32, %c0_33], %60 {strides = array<i32>} : memref<1x1x1024xf32, #tpu.memory_space<vmem>>, vector<1x1x1024xf32>,
    return
  }
  func.func @transform_0(%arg0: i32, %arg1: i32) -> (i32, i32, i32) {
    %c0_i32 = arith.constant 0 : i32
    %c0_i32_0 = arith.constant 0 : i32
    return %arg0, %arg1, %c0_i32 : i32, i32, i32
  }
  func.func @transform_1(%arg0: i32, %arg1: i32) -> (i32, i32, i32) {
    %c0_i32 = arith.constant 0 : i32
    %c0_i32_0 = arith.constant 0 : i32
    %c0_i32_1 = arith.constant 0 : i32
    %c0_i32_2 = arith.constant 0 : i32
    return %c0_i32, %c0_i32_0, %c0_i32_1 : i32, i32, i32
  }
  func.func @transform_2(%arg0: i32, %arg1: i32) -> (i32, i32) {
    %c0_i32 = arith.constant 0 : i32
    %c0_i32_0 = arith.constant 0 : i32
    %c0_i32_1 = arith.constant 0 : i32
    return %c0_i32, %c0_i32_0 : i32, i32
  }
  func.func @transform_3(%arg0: i32, %arg1: i32) -> (i32, i32) {
    %c0_i32 = arith.constant 0 : i32
    %c0_i32_0 = arith.constant 0 : i32
    %c0_i32_1 = arith.constant 0 : i32
    return %c0_i32, %c0_i32_0 : i32, i32
  }
  func.func @transform_4(%arg0: i32, %arg1: i32) -> (i32, i32) {
    %c0_i32 = arith.constant 0 : i32
    %c0_i32_0 = arith.constant 0 : i32
    %c0_i32_1 = arith.constant 0 : i32
    return %c0_i32, %c0_i32_0 : i32, i32
  }
  func.func @transform_5(%arg0: i32, %arg1: i32) -> (i32, i32) {
    %c0_i32 = arith.constant 0 : i32
    %c0_i32_0 = arith.constant 0 : i32
    %c0_i32_1 = arith.constant 0 : i32
    return %c0_i32, %c0_i32_0 : i32, i32
  }
  func.func @transform_6(%arg0: i32, %arg1: i32) -> (i32, i32) {
    %c0_i32 = arith.constant 0 : i32
    %c0_i32_0 = arith.constant 0 : i32
    %c0_i32_1 = arith.constant 0 : i32
    return %c0_i32, %c0_i32_0 : i32, i32
  }
  func.func @transform_7(%arg0: i32, %arg1: i32) -> (i32, i32) {
    %c0_i32 = arith.constant 0 : i32
    %c0_i32_0 = arith.constant 0 : i32
    %c0_i32_1 = arith.constant 0 : i32
    return %c0_i32, %c0_i32_0 : i32, i32
  }
  func.func @transform_8(%arg0: i32, %arg1: i32) -> (i32, i32) {
    %c0_i32 = arith.constant 0 : i32
    %c0_i32_0 = arith.constant 0 : i32
    %c0_i32_1 = arith.constant 0 : i32
    return %c0_i32, %c0_i32_0 : i32, i32
  }
  func.func @transform_9(%arg0: i32, %arg1: i32) -> (i32, i32) {
    %c0_i32 = arith.constant 0 : i32
    %c0_i32_0 = arith.constant 0 : i32
    %c0_i32_1 = arith.constant 0 : i32
    return %c0_i32, %c0_i32_0 : i32, i32
  }
  func.func @transform_10(%arg0: i32, %arg1: i32) -> (i32, i32, i32) {
    %c0_i32 = arith.constant 0 : i32
    %c0_i32_0 = arith.constant 0 : i32
    %c0_i32_1 = arith.constant 0 : i32
    return %arg0, %c0_i32, %c0_i32_0 : i32, i32, i32
  }
}

module attributes {stable_mosaic.version = 11 : i64} {
  func.func @_stage_kernel(%arg0: i32, %arg1: i32, %arg2: memref<1x16x3xf32, #tpu.memory_space<vmem>>, %arg3: memref<1x3x64xf32, #tpu.memory_space<vmem>>, %arg4: memref<1x64xf32, #tpu.memory_space<vmem>>, %arg5: memref<1x64xf32, #tpu.memory_space<vmem>>, %arg6: memref<64x128xbf16, #tpu.memory_space<vmem>>, %arg7: memref<1x128xf32, #tpu.memory_space<vmem>>, %arg8: memref<1x128xf32, #tpu.memory_space<vmem>>, %arg9: memref<128x1024xbf16, #tpu.memory_space<vmem>>, %arg10: memref<1x1024xf32, #tpu.memory_space<vmem>>, %arg11: memref<1x1024xf32, #tpu.memory_space<vmem>>, %arg12: memref<1x1x1024xf32, #tpu.memory_space<vmem>>) attributes {dimension_semantics = [#tpu.dimension_semantics<parallel>, #tpu.dimension_semantics<arbitrary>], iteration_bounds = array<i64: 2, 1>, scalar_prefetch = 0 : i64, scratch_operands = 0 : i64, tpu.core_type = #tpu.core_type<tc>, window_params = [{transform_indices = @transform_0, window_bounds = array<i64: 1, 16, 3>}, {transform_indices = @transform_1, window_bounds = array<i64: 1, 3, 64>}, {pipeline_mode = #tpu.pipeline_mode<synchronous>, transform_indices = @transform_2, window_bounds = array<i64: 1, 64>}, {pipeline_mode = #tpu.pipeline_mode<synchronous>, transform_indices = @transform_3, window_bounds = array<i64: 1, 64>}, {pipeline_mode = #tpu.pipeline_mode<synchronous>, transform_indices = @transform_4, window_bounds = array<i64: 64, 128>}, {pipeline_mode = #tpu.pipeline_mode<synchronous>, transform_indices = @transform_5, window_bounds = array<i64: 1, 128>}, {pipeline_mode = #tpu.pipeline_mode<synchronous>, transform_indices = @transform_6, window_bounds = array<i64: 1, 128>}, {pipeline_mode = #tpu.pipeline_mode<synchronous>, transform_indices = @transform_7, window_bounds = array<i64: 128, 1024>}, {pipeline_mode = #tpu.pipeline_mode<synchronous>, transform_indices = @transform_8, window_bounds = array<i64: 1, 1024>}, {pipeline_mode = #tpu.pipeline_mode<synchronous>, transform_indices = @transform_9, window_bounds = array<i64: 1, 1024>}, {transform_indices = @transform_10, window_bounds = array<i64: 1, 1, 1024>}]} {
    %c0 = arith.constant 0 : index
    %c0_0 = arith.constant 0 : index
    %c0_1 = arith.constant 0 : index
    %0 = vector.load %arg2[%c0, %c0_0, %c0_1] : memref<1x16x3xf32, #tpu.memory_space<vmem>>, vector<1x16x3xf32>
    %1 = vector.shape_cast %0 : vector<1x16x3xf32> to vector<16x3xf32>
    %c0_2 = arith.constant 0 : index
    %c0_3 = arith.constant 0 : index
    %c0_4 = arith.constant 0 : index
    %2 = vector.load %arg3[%c0_2, %c0_3, %c0_4] : memref<1x3x64xf32, #tpu.memory_space<vmem>>, vector<1x3x64xf32>
    %3 = vector.shape_cast %2 : vector<1x3x64xf32> to vector<3x64xf32>
    %cst = arith.constant 0.000000e+00 : f32
    %4 = vector.broadcast %cst : f32 to vector<16x64xf32>
    %5 = vector.extract_strided_slice %1 {offsets = [0, 0], sizes = [16, 1], strides = [1, 1]} : vector<16x3xf32> to vector<16x1xf32>
    %6 = vector.extract_strided_slice %3 {offsets = [0, 0], sizes = [1, 64], strides = [1, 1]} : vector<3x64xf32> to vector<1x64xf32>
    %7 = vector.broadcast %5 : vector<16x1xf32> to vector<16x64xf32>
    %8 = vector.broadcast %6 : vector<1x64xf32> to vector<16x64xf32>
    %9 = arith.mulf %7, %8 : vector<16x64xf32>
    %10 = arith.addf %4, %9 : vector<16x64xf32>
    %11 = vector.extract_strided_slice %1 {offsets = [0, 1], sizes = [16, 1], strides = [1, 1]} : vector<16x3xf32> to vector<16x1xf32>
    %12 = vector.extract_strided_slice %3 {offsets = [1, 0], sizes = [1, 64], strides = [1, 1]} : vector<3x64xf32> to vector<1x64xf32>
    %13 = vector.broadcast %11 : vector<16x1xf32> to vector<16x64xf32>
    %14 = vector.broadcast %12 : vector<1x64xf32> to vector<16x64xf32>
    %15 = arith.mulf %13, %14 : vector<16x64xf32>
    %16 = arith.addf %10, %15 : vector<16x64xf32>
    %17 = vector.extract_strided_slice %1 {offsets = [0, 2], sizes = [16, 1], strides = [1, 1]} : vector<16x3xf32> to vector<16x1xf32>
    %18 = vector.extract_strided_slice %3 {offsets = [2, 0], sizes = [1, 64], strides = [1, 1]} : vector<3x64xf32> to vector<1x64xf32>
    %19 = vector.broadcast %17 : vector<16x1xf32> to vector<16x64xf32>
    %20 = vector.broadcast %18 : vector<1x64xf32> to vector<16x64xf32>
    %21 = arith.mulf %19, %20 : vector<16x64xf32>
    %22 = arith.addf %16, %21 : vector<16x64xf32>
    %c0_5 = arith.constant 0 : index
    %c0_6 = arith.constant 0 : index
    %23 = vector.load %arg4[%c0_5, %c0_6] : memref<1x64xf32, #tpu.memory_space<vmem>>, vector<1x64xf32>
    %24 = vector.broadcast %23 : vector<1x64xf32> to vector<16x64xf32>
    %25 = arith.mulf %22, %24 : vector<16x64xf32>
    %c0_7 = arith.constant 0 : index
    %c0_8 = arith.constant 0 : index
    %26 = vector.load %arg5[%c0_7, %c0_8] : memref<1x64xf32, #tpu.memory_space<vmem>>, vector<1x64xf32>
    %27 = vector.broadcast %26 : vector<1x64xf32> to vector<16x64xf32>
    %28 = arith.addf %25, %27 : vector<16x64xf32>
    %cst_9 = arith.constant 0.000000e+00 : f32
    %29 = vector.broadcast %cst_9 : f32 to vector<16x64xf32>
    %30 = arith.maximumf %28, %29 : vector<16x64xf32>
    %31 = arith.truncf %30 : vector<16x64xf32> to vector<16x64xbf16>
    %c0_10 = arith.constant 0 : index
    %c0_11 = arith.constant 0 : index
    %32 = vector.load %arg6[%c0_10, %c0_11] : memref<64x128xbf16, #tpu.memory_space<vmem>>, vector<64x128xbf16>
    %cst_12 = arith.constant dense<0.000000e+00> : vector<16x128xf32>
    %33 = tpu.matmul %31, %32, %cst_12 {dimension_numbers = #tpu.dot_dimension_numbers<[1], [0], [0], [1], [0, 0, 1, 1], [], []>} : vector<16x64xbf16>, vector<64x128xbf16>, vector<16x128xf32> -> vector<16x128xf32>
    %c0_13 = arith.constant 0 : index
    %c0_14 = arith.constant 0 : index
    %34 = vector.load %arg7[%c0_13, %c0_14] : memref<1x128xf32, #tpu.memory_space<vmem>>, vector<1x128xf32>
    %35 = vector.broadcast %34 : vector<1x128xf32> to vector<16x128xf32>
    %36 = arith.mulf %33, %35 : vector<16x128xf32>
    %c0_15 = arith.constant 0 : index
    %c0_16 = arith.constant 0 : index
    %37 = vector.load %arg8[%c0_15, %c0_16] : memref<1x128xf32, #tpu.memory_space<vmem>>, vector<1x128xf32>
    %38 = vector.broadcast %37 : vector<1x128xf32> to vector<16x128xf32>
    %39 = arith.addf %36, %38 : vector<16x128xf32>
    %cst_17 = arith.constant 0.000000e+00 : f32
    %40 = vector.broadcast %cst_17 : f32 to vector<16x128xf32>
    %41 = arith.maximumf %39, %40 : vector<16x128xf32>
    %42 = arith.truncf %41 : vector<16x128xf32> to vector<16x128xbf16>
    %c0_18 = arith.constant 0 : index
    %c0_19 = arith.constant 0 : index
    %43 = vector.load %arg9[%c0_18, %c0_19] : memref<128x1024xbf16, #tpu.memory_space<vmem>>, vector<128x1024xbf16>
    %cst_20 = arith.constant dense<0.000000e+00> : vector<16x1024xf32>
    %44 = tpu.matmul %42, %43, %cst_20 {dimension_numbers = #tpu.dot_dimension_numbers<[1], [0], [0], [1], [0, 0, 1, 1], [], []>} : vector<16x128xbf16>, vector<128x1024xbf16>, vector<16x1024xf32> -> vector<16x1024xf32>
    %c0_21 = arith.constant 0 : index
    %c0_22 = arith.constant 0 : index
    %45 = vector.load %arg10[%c0_21, %c0_22] : memref<1x1024xf32, #tpu.memory_space<vmem>>, vector<1x1024xf32>
    %46 = vector.broadcast %45 : vector<1x1024xf32> to vector<16x1024xf32>
    %47 = arith.mulf %44, %46 : vector<16x1024xf32>
    %c0_23 = arith.constant 0 : index
    %c0_24 = arith.constant 0 : index
    %48 = vector.load %arg11[%c0_23, %c0_24] : memref<1x1024xf32, #tpu.memory_space<vmem>>, vector<1x1024xf32>
    %49 = vector.broadcast %48 : vector<1x1024xf32> to vector<16x1024xf32>
    %50 = arith.addf %47, %49 : vector<16x1024xf32>
    %cst_25 = arith.constant dense<0xFF800000> : vector<1024xf32>
    %51 = vector.multi_reduction <maximumf>, %50, %cst_25 [0] : vector<16x1024xf32> to vector<1024xf32>
    %52 = vector.shape_cast %51 : vector<1024xf32> to vector<1x1024xf32>
    %c0_i32 = arith.constant 0 : i32
    %53 = arith.cmpi eq, %arg1, %c0_i32 : i32
    %54 = arith.extui %53 : i1 to i32
    %c0_i32_26 = arith.constant 0 : i32
    %55 = arith.cmpi ne, %54, %c0_i32_26 : i32
    scf.if %55 {
      %cst_33 = arith.constant 0xFF800000 : f32
      %60 = vector.broadcast %cst_33 : f32 to vector<1x1x1024xf32>
      %c0_34 = arith.constant 0 : index
      %c0_35 = arith.constant 0 : index
      %c0_36 = arith.constant 0 : index
      %61 = vector.load %arg12[%c0_34, %c0_35, %c0_36] : memref<1x1x1024xf32, #tpu.memory_space<vmem>>, vector<1x1x1024xf32>
      tpu.vector_store %arg12[%c0_34, %c0_35, %c0_36], %60 {strides = array<i32>} : memref<1x1x1024xf32, #tpu.memory_space<vmem>>, vector<1x1x1024xf32>,
    } else {
    }
    %c0_27 = arith.constant 0 : index
    %c0_28 = arith.constant 0 : index
    %c0_29 = arith.constant 0 : index
    %56 = vector.load %arg12[%c0_27, %c0_28, %c0_29] : memref<1x1x1024xf32, #tpu.memory_space<vmem>>, vector<1x1x1024xf32>
    %57 = vector.shape_cast %52 : vector<1x1024xf32> to vector<1x1x1024xf32>
    %58 = arith.maximumf %56, %57 : vector<1x1x1024xf32>
    %c0_30 = arith.constant 0 : index
    %c0_31 = arith.constant 0 : index
    %c0_32 = arith.constant 0 : index
    %59 = vector.load %arg12[%c0_30, %c0_31, %c0_32] : memref<1x1x1024xf32, #tpu.memory_space<vmem>>, vector<1x1x1024xf32>
    tpu.vector_store %arg12[%c0_30, %c0_31, %c0_32], %58 {strides = array<i32>} : memref<1x1x1024xf32, #tpu.memory_space<vmem>>, vector<1x1x1024xf32>,
    return
  }
  func.func @transform_0(%arg0: i32, %arg1: i32) -> (i32, i32, i32) {
    %c0_i32 = arith.constant 0 : i32
    %c0_i32_0 = arith.constant 0 : i32
    return %arg0, %arg1, %c0_i32 : i32, i32, i32
  }
  func.func @transform_1(%arg0: i32, %arg1: i32) -> (i32, i32, i32) {
    %c0_i32 = arith.constant 0 : i32
    %c0_i32_0 = arith.constant 0 : i32
    %c0_i32_1 = arith.constant 0 : i32
    return %arg0, %c0_i32, %c0_i32_0 : i32, i32, i32
  }
  func.func @transform_2(%arg0: i32, %arg1: i32) -> (i32, i32) {
    %c0_i32 = arith.constant 0 : i32
    %c0_i32_0 = arith.constant 0 : i32
    %c0_i32_1 = arith.constant 0 : i32
    return %c0_i32, %c0_i32_0 : i32, i32
  }
  func.func @transform_3(%arg0: i32, %arg1: i32) -> (i32, i32) {
    %c0_i32 = arith.constant 0 : i32
    %c0_i32_0 = arith.constant 0 : i32
    %c0_i32_1 = arith.constant 0 : i32
    return %c0_i32, %c0_i32_0 : i32, i32
  }
  func.func @transform_4(%arg0: i32, %arg1: i32) -> (i32, i32) {
    %c0_i32 = arith.constant 0 : i32
    %c0_i32_0 = arith.constant 0 : i32
    %c0_i32_1 = arith.constant 0 : i32
    return %c0_i32, %c0_i32_0 : i32, i32
  }
  func.func @transform_5(%arg0: i32, %arg1: i32) -> (i32, i32) {
    %c0_i32 = arith.constant 0 : i32
    %c0_i32_0 = arith.constant 0 : i32
    %c0_i32_1 = arith.constant 0 : i32
    return %c0_i32, %c0_i32_0 : i32, i32
  }
  func.func @transform_6(%arg0: i32, %arg1: i32) -> (i32, i32) {
    %c0_i32 = arith.constant 0 : i32
    %c0_i32_0 = arith.constant 0 : i32
    %c0_i32_1 = arith.constant 0 : i32
    return %c0_i32, %c0_i32_0 : i32, i32
  }
  func.func @transform_7(%arg0: i32, %arg1: i32) -> (i32, i32) {
    %c0_i32 = arith.constant 0 : i32
    %c0_i32_0 = arith.constant 0 : i32
    %c0_i32_1 = arith.constant 0 : i32
    return %c0_i32, %c0_i32_0 : i32, i32
  }
  func.func @transform_8(%arg0: i32, %arg1: i32) -> (i32, i32) {
    %c0_i32 = arith.constant 0 : i32
    %c0_i32_0 = arith.constant 0 : i32
    %c0_i32_1 = arith.constant 0 : i32
    return %c0_i32, %c0_i32_0 : i32, i32
  }
  func.func @transform_9(%arg0: i32, %arg1: i32) -> (i32, i32) {
    %c0_i32 = arith.constant 0 : i32
    %c0_i32_0 = arith.constant 0 : i32
    %c0_i32_1 = arith.constant 0 : i32
    return %c0_i32, %c0_i32_0 : i32, i32
  }
  func.func @transform_10(%arg0: i32, %arg1: i32) -> (i32, i32, i32) {
    %c0_i32 = arith.constant 0 : i32
    %c0_i32_0 = arith.constant 0 : i32
    %c0_i32_1 = arith.constant 0 : i32
    return %arg0, %c0_i32, %c0_i32_0 : i32, i32, i32
  }
}

</mosaic_0001>

<llo_original>
// kernel: pointnet_encoder.3
$region0: #{pointnet_encoder.3}
  #allocation0 [shape = 'u32[]', space=smem, size = 0x4, offset = 0x4, fixed_abs, tag = 'smem constant byte address 0x4 - core index']
  #allocation1 [shape = 'u32[72,128]{1,0:T(1,128)}', space=vmem, size = 0x9000, scoped, tag = 'internal scratch']
  %s0 = inlined_call_operand.vmem [shape: f32[2,16,3], index: 0, kind: input, shape index: {}]
  %s1 = inlined_call_operand.vmem [shape: f32[1,3,64], index: 1, kind: input, shape index: {}]
  %s2 = inlined_call_operand.hbm [shape: f32[1,64], index: 2, kind: input, shape index: {}]
  %s3 = inlined_call_operand.hbm [shape: f32[1,64], index: 3, kind: input, shape index: {}]
  %s4 = inlined_call_operand.hbm [shape: bf16[64,128], index: 4, kind: input, shape index: {}]
  %s5 = inlined_call_operand.hbm [shape: f32[1,128], index: 5, kind: input, shape index: {}]
  %s6 = inlined_call_operand.hbm [shape: f32[1,128], index: 6, kind: input, shape index: {}]
  %s7 = inlined_call_operand.hbm [shape: bf16[128,1024], index: 7, kind: input, shape index: {}]
  %s8 = inlined_call_operand.hbm [shape: f32[1,1024], index: 8, kind: input, shape index: {}]
  %s9 = inlined_call_operand.hbm [shape: f32[1,1024], index: 9, kind: input, shape index: {}]
  %s10 = inlined_call_operand.vmem [shape: f32[2,1,1024], index: 10, kind: output, shape index: {}]
  %s11 = sld [smem:[#allocation0]]
  $region109: #{pointnet_encoder.3} parent=0
    _
  %s13 = ssub.s32 1, %s11
  %s14 = scalar_select 0, %s13, %s11
  $region1: #{pointnet_encoder.3} parent=0
    #allocation2 [shape = 'u8[512]{0}', space=vmem, size = 0x400, scoped, tag = 'input window, operand 2, single buffered']
    #allocation3 [shape = 's32[2]{0}', space=sflag, size = 0x8, scoped, tag = 'scoped memory for pointnet_encoder.3']
    #allocation4 [shape = 'u8[512]{0}', space=vmem, size = 0x400, scoped, tag = 'input window, operand 3, single buffered']
    #allocation5 [shape = 's32[1]{0}', space=sflag, size = 0x4, scoped, tag = 'scoped memory for pointnet_encoder.3']
    #allocation6 [shape = 'u8[16384]{0}', space=vmem, size = 0x4000, scoped, tag = 'input window, operand 4, single buffered']
    #allocation7 [shape = 'u8[512]{0}', space=vmem, size = 0x400, scoped, tag = 'input window, operand 5, single buffered']
    #allocation8 [shape = 's32[1]{0}', space=sflag, size = 0x4, scoped, tag = 'scoped memory for pointnet_encoder.3']
    #allocation9 [shape = 'u8[512]{0}', space=vmem, size = 0x400, scoped, tag = 'input window, operand 6, single buffered']
    #allocation10 [shape = 'u8[262144]{0}', space=vmem, size = 0x40000, scoped, tag = 'input window, operand 7, single buffered']
    #allocation11 [shape = 's32[1]{0}', space=sflag, size = 0x4, scoped, tag = 'scoped memory for pointnet_encoder.3']
    #allocation12 [shape = 'u8[4096]{0}', space=vmem, size = 0x1000, scoped, tag = 'input window, operand 8, single buffered']
    #allocation13 [shape = 'u8[4096]{0}', space=vmem, size = 0x1000, scoped, tag = 'input window, operand 9, single buffered']
    #allocation14 [shape = 's32[1]{0}', space=sflag, size = 0x4, scoped, tag = 'scoped memory for pointnet_encoder.3']
    %15 = vsyncpa [#allocation3], 0
    %16 = vsyncpa [#allocation5], 0
    %17 = vsyncpa [#allocation8], 0
    %18 = vsyncpa [#allocation11], 0
    %19 = vsyncpa [#allocation14], 0
    loop: start=0, step=1, limit=4
    $region2: #{pointnet_encoder.3} parent=1 // loop_pre_header
      _
    $region3: #{pointnet_encoder.3} parent=1 // loop_header
      %s21 = sphi 0, %s25
      %p22 = scmp.ge.s32.totalorder %s21, 4
      %s28 = sphi 0, %s40
      %s29 = sphi 0, %s36
      %s30 = sphi 0, %s28
      %s31 = sphi 0, %s29
      %s32 = sphi 0, %s30
      %s33 = sphi 0, %s31
      %s45 = sphi 0, %s47
      %s48 = sphi 0, %s45
      %s49 = sphi 0, %s48
      %s65 = sphi 0, %s49
      %s69 = sphi 0, %s69
      %s71 = sphi 0, %s69
      %s72 = sphi 0, %s71
      %s86 = sphi 0, %s72
      %s90 = sphi 0, %s90
      %s92 = sphi 0, %s90
      %s93 = sphi 0, %s92
      %s107 = sphi 0, %s93
      %s111 = sphi 0, %s111
      %s113 = sphi 0, %s111
      %s114 = sphi 0, %s113
      %s128 = sphi 0, %s114
      %s132 = sphi 0, %s132
      %s134 = sphi 0, %s132
      %s135 = sphi 0, %s134
      %s149 = sphi 0, %s135
      %s153 = sphi 0, %s153
      %s155 = sphi 0, %s153
      %s156 = sphi 0, %s155
      %s170 = sphi 0, %s156
      %s174 = sphi 0, %s174
      %s176 = sphi 0, %s174
      %s177 = sphi 0, %s176
      %s191 = sphi 0, %s177
      %s195 = sphi 0, %s195
      %s197 = sphi 0, %s195
      %s198 = sphi 0, %s197
      %s212 = sphi 0, %s198
      %s216 = sphi 0, %s216
      %s218 = sphi 0, %s216
      %s219 = sphi 0, %s218
      %s233 = sphi 0, %s219
      %s237 = sphi 0, %s237
      %s239 = sphi 0, %s237
      %s240 = sphi 0, %s239
      %s254 = sphi 0, %s240
      %s260 = sphi 0, %s262
      %s263 = sphi 0, %s260
      %s264 = sphi 0, %s263
      %s280 = sphi 0, %s264
    $region4: #{pointnet_encoder.3} parent=1 // loop_header_branch
      %24 = sbr.rel (%p22) target = $region8
    $region5: #{pointnet_encoder.3} parent=1 // loop_body
      %s26 = ssub.s32 %s21, 1
      %s27 = ssub.s32 %s21, 2
      %s34 = sadd.s32 1, %s29
      %p35 = scmp.ge.s32.totalorder %s34, 1
      %s36 = scalar_select %p35, 0, %s34
      %s37 = sadd.s32 1, %s28
      %s38 = scalar_select %p35, %s37, %s28
      %p39 = scmp.ge.s32.totalorder %s38, 2
      %s40 = scalar_select %p39, 0, %s38
      %s41 = ssub.s32 %s28, %s40
      %s42 = ssub.s32 %s29, %s36
      %s43 = sor.u32 %s41, %s42
      %p44 = scmp.eq.s32.totalorder %s43, 0
      %s46 = sadd.s32 %s45, 1
      %s47 = scalar_select %p44, %s45, %s46
      %p50 = pneg %p44
      %p51 = scmp.eq.s32.totalorder %s21, 1
      %p52 = por %p50, %p51
      %p53 = scmp.ne.s32.totalorder %s45, %s48
      %p54 = scmp.eq.s32.totalorder %s21, 0
      %p55 = por %p53, %p54
      %p56 = scmp.ne.s32.totalorder %s45, %s48
      %p57 = scmp.eq.s32.totalorder %s26, 1
      %p58 = por %p56, %p57
      %p59 = scmp.ne.s32.totalorder %s48, %s49
      %p60 = scmp.eq.s32.totalorder %s26, 0
      %p61 = por %p59, %p60
      %p62 = scmp.ne.s32.totalorder %s48, %s49
      %p63 = scmp.eq.s32.totalorder %s27, 1
      %p64 = por %p62, %p63
      %p66 = scmp.ne.s32.totalorder %s49, %s65
      %p67 = scmp.eq.s32.totalorder %s27, 0
      %p68 = por %p66, %p67
      %s70 = sadd.s32 %s69, 1
      %p73 = scmp.eq.s32.totalorder %s21, 1
      %p74 = scmp.ne.s32.totalorder %s69, %s71
      %p75 = scmp.eq.s32.totalorder %s21, 0
      %p76 = por %p74, %p75
      %p77 = scmp.ne.s32.totalorder %s69, %s71
      %p78 = scmp.eq.s32.totalorder %s26, 1
      %p79 = por %p77, %p78
      %p80 = scmp.ne.s32.totalorder %s71, %s72
      %p81 = scmp.eq.s32.totalorder %s26, 0
      %p82 = por %p80, %p81
      %p83 = scmp.ne.s32.totalorder %s71, %s72
      %p84 = scmp.eq.s32.totalorder %s27, 1
      %p85 = por %p83, %p84
      %p87 = scmp.ne.s32.totalorder %s72, %s86
      %p88 = scmp.eq.s32.totalorder %s27, 0
      %p89 = por %p87, %p88
      %s91 = sadd.s32 %s90, 1
      %p94 = scmp.eq.s32.totalorder %s21, 1
      %p95 = scmp.ne.s32.totalorder %s90, %s92
      %p96 = scmp.eq.s32.totalorder %s21, 0
      %p97 = por %p95, %p96
      %p98 = scmp.ne.s32.totalorder %s90, %s92
      %p99 = scmp.eq.s32.totalorder %s26, 1
      %p100 = por %p98, %p99
      %p101 = scmp.ne.s32.totalorder %s92, %s93
      %p102 = scmp.eq.s32.totalorder %s26, 0
      %p103 = por %p101, %p102
      %p104 = scmp.ne.s32.totalorder %s92, %s93
      %p105 = scmp.eq.s32.totalorder %s27, 1
      %p106 = por %p104, %p105
      %p108 = scmp.ne.s32.totalorder %s93, %s107
      %p109 = scmp.eq.s32.totalorder %s27, 0
      %p110 = por %p108, %p109
      %s112 = sadd.s32 %s111, 1
      %p115 = scmp.eq.s32.totalorder %s21, 1
      %p116 = scmp.ne.s32.totalorder %s111, %s113
      %p117 = scmp.eq.s32.totalorder %s21, 0
      %p118 = por %p116, %p117
      %p119 = scmp.ne.s32.totalorder %s111, %s113
      %p120 = scmp.eq.s32.totalorder %s26, 1
      %p121 = por %p119, %p120
      %p122 = scmp.ne.s32.totalorder %s113, %s114
      %p123 = scmp.eq.s32.totalorder %s26, 0
      %p124 = por %p122, %p123
      %p125 = scmp.ne.s32.totalorder %s113, %s114
      %p126 = scmp.eq.s32.totalorder %s27, 1
      %p127 = por %p125, %p126
      %p129 = scmp.ne.s32.totalorder %s114, %s128
      %p130 = scmp.eq.s32.totalorder %s27, 0
      %p131 = por %p129, %p130
      %s133 = sadd.s32 %s132, 1
      %p136 = scmp.eq.s32.totalorder %s21, 1
      %p137 = scmp.ne.s32.totalorder %s132, %s134
      %p138 = scmp.eq.s32.totalorder %s21, 0
      %p139 = por %p137, %p138
      %p140 = scmp.ne.s32.totalorder %s132, %s134
      %p141 = scmp.eq.s32.totalorder %s26, 1
      %p142 = por %p140, %p141
      %p143 = scmp.ne.s32.totalorder %s134, %s135
      %p144 = scmp.eq.s32.totalorder %s26, 0
      %p145 = por %p143, %p144
      %p146 = scmp.ne.s32.totalorder %s134, %s135
      %p147 = scmp.eq.s32.totalorder %s27, 1
      %p148 = por %p146, %p147
      %p150 = scmp.ne.s32.totalorder %s135, %s149
      %p151 = scmp.eq.s32.totalorder %s27, 0
      %p152 = por %p150, %p151
      %s154 = sadd.s32 %s153, 1
      %p157 = scmp.eq.s32.totalorder %s21, 1
      %p158 = scmp.ne.s32.totalorder %s153, %s155
      %p159 = scmp.eq.s32.totalorder %s21, 0
      %p160 = por %p158, %p159
      %p161 = scmp.ne.s32.totalorder %s153, %s155
      %p162 = scmp.eq.s32.totalorder %s26, 1
      %p163 = por %p161, %p162
      %p164 = scmp.ne.s32.totalorder %s155, %s156
      %p165 = scmp.eq.s32.totalorder %s26, 0
      %p166 = por %p164, %p165
      %p167 = scmp.ne.s32.totalorder %s155, %s156
      %p168 = scmp.eq.s32.totalorder %s27, 1
      %p169 = por %p167, %p168
      %p171 = scmp.ne.s32.totalorder %s156, %s170
      %p172 = scmp.eq.s32.totalorder %s27, 0
      %p173 = por %p171, %p172
      %s175 = sadd.s32 %s174, 1
      %p178 = scmp.eq.s32.totalorder %s21, 1
      %p179 = scmp.ne.s32.totalorder %s174, %s176
      %p180 = scmp.eq.s32.totalorder %s21, 0
      %p181 = por %p179, %p180
      %p182 = scmp.ne.s32.totalorder %s174, %s176
      %p183 = scmp.eq.s32.totalorder %s26, 1
      %p184 = por %p182, %p183
      %p185 = scmp.ne.s32.totalorder %s176, %s177
      %p186 = scmp.eq.s32.totalorder %s26, 0
      %p187 = por %p185, %p186
      %p188 = scmp.ne.s32.totalorder %s176, %s177
      %p189 = scmp.eq.s32.totalorder %s27, 1
      %p190 = por %p188, %p189
      %p192 = scmp.ne.s32.totalorder %s177, %s191
      %p193 = scmp.eq.s32.totalorder %s27, 0
      %p194 = por %p192, %p193
      %s196 = sadd.s32 %s195, 1
      %p199 = scmp.eq.s32.totalorder %s21, 1
      %p200 = scmp.ne.s32.totalorder %s195, %s197
      %p201 = scmp.eq.s32.totalorder %s21, 0
      %p202 = por %p200, %p201
      %p203 = scmp.ne.s32.totalorder %s195, %s197
      %p204 = scmp.eq.s32.totalorder %s26, 1
      %p205 = por %p203, %p204
      %p206 = scmp.ne.s32.totalorder %s197, %s198
      %p207 = scmp.eq.s32.totalorder %s26, 0
      %p208 = por %p206, %p207
      %p209 = scmp.ne.s32.totalorder %s197, %s198
      %p210 = scmp.eq.s32.totalorder %s27, 1
      %p211 = por %p209, %p210
      %p213 = scmp.ne.s32.totalorder %s198, %s212
      %p214 = scmp.eq.s32.totalorder %s27, 0
      %p215 = por %p213, %p214
      %s217 = sadd.s32 %s216, 1
      %p220 = scmp.eq.s32.totalorder %s21, 1
      %p221 = scmp.ne.s32.totalorder %s216, %s218
      %p222 = scmp.eq.s32.totalorder %s21, 0
      %p223 = por %p221, %p222
      %p224 = scmp.ne.s32.totalorder %s216, %s218
      %p225 = scmp.eq.s32.totalorder %s26, 1
      %p226 = por %p224, %p225
      %p227 = scmp.ne.s32.totalorder %s218, %s219
      %p228 = scmp.eq.s32.totalorder %s26, 0
      %p229 = por %p227, %p228
      %p230 = scmp.ne.s32.totalorder %s218, %s219
      %p231 = scmp.eq.s32.totalorder %s27, 1
      %p232 = por %p230, %p231
      %p234 = scmp.ne.s32.totalorder %s219, %s233
      %p235 = scmp.eq.s32.totalorder %s27, 0
      %p236 = por %p234, %p235
      %s238 = sadd.s32 %s237, 1
      %p241 = scmp.eq.s32.totalorder %s21, 1
      %p242 = scmp.ne.s32.totalorder %s237, %s239
      %p243 = scmp.eq.s32.totalorder %s21, 0
      %p244 = por %p242, %p243
      %p245 = scmp.ne.s32.totalorder %s237, %s239
      %p246 = scmp.eq.s32.totalorder %s26, 1
      %p247 = por %p245, %p246
      %p248 = scmp.ne.s32.totalorder %s239, %s240
      %p249 = scmp.eq.s32.totalorder %s26, 0
      %p250 = por %p248, %p249
      %p251 = scmp.ne.s32.totalorder %s239, %s240
      %p252 = scmp.eq.s32.totalorder %s27, 1
      %p253 = por %p251, %p252
      %p255 = scmp.ne.s32.totalorder %s240, %s254
      %p256 = scmp.eq.s32.totalorder %s27, 0
      %p257 = por %p255, %p256
      %s258 = ssub.s32 %s28, %s40
      %p259 = scmp.eq.s32.totalorder %s258, 0
      %s261 = sadd.s32 %s260, 1
      %s262 = scalar_select %p259, %s260, %s261
      %p265 = pneg %p259
      %p266 = scmp.eq.s32.totalorder %s21, 1
      %p267 = por %p265, %p266
      %p268 = scmp.ne.s32.totalorder %s260, %s263
      %p269 = scmp.eq.s32.totalorder %s21, 0
      %p270 = por %p268, %p269
      %p271 = scmp.ne.s32.totalorder %s260, %s263
      %p272 = scmp.eq.s32.totalorder %s26, 1
      %p273 = por %p271, %p272
      %p274 = scmp.ne.s32.totalorder %s263, %s264
      %p275 = scmp.eq.s32.totalorder %s26, 0
      %p276 = por %p274, %p275
      %p277 = scmp.ne.s32.totalorder %s263, %s264
      %p278 = scmp.eq.s32.totalorder %s27, 1
      %p279 = por %p277, %p278
      %p281 = scmp.ne.s32.totalorder %s264, %s280
      %p282 = scmp.eq.s32.totalorder %s27, 0
      %p283 = por %p281, %p282
      %p284 = scmp.le.s32.totalorder 1, %s21
      %p285 = scmp.lt.s32.totalorder %s21, 3
      %p286 = pnand %p284, %p285
      %p287 = pneg %p286
      // Predicated region
      $region9: #{pointnet_encoder.3} parent=5 // pred_check
        _
      $region10: #{pointnet_encoder.3} parent=5 // pred_check_branch
        %289 = sbr.rel (%p286) target = $region12
      $region11: #{pointnet_encoder.3} parent=5 // pred_region
        %s290 = ssub.s32 %s21, 1
        // Predicated region
        $region13: #{pointnet_encoder.3} parent=11 // pred_check
          %p291 = pneg %p82
        $region14: #{pointnet_encoder.3} parent=11 // pred_check_branch
          %293 = sbr.rel (%p291) target = $region16
        $region15: #{pointnet_encoder.3} parent=11 // pred_region
          _
        $region16: #{pointnet_encoder.3} parent=11 // pred_fallthru
          _
        // Predicated region
        $region17: #{pointnet_encoder.3} parent=11 // pred_check
          %p294 = pneg %p103
        $region18: #{pointnet_encoder.3} parent=11 // pred_check_branch
          %296 = sbr.rel (%p294) target = $region20
        $region19: #{pointnet_encoder.3} parent=11 // pred_region
          %298 = vsyncadd [#allocation3], 0
          %s300 = sshll.u32 %s2, 4
          %s301 = int_to_ptr.hbm [resolvable:$true] %s300
          %s302 = sshll.u32 [#allocation2], 4
          %s303 = int_to_ptr.vmem [resolvable:$true] %s302
          %305 = dma.hbm_to_vmem [thread:$0]  %s301, 16, %s303, [#allocation3]
        $region20: #{pointnet_encoder.3} parent=11 // pred_fallthru
          _
        // Predicated region
        $region21: #{pointnet_encoder.3} parent=11 // pred_check
          %p306 = pneg %p124
        $region22: #{pointnet_encoder.3} parent=11 // pred_check_branch
          %308 = sbr.rel (%p306) target = $region24
        $region23: #{pointnet_encoder.3} parent=11 // pred_region
          %310 = vsyncadd [#allocation5], 0
          %s312 = sshll.u32 %s3, 4
          %s313 = int_to_ptr.hbm [resolvable:$true] %s312
          %s314 = sshll.u32 [#allocation4], 4
          %s315 = int_to_ptr.vmem [resolvable:$true] %s314
          %317 = dma.hbm_to_vmem [thread:$0]  %s313, 16, %s315, [#allocation5]
        $region24: #{pointnet_encoder.3} parent=11 // pred_fallthru
          _
        // Predicated region
        $region25: #{pointnet_encoder.3} parent=11 // pred_check
          %p318 = pneg %p145
        $region26: #{pointnet_encoder.3} parent=11 // pred_check_branch
          %320 = sbr.rel (%p318) target = $region28
        $region27: #{pointnet_encoder.3} parent=11 // pred_region
          %322 = vsyncadd [#allocation5], 0
          %s323 = sshll.u32 %s4, 4
          %s324 = int_to_ptr.hbm [resolvable:$true] %s323
          %s325 = sshll.u32 [#allocation6], 4
          %s326 = int_to_ptr.vmem [resolvable:$true] %s325
          %331 = dma.hbm_to_vmem [thread:$0]  %s324, 512, %s326, [#allocation5], 64, 64, 4
        $region28: #{pointnet_encoder.3} parent=11 // pred_fallthru
          _
        // Predicated region
        $region29: #{pointnet_encoder.3} parent=11 // pred_check
          %p332 = pneg %p166
        $region30: #{pointnet_encoder.3} parent=11 // pred_check_branch
          %334 = sbr.rel (%p332) target = $region32
        $region31: #{pointnet_encoder.3} parent=11 // pred_region
          %336 = vsyncadd [#allocation8], 0
          %s338 = sshll.u32 %s5, 4
          %s339 = int_to_ptr.hbm [resolvable:$true] %s338
          %s340 = sshll.u32 [#allocation7], 4
          %s341 = int_to_ptr.vmem [resolvable:$true] %s340
          %343 = dma.hbm_to_vmem [thread:$0]  %s339, 16, %s341, [#allocation8]
        $region32: #{pointnet_encoder.3} parent=11 // pred_fallthru
          _
        // Predicated region
        $region33: #{pointnet_encoder.3} parent=11 // pred_check
          %p344 = pneg %p187
        $region34: #{pointnet_encoder.3} parent=11 // pred_check_branch
          %346 = sbr.rel (%p344) target = $region36
        $region35: #{pointnet_encoder.3} parent=11 // pred_region
          %348 = vsyncadd [#allocation8], 0
          %s350 = sshll.u32 %s6, 4
          %s351 = int_to_ptr.hbm [resolvable:$true] %s350
          %s352 = sshll.u32 [#allocation9], 4
          %s353 = int_to_ptr.vmem [resolvable:$true] %s352
          %355 = dma.hbm_to_vmem [thread:$0]  %s351, 16, %s353, [#allocation8]
        $region36: #{pointnet_encoder.3} parent=11 // pred_fallthru
          _
        // Predicated region
        $region37: #{pointnet_encoder.3} parent=11 // pred_check
          %p356 = pneg %p208
        $region38: #{pointnet_encoder.3} parent=11 // pred_check_branch
          %358 = sbr.rel (%p356) target = $region40
        $region39: #{pointnet_encoder.3} parent=11 // pred_region
          %360 = vsyncadd [#allocation11], 0
          %s361 = sshll.u32 %s7, 4
          %s362 = int_to_ptr.hbm [resolvable:$true] %s361
          %s363 = sshll.u32 [#allocation10], 4
          %s364 = int_to_ptr.vmem [resolvable:$true] %s363
          %369 = dma.hbm_to_vmem [thread:$0]  %s362, 8192, %s364, [#allocation11], 512, 512, 32
        $region40: #{pointnet_encoder.3} parent=11 // pred_fallthru
          _
        // Predicated region
        $region41: #{pointnet_encoder.3} parent=11 // pred_check
          %p370 = pneg %p229
        $region42: #{pointnet_encoder.3} parent=11 // pred_check_branch
          %372 = sbr.rel (%p370) target = $region44
        $region43: #{pointnet_encoder.3} parent=11 // pred_region
          %374 = vsyncadd [#allocation11], 0
          %s376 = sshll.u32 %s8, 4
          %s377 = int_to_ptr.hbm [resolvable:$true] %s376
          %s378 = sshll.u32 [#allocation12], 4
          %s379 = int_to_ptr.vmem [resolvable:$true] %s378
          %381 = dma.hbm_to_vmem [thread:$0]  %s377, 128, %s379, [#allocation11]
        $region44: #{pointnet_encoder.3} parent=11 // pred_fallthru
          _
        // Predicated region
        $region45: #{pointnet_encoder.3} parent=11 // pred_check
          %p382 = pneg %p250
        $region46: #{pointnet_encoder.3} parent=11 // pred_check_branch
          %384 = sbr.rel (%p382) target = $region48
        $region47: #{pointnet_encoder.3} parent=11 // pred_region
          %386 = vsyncadd [#allocation14], 0
          %s388 = sshll.u32 %s9, 4
          %s389 = int_to_ptr.hbm [resolvable:$true] %s388
          %s390 = sshll.u32 [#allocation13], 4
          %s391 = int_to_ptr.vmem [resolvable:$true] %s390
          %393 = dma.hbm_to_vmem [thread:$0]  %s389, 128, %s391, [#allocation14]
        $region48: #{pointnet_encoder.3} parent=11 // pred_fallthru
          _
      $region12: #{pointnet_encoder.3} parent=5 // pred_fallthru
        _
      %p394 = scmp.lt.s32.totalorder %s21, 2
      // Predicated region
      $region49: #{pointnet_encoder.3} parent=5 // pred_check
        %p395 = pneg %p394
      $region50: #{pointnet_encoder.3} parent=5 // pred_check_branch
        %397 = sbr.rel (%p395) target = $region52
      $region51: #{pointnet_encoder.3} parent=5 // pred_region
        // Predicated region
        $region53: #{pointnet_encoder.3} parent=51 // pred_check
          %p398 = pneg %p55
        $region54: #{pointnet_encoder.3} parent=51 // pred_check_branch
          %400 = sbr.rel (%p398) target = $region56
        $region55: #{pointnet_encoder.3} parent=51 // pred_region
          %s401 = smul.u32 2, %s29
          %p402 = scmp.lt.s32.totalorder %s28, 1
          %s403 = scalar_select %p402, %s28, 1
          %p404 = scmp.lt.s32.totalorder %s401, 1
          %s405 = scalar_select %p404, %s401, 1
          %s406 = smul.addr %s403, 2
          %s407 = sadd.s32 %s405, %s406
          %s408 = smul.addr %s407, 8
          %s409 = scalar_lea.vmem %s0, %s408
          %s410 = smul.u32 2, %s29
        $region56: #{pointnet_encoder.3} parent=51 // pred_fallthru
          _
      $region52: #{pointnet_encoder.3} parent=5 // pred_fallthru
        _
      %p411 = scmp.le.s32.totalorder 1, %s21
      %p412 = scmp.lt.s32.totalorder %s21, 3
      %p413 = pnand %p411, %p412
      %p414 = pneg %p413
      // Predicated region
      $region57: #{pointnet_encoder.3} parent=5 // pred_check
        _
      $region58: #{pointnet_encoder.3} parent=5 // pred_check_branch
        %416 = sbr.rel (%p413) target = $region60
      $region59: #{pointnet_encoder.3} parent=5 // pred_region
        %s417 = ssub.s32 %s21, 1
        // Predicated region
        $region61: #{pointnet_encoder.3} parent=59 // pred_check
          %p418 = pneg %p103
        $region62: #{pointnet_encoder.3} parent=59 // pred_check_branch
          %420 = sbr.rel (%p418) target = $region64
        $region63: #{pointnet_encoder.3} parent=59 // pred_region
          %422 = dma.done [#allocation3], 16
        $region64: #{pointnet_encoder.3} parent=59 // pred_fallthru
          _
        // Predicated region
        $region65: #{pointnet_encoder.3} parent=59 // pred_check
          %p423 = pneg %p124
        $region66: #{pointnet_encoder.3} parent=59 // pred_check_branch
          %425 = sbr.rel (%p423) target = $region68
        $region67: #{pointnet_encoder.3} parent=59 // pred_region
          %427 = dma.done [#allocation5], 16
        $region68: #{pointnet_encoder.3} parent=59 // pred_fallthru
          _
        // Predicated region
        $region69: #{pointnet_encoder.3} parent=59 // pred_check
          %p428 = pneg %p145
        $region70: #{pointnet_encoder.3} parent=59 // pred_check_branch
          %430 = sbr.rel (%p428) target = $region72
        $region71: #{pointnet_encoder.3} parent=59 // pred_region
          %432 = dma.done [#allocation5], 512
        $region72: #{pointnet_encoder.3} parent=59 // pred_fallthru
          _
        // Predicated region
        $region73: #{pointnet_encoder.3} parent=59 // pred_check
          %p433 = pneg %p166
        $region74: #{pointnet_encoder.3} parent=59 // pred_check_branch
          %435 = sbr.rel (%p433) target = $region76
        $region75: #{pointnet_encoder.3} parent=59 // pred_region
          %437 = dma.done [#allocation8], 16
        $region76: #{pointnet_encoder.3} parent=59 // pred_fallthru
          _
        // Predicated region
        $region77: #{pointnet_encoder.3} parent=59 // pred_check
          %p438 = pneg %p187
        $region78: #{pointnet_encoder.3} parent=59 // pred_check_branch
          %440 = sbr.rel (%p438) target = $region80
        $region79: #{pointnet_encoder.3} parent=59 // pred_region
          %442 = dma.done [#allocation8], 16
        $region80: #{pointnet_encoder.3} parent=59 // pred_fallthru
          _
        // Predicated region
        $region81: #{pointnet_encoder.3} parent=59 // pred_check
          %p443 = pneg %p208
        $region82: #{pointnet_encoder.3} parent=59 // pred_check_branch
          %445 = sbr.rel (%p443) target = $region84
        $region83: #{pointnet_encoder.3} parent=59 // pred_region
          %447 = dma.done [#allocation11], 8192
        $region84: #{pointnet_encoder.3} parent=59 // pred_fallthru
          _
        // Predicated region
        $region85: #{pointnet_encoder.3} parent=59 // pred_check
          %p448 = pneg %p229
        $region86: #{pointnet_encoder.3} parent=59 // pred_check_branch
          %450 = sbr.rel (%p448) target = $region88
        $region87: #{pointnet_encoder.3} parent=59 // pred_region
          %452 = dma.done [#allocation11], 128
        $region88: #{pointnet_encoder.3} parent=59 // pred_fallthru
          _
        // Predicated region
        $region89: #{pointnet_encoder.3} parent=59 // pred_check
          %p453 = pneg %p250
        $region90: #{pointnet_encoder.3} parent=59 // pred_check_branch
          %455 = sbr.rel (%p453) target = $region92
        $region91: #{pointnet_encoder.3} parent=59 // pred_region
          %457 = dma.done [#allocation14], 128
        $region92: #{pointnet_encoder.3} parent=59 // pred_fallthru
          _
        %s458 = smul.u32 2, %s31
        %p459 = scmp.lt.s32.totalorder %s30, 1
        %s460 = scalar_select %p459, %s30, 1
        %p461 = scmp.lt.s32.totalorder %s458, 1
        %s462 = scalar_select %p461, %s458, 1
        %s463 = smul.addr %s460, 2
        %s464 = sadd.s32 %s462, %s463
        %s465 = smul.addr %s464, 8
        %s466 = scalar_lea.vmem %s0, %s465
        %p467 = pneg %p61
        %p468 = pneg %p58
        %p469 = pneg %p82
        %p470 = pneg %p79
        %p471 = pneg %p103
        %p472 = pneg %p100
        %p473 = pneg %p124
        %p474 = pneg %p121
        %p475 = pneg %p145
        %p476 = pneg %p142
        %p477 = pneg %p166
        %p478 = pneg %p163
        %p479 = pneg %p187
        %p480 = pneg %p184
        %p481 = pneg %p208
        %p482 = pneg %p205
        %p483 = pneg %p229
        %p484 = pneg %p226
        %p485 = pneg %p250
        %p486 = pneg %p247
        %p487 = pneg %p276
        %p488 = pneg %p273
        %p489 = scmp.lt.s32.totalorder %s30, 1
        %s490 = scalar_select %p489, %s30, 1
        %s491 = smul.addr %s490, 8
        %s492 = scalar_lea.vmem %s10, %s491
        %s493 = smul.u32 2, %s31
        %p494 = scmp.lt.s32.totalorder %s30, 1
        %s495 = scalar_select %p494, %s30, 1
        %p496 = scmp.lt.s32.totalorder %s493, 1
        %s497 = scalar_select %p496, %s493, 1
        %s498 = smul.addr %s495, 2
        %s499 = sadd.s32 %s497, %s498
        %s500 = smul.addr %s499, 8
        %s501 = scalar_lea.vmem %s0, %s500
        %s502 = smul.u32 2, %s31
        %p503 = scmp.lt.s32.totalorder %s30, 1
        %s504 = scalar_select %p503, %s30, 1
        %s505 = smul.addr %s504, 8
        %s506 = scalar_lea.vmem %s10, %s505
        %v508 = vld [vmem:[%s501] sm:$0xff]
        %v509 = vld [vmem:[%s501 + $0x8] sm:$0xff]
        %v510 = vld [vmem:[%s1] sm:$0x7]
        %512 = vset.pattern.permute.xlu0 0
        %513 = vperm.xlu0 %512, %v508
        %v514 = vpop.permute.xlu0 %513
        %517 = vset.pattern.permute.xlu0 0
        %518 = vperm.xlu0 %517, %v509
        %v519 = vpop.permute.xlu0 %518
        %v521 = vperm.slane %v510, 0
        %v522 = vmul.f32 %v514, %v521
        %v523 = vmul.f32 %v519, %v521
        %v524 = vadd.f32 %v522, 0.0
        %v525 = vadd.f32 %v523, 0.0
        %526 = vset.pattern.permute.xlu0 1
        %527 = vperm.xlu0 %526, %v508
        %v528 = vpop.permute.xlu0 %527
        %530 = vset.pattern.permute.xlu0 1
        %531 = vperm.xlu0 %530, %v509
        %v532 = vpop.permute.xlu0 %531
        %v534 = vperm.slane %v510, 1
        %v535 = vmul.f32 %v528, %v534
        %v536 = vmul.f32 %v532, %v534
        %v537 = vadd.f32 %v524, %v535
        %v538 = vadd.f32 %v525, %v536
        %539 = vset.pattern.permute.xlu0 2
        %540 = vperm.xlu0 %539, %v508
        %v541 = vpop.permute.xlu0 %540
        %543 = vset.pattern.permute.xlu0 2
        %544 = vperm.xlu0 %543, %v509
        %v545 = vpop.permute.xlu0 %544
        %v547 = vperm.slane %v510, 2
        %v548 = vmul.f32 %v541, %v547
        %v549 = vmul.f32 %v545, %v547
        %v550 = vadd.f32 %v537, %v548
        %v551 = vadd.f32 %v538, %v549
        %v552 = vld [vmem:[#allocation2] sm:$0x1]
        %v554 = vperm.slane %v552, 0
        %v556 = vmul.f32 %v550, %v554
        %v557 = vmul.f32 %v551, %v554
        %v558 = vld [vmem:[#allocation4] sm:$0x1]
        %v560 = vperm.slane %v558, 0
        %v562 = vadd.f32 %v556, %v560
        %v563 = vadd.f32 %v557, %v560
        %v564 = vmax.f32 %v562, 0.0
        %v565 = vmax.f32 %v563, 0.0
        %v566 = vpack.c.bf16 %v565, %v564
        %v567 = vld [vmem:[#allocation6] sm:$0xf]
        %v568 = vld [vmem:[#allocation6 + $0x4] sm:$0xf]
        %v569 = vld [vmem:[#allocation6 + $0x8] sm:$0xf]
        %v570 = vld [vmem:[#allocation6 + $0xc] sm:$0xf]
        %v571 = vld [vmem:[#allocation6 + $0x10] sm:$0xf]
        %v572 = vld [vmem:[#allocation6 + $0x14] sm:$0xf]
        %v573 = vld [vmem:[#allocation6 + $0x18] sm:$0xf]
        %v574 = vld [vmem:[#allocation6 + $0x1c] sm:$0xf]
        %v583 = vunpack.c.l.b16 %v567
        %v584 = vunpack.c.l.b16 %v568
        %v585 = vunpack.c.l.b16 %v569
        %v586 = vunpack.c.l.b16 %v570
        %v587 = vunpack.c.l.b16 %v571
        %v588 = vunpack.c.l.b16 %v572
        %v589 = vunpack.c.l.b16 %v573
        %v590 = vunpack.c.l.b16 %v574
        %v591 = vpack.c.b16 %v584, %v583
        %v592 = vpack.c.b16 %v586, %v585
        %v593 = vpack.c.b16 %v588, %v587
        %v594 = vpack.c.b16 %v590, %v589
        %vm599 = vcmask 523264
        %v601 = vsel %vm599, %v566, 0
        %603 = vmatpush.bf16.msra.mxu0 0
        %604 = vmatpush.bf16.msra.mxu0 0
        %605 = vmatpush.bf16.msra.mxu0 0
        %606 = vmatpush.bf16.msra.mxu0 0
        %607 = vmatpush.bf16.msra.mxu0 %v594
        %608 = vmatpush.bf16.msra.mxu0 %v593
        %609 = vmatpush.bf16.msra.mxu0 %v592
        %610 = vmatpush.bf16.msra.mxu0 %v591
        %611 = vmatmul.bf16.gmra.mxu0 %v601
        %v612 = vpop.f32.mrf.mxu0
        %v613 = vadd.f32 0.0, %v612
        %v614 = vpop.f32.mrf.mxu0
        %v615 = vadd.f32 0.0, %v614
        %616 = vdwg.mxu0
        %v617 = vld [vmem:[#allocation7] sm:$0x1]
        %v619 = vperm.slane %v617, 0
        %v621 = vmul.f32 %v613, %v619
        %v622 = vmul.f32 %v615, %v619
        %v623 = vld [vmem:[#allocation9] sm:$0x1]
        %v625 = vperm.slane %v623, 0
        %v627 = vadd.f32 %v621, %v625
        %v628 = vadd.f32 %v622, %v625
        %v629 = vmax.f32 %v627, 0.0
        %v630 = vmax.f32 %v628, 0.0
        %v631 = vpack.c.bf16 %v630, %v629
        %v632 = vld [vmem:[#allocation10] sm:$0xff]
        %v633 = vld [vmem:[#allocation10 + $0x8] sm:$0xff]
        %v634 = vld [vmem:[#allocation10 + $0x10] sm:$0xff]
        %v635 = vld [vmem:[#allocation10 + $0x18] sm:$0xff]
        %v636 = vld [vmem:[#allocation10 + $0x20] sm:$0xff]
        %v637 = vld [vmem:[#allocation10 + $0x28] sm:$0xff]
        %v638 = vld [vmem:[#allocation10 + $0x30] sm:$0xff]
        %v639 = vld [vmem:[#allocation10 + $0x38] sm:$0xff]
        %v640 = vld [vmem:[#allocation10 + $0x40] sm:$0xff]
        %v641 = vld [vmem:[#allocation10 + $0x48] sm:$0xff]
        %v642 = vld [vmem:[#allocation10 + $0x50] sm:$0xff]
        %v643 = vld [vmem:[#allocation10 + $0x58] sm:$0xff]
        %v644 = vld [vmem:[#allocation10 + $0x60] sm:$0xff]
        %v645 = vld [vmem:[#allocation10 + $0x68] sm:$0xff]
        %v646 = vld [vmem:[#allocation10 + $0x70] sm:$0xff]
        %v647 = vld [vmem:[#allocation10 + $0x78] sm:$0xff]
        %v648 = vld [vmem:[#allocation10 + $0x80] sm:$0xff]
        %v649 = vld [vmem:[#allocation10 + $0x88] sm:$0xff]
        %v650 = vld [vmem:[#allocation10 + $0x90] sm:$0xff]
        %v651 = vld [vmem:[#allocation10 + $0x98] sm:$0xff]
        %v652 = vld [vmem:[#allocation10 + $0xa0] sm:$0xff]
        %v653 = vld [vmem:[#allocation10 + $0xa8] sm:$0xff]
        %v654 = vld [vmem:[#allocation10 + $0xb0] sm:$0xff]
        %v655 = vld [vmem:[#allocation10 + $0xb8] sm:$0xff]
        %v656 = vld [vmem:[#allocation10 + $0xc0] sm:$0xff]
        %v657 = vld [vmem:[#allocation10 + $0xc8] sm:$0xff]
        %v658 = vld [vmem:[#allocation10 + $0xd0] sm:$0xff]
        %v659 = vld [vmem:[#allocation10 + $0xd8] sm:$0xff]
        %v660 = vld [vmem:[#allocation10 + $0xe0] sm:$0xff]
        %v661 = vld [vmem:[#allocation10 + $0xe8] sm:$0xff]
        %v662 = vld [vmem:[#allocation10 + $0xf0] sm:$0xff]
        %v663 = vld [vmem:[#allocation10 + $0xf8] sm:$0xff]
        %v664 = vld [vmem:[#allocation10 + $0x100] sm:$0xff]
        %v665 = vld [vmem:[#allocation10 + $0x108] sm:$0xff]
        %v666 = vld [vmem:[#allocation10 + $0x110] sm:$0xff]
        %v667 = vld [vmem:[#allocation10 + $0x118] sm:$0xff]
        %v668 = vld [vmem:[#allocation10 + $0x120] sm:$0xff]
        %v669 = vld [vmem:[#allocation10 + $0x128] sm:$0xff]
        %v670 = vld [vmem:[#allocation10 + $0x130] sm:$0xff]
        %v671 = vld [vmem:[#allocation10 + $0x138] sm:$0xff]
        %v672 = vld [vmem:[#allocation10 + $0x140] sm:$0xff]
        %v673 = vld [vmem:[#allocation10 + $0x148] sm:$0xff]
        %v674 = vld [vmem:[#allocation10 + $0x150] sm:$0xff]
        %v675 = vld [vmem:[#allocation10 + $0x158] sm:$0xff]
        %v676 = vld [vmem:[#allocation10 + $0x160] sm:$0xff]
        %v677 = vld [vmem:[#allocation10 + $0x168] sm:$0xff]
        %v678 = vld [vmem:[#allocation10 + $0x170] sm:$0xff]
        %v679 = vld [vmem:[#allocation10 + $0x178] sm:$0xff]
        %v680 = vld [vmem:[#allocation10 + $0x180] sm:$0xff]
        %v681 = vld [vmem:[#allocation10 + $0x188] sm:$0xff]
        %v682 = vld [vmem:[#allocation10 + $0x190] sm:$0xff]
        %v683 = vld [vmem:[#allocation10 + $0x198] sm:$0xff]
        %v684 = vld [vmem:[#allocation10 + $0x1a0] sm:$0xff]
        %v685 = vld [vmem:[#allocation10 + $0x1a8] sm:$0xff]
        %v686 = vld [vmem:[#allocation10 + $0x1b0] sm:$0xff]
        %v687 = vld [vmem:[#allocation10 + $0x1b8] sm:$0xff]
        %v688 = vld [vmem:[#allocation10 + $0x1c0] sm:$0xff]
        %v689 = vld [vmem:[#allocation10 + $0x1c8] sm:$0xff]
        %v690 = vld [vmem:[#allocation10 + $0x1d0] sm:$0xff]
        %v691 = vld [vmem:[#allocation10 + $0x1d8] sm:$0xff]
        %v692 = vld [vmem:[#allocation10 + $0x1e0] sm:$0xff]
        %v693 = vld [vmem:[#allocation10 + $0x1e8] sm:$0xff]
        %v694 = vld [vmem:[#allocation10 + $0x1f0] sm:$0xff]
        %v695 = vld [vmem:[#allocation10 + $0x1f8] sm:$0xff]
        %v760 = vunpack.c.l.b16 %v632
        %v761 = vunpack.c.h.b16 %v632
        %v762 = vunpack.c.l.b16 %v633
        %v763 = vunpack.c.h.b16 %v633
        %v764 = vunpack.c.l.b16 %v634
        %v765 = vunpack.c.h.b16 %v634
        %v766 = vunpack.c.l.b16 %v635
        %v767 = vunpack.c.h.b16 %v635
        %v768 = vunpack.c.l.b16 %v636
        %v769 = vunpack.c.h.b16 %v636
        %v770 = vunpack.c.l.b16 %v637
        %v771 = vunpack.c.h.b16 %v637
        %v772 = vunpack.c.l.b16 %v638
        %v773 = vunpack.c.h.b16 %v638
        %v774 = vunpack.c.l.b16 %v639
        %v775 = vunpack.c.h.b16 %v639
        %v776 = vunpack.c.l.b16 %v640
        %v777 = vunpack.c.h.b16 %v640
        %v778 = vunpack.c.l.b16 %v641
        %v779 = vunpack.c.h.b16 %v641
        %v780 = vunpack.c.l.b16 %v642
        %v781 = vunpack.c.h.b16 %v642
        %v782 = vunpack.c.l.b16 %v643
        %v783 = vunpack.c.h.b16 %v643
        %v784 = vunpack.c.l.b16 %v644
        %v785 = vunpack.c.h.b16 %v644
        %v786 = vunpack.c.l.b16 %v645
        %v787 = vunpack.c.h.b16 %v645
        %v788 = vunpack.c.l.b16 %v646
        %v789 = vunpack.c.h.b16 %v646
        %v790 = vunpack.c.l.b16 %v647
        %v791 = vunpack.c.h.b16 %v647
        %v792 = vunpack.c.l.b16 %v648
        %v793 = vunpack.c.h.b16 %v648
        %v794 = vunpack.c.l.b16 %v649
        %v795 = vunpack.c.h.b16 %v649
        %v796 = vunpack.c.l.b16 %v650
        %v797 = vunpack.c.h.b16 %v650
        %v798 = vunpack.c.l.b16 %v651
        %v799 = vunpack.c.h.b16 %v651
        %v800 = vunpack.c.l.b16 %v652
        %v801 = vunpack.c.h.b16 %v652
        %v802 = vunpack.c.l.b16 %v653
        %v803 = vunpack.c.h.b16 %v653
        %v804 = vunpack.c.l.b16 %v654
        %v805 = vunpack.c.h.b16 %v654
        %v806 = vunpack.c.l.b16 %v655
        %v807 = vunpack.c.h.b16 %v655
        %v808 = vunpack.c.l.b16 %v656
        %v809 = vunpack.c.h.b16 %v656
        %v810 = vunpack.c.l.b16 %v657
        %v811 = vunpack.c.h.b16 %v657
        %v812 = vunpack.c.l.b16 %v658
        %v813 = vunpack.c.h.b16 %v658
        %v814 = vunpack.c.l.b16 %v659
        %v815 = vunpack.c.h.b16 %v659
        %v816 = vunpack.c.l.b16 %v660
        %v817 = vunpack.c.h.b16 %v660
        %v818 = vunpack.c.l.b16 %v661
        %v819 = vunpack.c.h.b16 %v661
        %v820 = vunpack.c.l.b16 %v662
        %v821 = vunpack.c.h.b16 %v662
        %v822 = vunpack.c.l.b16 %v663
        %v823 = vunpack.c.h.b16 %v663
        %v824 = vunpack.c.l.b16 %v664
        %v825 = vunpack.c.h.b16 %v664
        %v826 = vunpack.c.l.b16 %v665
        %v827 = vunpack.c.h.b16 %v665
        %v828 = vunpack.c.l.b16 %v666
        %v829 = vunpack.c.h.b16 %v666
        %v830 = vunpack.c.l.b16 %v667
        %v831 = vunpack.c.h.b16 %v667
        %v832 = vunpack.c.l.b16 %v668
        %v833 = vunpack.c.h.b16 %v668
        %v834 = vunpack.c.l.b16 %v669
        %v835 = vunpack.c.h.b16 %v669
        %v836 = vunpack.c.l.b16 %v670
        %v837 = vunpack.c.h.b16 %v670
        %v838 = vunpack.c.l.b16 %v671
        %v839 = vunpack.c.h.b16 %v671
        %v840 = vunpack.c.l.b16 %v672
        %v841 = vunpack.c.h.b16 %v672
        %v842 = vunpack.c.l.b16 %v673
        %v843 = vunpack.c.h.b16 %v673
        %v844 = vunpack.c.l.b16 %v674
        %v845 = vunpack.c.h.b16 %v674
        %v846 = vunpack.c.l.b16 %v675
        %v847 = vunpack.c.h.b16 %v675
        %v848 = vunpack.c.l.b16 %v676
        %v849 = vunpack.c.h.b16 %v676
        %v850 = vunpack.c.l.b16 %v677
        %v851 = vunpack.c.h.b16 %v677
        %v852 = vunpack.c.l.b16 %v678
        %v853 = vunpack.c.h.b16 %v678
        %v854 = vunpack.c.l.b16 %v679
        %v855 = vunpack.c.h.b16 %v679
        %v856 = vunpack.c.l.b16 %v680
        %v857 = vunpack.c.h.b16 %v680
        %v858 = vunpack.c.l.b16 %v681
        %v859 = vunpack.c.h.b16 %v681
        %v860 = vunpack.c.l.b16 %v682
        %v861 = vunpack.c.h.b16 %v682
        %v862 = vunpack.c.l.b16 %v683
        %v863 = vunpack.c.h.b16 %v683
        %v864 = vunpack.c.l.b16 %v684
        %v865 = vunpack.c.h.b16 %v684
        %v866 = vunpack.c.l.b16 %v685
        %v867 = vunpack.c.h.b16 %v685
        %v868 = vunpack.c.l.b16 %v686
        %v869 = vunpack.c.h.b16 %v686
        %v870 = vunpack.c.l.b16 %v687
        %v871 = vunpack.c.h.b16 %v687
        %v872 = vunpack.c.l.b16 %v688
        %v873 = vunpack.c.h.b16 %v688
        %v874 = vunpack.c.l.b16 %v689
        %v875 = vunpack.c.h.b16 %v689
        %v876 = vunpack.c.l.b16 %v690
        %v877 = vunpack.c.h.b16 %v690
        %v878 = vunpack.c.l.b16 %v691
        %v879 = vunpack.c.h.b16 %v691
        %v880 = vunpack.c.l.b16 %v692
        %v881 = vunpack.c.h.b16 %v692
        %v882 = vunpack.c.l.b16 %v693
        %v883 = vunpack.c.h.b16 %v693
        %v884 = vunpack.c.l.b16 %v694
        %v885 = vunpack.c.h.b16 %v694
        %v886 = vunpack.c.l.b16 %v695
        %v887 = vunpack.c.h.b16 %v695
        %v888 = vpack.c.b16 %v768, %v760
        %v889 = vpack.c.b16 %v769, %v761
        %v890 = vpack.c.b16 %v770, %v762
        %v891 = vpack.c.b16 %v771, %v763
        %v892 = vpack.c.b16 %v772, %v764
        %v893 = vpack.c.b16 %v773, %v765
        %v894 = vpack.c.b16 %v774, %v766
        %v895 = vpack.c.b16 %v775, %v767
        %v896 = vpack.c.b16 %v784, %v776
        %v897 = vpack.c.b16 %v785, %v777
        %v898 = vpack.c.b16 %v786, %v778
        %v899 = vpack.c.b16 %v787, %v779
        %v900 = vpack.c.b16 %v788, %v780
        %v901 = vpack.c.b16 %v789, %v781
        %v902 = vpack.c.b16 %v790, %v782
        %v903 = vpack.c.b16 %v791, %v783
        %v904 = vpack.c.b16 %v800, %v792
        %v905 = vpack.c.b16 %v801, %v793
        %v906 = vpack.c.b16 %v802, %v794
        %v907 = vpack.c.b16 %v803, %v795
        %v908 = vpack.c.b16 %v804, %v796
        %v909 = vpack.c.b16 %v805, %v797
        %v910 = vpack.c.b16 %v806, %v798
        %v911 = vpack.c.b16 %v807, %v799
        %v912 = vpack.c.b16 %v816, %v808
        %v913 = vpack.c.b16 %v817, %v809
        %v914 = vpack.c.b16 %v818, %v810
        %v915 = vpack.c.b16 %v819, %v811
        %v916 = vpack.c.b16 %v820, %v812
        %v917 = vpack.c.b16 %v821, %v813
        %v918 = vpack.c.b16 %v822, %v814
        %v919 = vpack.c.b16 %v823, %v815
        %v920 = vpack.c.b16 %v832, %v824
        %v921 = vpack.c.b16 %v833, %v825
        %v922 = vpack.c.b16 %v834, %v826
        %v923 = vpack.c.b16 %v835, %v827
        %v924 = vpack.c.b16 %v836, %v828
        %v925 = vpack.c.b16 %v837, %v829
        %v926 = vpack.c.b16 %v838, %v830
        %v927 = vpack.c.b16 %v839, %v831
        %v928 = vpack.c.b16 %v848, %v840
        %v929 = vpack.c.b16 %v849, %v841
        %v930 = vpack.c.b16 %v850, %v842
        %v931 = vpack.c.b16 %v851, %v843
        %v932 = vpack.c.b16 %v852, %v844
        %v933 = vpack.c.b16 %v853, %v845
        %v934 = vpack.c.b16 %v854, %v846
        %v935 = vpack.c.b16 %v855, %v847
        %v936 = vpack.c.b16 %v864, %v856
        %v937 = vpack.c.b16 %v865, %v857
        %v938 = vpack.c.b16 %v866, %v858
        %v939 = vpack.c.b16 %v867, %v859
        %v940 = vpack.c.b16 %v868, %v860
        %v941 = vpack.c.b16 %v869, %v861
        %v942 = vpack.c.b16 %v870, %v862
        %v943 = vpack.c.b16 %v871, %v863
        %v944 = vpack.c.b16 %v880, %v872
        %v945 = vpack.c.b16 %v881, %v873
        %v946 = vpack.c.b16 %v882, %v874
        %v947 = vpack.c.b16 %v883, %v875
        %v948 = vpack.c.b16 %v884, %v876
        %v949 = vpack.c.b16 %v885, %v877
        %v950 = vpack.c.b16 %v886, %v878
        %v951 = vpack.c.b16 %v887, %v879
        %1016 = vmatpush.bf16.msra.mxu0 %v944
        %1017 = vmatpush.bf16.msra.mxu0 %v936
        %1018 = vmatpush.bf16.msra.mxu0 %v928
        %1019 = vmatpush.bf16.msra.mxu0 %v920
        %1020 = vmatpush.bf16.msra.mxu0 %v912
        %1021 = vmatpush.bf16.msra.mxu0 %v904
        %1022 = vmatpush.bf16.msra.mxu0 %v896
        %1023 = vmatpush.bf16.msra.mxu0 %v888
        %1024 = vmatmul.bf16.gmra.mxu0 %v631
        %v1025 = vpop.f32.mrf.mxu0
        %v1026 = vadd.f32 0.0, %v1025
        %v1027 = vpop.f32.mrf.mxu0
        %v1028 = vadd.f32 0.0, %v1027
        %1029 = vdwg.mxu0
        %1030 = vmatpush.bf16.msra.mxu0 %v945
        %1031 = vmatpush.bf16.msra.mxu0 %v937
        %1032 = vmatpush.bf16.msra.mxu0 %v929
        %1033 = vmatpush.bf16.msra.mxu0 %v921
        %1034 = vmatpush.bf16.msra.mxu0 %v913
        %1035 = vmatpush.bf16.msra.mxu0 %v905
        %1036 = vmatpush.bf16.msra.mxu0 %v897
        %1037 = vmatpush.bf16.msra.mxu0 %v889
        %1038 = vmatmul.bf16.gmra.mxu0 %v631
        %v1039 = vpop.f32.mrf.mxu0
        %v1040 = vadd.f32 0.0, %v1039
        %v1041 = vpop.f32.mrf.mxu0
        %v1042 = vadd.f32 0.0, %v1041
        %1043 = vdwg.mxu0
        %1044 = vmatpush.bf16.msra.mxu0 %v946
        %1045 = vmatpush.bf16.msra.mxu0 %v938
        %1046 = vmatpush.bf16.msra.mxu0 %v930
        %1047 = vmatpush.bf16.msra.mxu0 %v922
        %1048 = vmatpush.bf16.msra.mxu0 %v914
        %1049 = vmatpush.bf16.msra.mxu0 %v906
        %1050 = vmatpush.bf16.msra.mxu0 %v898
        %1051 = vmatpush.bf16.msra.mxu0 %v890
        %1052 = vmatmul.bf16.gmra.mxu0 %v631
        %v1053 = vpop.f32.mrf.mxu0
        %v1054 = vadd.f32 0.0, %v1053
        %v1055 = vpop.f32.mrf.mxu0
        %v1056 = vadd.f32 0.0, %v1055
        %1057 = vdwg.mxu0
        %1058 = vmatpush.bf16.msra.mxu0 %v947
        %1059 = vmatpush.bf16.msra.mxu0 %v939
        %1060 = vmatpush.bf16.msra.mxu0 %v931
        %1061 = vmatpush.bf16.msra.mxu0 %v923
        %1062 = vmatpush.bf16.msra.mxu0 %v915
        %1063 = vmatpush.bf16.msra.mxu0 %v907
        %1064 = vmatpush.bf16.msra.mxu0 %v899
        %1065 = vmatpush.bf16.msra.mxu0 %v891
        %1066 = vmatmul.bf16.gmra.mxu0 %v631
        %v1067 = vpop.f32.mrf.mxu0
        %v1068 = vadd.f32 0.0, %v1067
        %v1069 = vpop.f32.mrf.mxu0
        %v1070 = vadd.f32 0.0, %v1069
        %1071 = vdwg.mxu0
        %1072 = vmatpush.bf16.msra.mxu0 %v948
        %1073 = vmatpush.bf16.msra.mxu0 %v940
        %1074 = vmatpush.bf16.msra.mxu0 %v932
        %1075 = vmatpush.bf16.msra.mxu0 %v924
        %1076 = vmatpush.bf16.msra.mxu0 %v916
        %1077 = vmatpush.bf16.msra.mxu0 %v908
        %1078 = vmatpush.bf16.msra.mxu0 %v900
        %1079 = vmatpush.bf16.msra.mxu0 %v892
        %1080 = vmatmul.bf16.gmra.mxu0 %v631
        %v1081 = vpop.f32.mrf.mxu0
        %v1082 = vadd.f32 0.0, %v1081
        %v1083 = vpop.f32.mrf.mxu0
        %v1084 = vadd.f32 0.0, %v1083
        %1085 = vdwg.mxu0
        %1086 = vmatpush.bf16.msra.mxu0 %v949
        %1087 = vmatpush.bf16.msra.mxu0 %v941
        %1088 = vmatpush.bf16.msra.mxu0 %v933
        %1089 = vmatpush.bf16.msra.mxu0 %v925
        %1090 = vmatpush.bf16.msra.mxu0 %v917
        %1091 = vmatpush.bf16.msra.mxu0 %v909
        %1092 = vmatpush.bf16.msra.mxu0 %v901
        %1093 = vmatpush.bf16.msra.mxu0 %v893
        %1094 = vmatmul.bf16.gmra.mxu0 %v631
        %v1095 = vpop.f32.mrf.mxu0
        %v1096 = vadd.f32 0.0, %v1095
        %v1097 = vpop.f32.mrf.mxu0
        %v1098 = vadd.f32 0.0, %v1097
        %1099 = vdwg.mxu0
        %1100 = vmatpush.bf16.msra.mxu0 %v950
        %1101 = vmatpush.bf16.msra.mxu0 %v942
        %1102 = vmatpush.bf16.msra.mxu0 %v934
        %1103 = vmatpush.bf16.msra.mxu0 %v926
        %1104 = vmatpush.bf16.msra.mxu0 %v918
        %1105 = vmatpush.bf16.msra.mxu0 %v910
        %1106 = vmatpush.bf16.msra.mxu0 %v902
        %1107 = vmatpush.bf16.msra.mxu0 %v894
        %1108 = vmatmul.bf16.gmra.mxu0 %v631
        %v1109 = vpop.f32.mrf.mxu0
        %v1110 = vadd.f32 0.0, %v1109
        %v1111 = vpop.f32.mrf.mxu0
        %v1112 = vadd.f32 0.0, %v1111
        %1113 = vdwg.mxu0
        %1114 = vmatpush.bf16.msra.mxu0 %v951
        %1115 = vmatpush.bf16.msra.mxu0 %v943
        %1116 = vmatpush.bf16.msra.mxu0 %v935
        %1117 = vmatpush.bf16.msra.mxu0 %v927
        %1118 = vmatpush.bf16.msra.mxu0 %v919
        %1119 = vmatpush.bf16.msra.mxu0 %v911
        %1120 = vmatpush.bf16.msra.mxu0 %v903
        %1121 = vmatpush.bf16.msra.mxu0 %v895
        %1122 = vmatmul.bf16.gmra.mxu0 %v631
        %v1123 = vpop.f32.mrf.mxu0
        %v1124 = vadd.f32 0.0, %v1123
        %v1125 = vpop.f32.mrf.mxu0
        %v1126 = vadd.f32 0.0, %v1125
        %1127 = vdwg.mxu0
        %v1128 = vld [vmem:[#allocation12] sm:$0xff]
        %v1130 = vperm.slane %v1128, 0
        %v1131 = vperm.slane %v1128, 1
        %v1132 = vperm.slane %v1128, 2
        %v1133 = vperm.slane %v1128, 3
        %v1134 = vperm.slane %v1128, 4
        %v1135 = vperm.slane %v1128, 5
        %v1136 = vperm.slane %v1128, 6
        %v1137 = vperm.slane %v1128, 7
        %v1146 = vmul.f32 %v1026, %v1130
        %v1147 = vmul.f32 %v1040, %v1131
        %v1148 = vmul.f32 %v1054, %v1132
        %v1149 = vmul.f32 %v1068, %v1133
        %v1150 = vmul.f32 %v1082, %v1134
        %v1151 = vmul.f32 %v1096, %v1135
        %v1152 = vmul.f32 %v1110, %v1136
        %v1153 = vmul.f32 %v1124, %v1137
        %v1154 = vmul.f32 %v1028, %v1130
        %v1155 = vmul.f32 %v1042, %v1131
        %v1156 = vmul.f32 %v1056, %v1132
        %v1157 = vmul.f32 %v1070, %v1133
        %v1158 = vmul.f32 %v1084, %v1134
        %v1159 = vmul.f32 %v1098, %v1135
        %v1160 = vmul.f32 %v1112, %v1136
        %v1161 = vmul.f32 %v1126, %v1137
        %v1162 = vld [vmem:[#allocation13] sm:$0xff]
        %v1164 = vperm.slane %v1162, 0
        %v1165 = vperm.slane %v1162, 1
        %v1166 = vperm.slane %v1162, 2
        %v1167 = vperm.slane %v1162, 3
        %v1168 = vperm.slane %v1162, 4
        %v1169 = vperm.slane %v1162, 5
        %v1170 = vperm.slane %v1162, 6
        %v1171 = vperm.slane %v1162, 7
        %v1180 = vadd.f32 %v1146, %v1164
        %v1181 = vadd.f32 %v1147, %v1165
        %v1182 = vadd.f32 %v1148, %v1166
        %v1183 = vadd.f32 %v1149, %v1167
        %v1184 = vadd.f32 %v1150, %v1168
        %v1185 = vadd.f32 %v1151, %v1169
        %v1186 = vadd.f32 %v1152, %v1170
        %v1187 = vadd.f32 %v1153, %v1171
        %v1188 = vadd.f32 %v1154, %v1164
        %v1189 = vadd.f32 %v1155, %v1165
        %v1190 = vadd.f32 %v1156, %v1166
        %v1191 = vadd.f32 %v1157, %v1167
        %v1192 = vadd.f32 %v1158, %v1168
        %v1193 = vadd.f32 %v1159, %v1169
        %v1194 = vadd.f32 %v1160, %v1170
        %v1195 = vadd.f32 %v1161, %v1171
        %v1196 = vmax.f32 %v1180, 0.0
        %v1197 = vmax.f32 %v1181, 0.0
        %v1198 = vmax.f32 %v1182, 0.0
        %v1199 = vmax.f32 %v1183, 0.0
        %v1200 = vmax.f32 %v1184, 0.0
        %v1201 = vmax.f32 %v1185, 0.0
        %v1202 = vmax.f32 %v1186, 0.0
        %v1203 = vmax.f32 %v1187, 0.0
        %v1204 = vmax.f32 %v1188, 0.0
        %v1205 = vmax.f32 %v1189, 0.0
        %v1206 = vmax.f32 %v1190, 0.0
        %v1207 = vmax.f32 %v1191, 0.0
        %v1208 = vmax.f32 %v1192, 0.0
        %v1209 = vmax.f32 %v1193, 0.0
        %v1210 = vmax.f32 %v1194, 0.0
        %v1211 = vmax.f32 %v1195, 0.0
        %v1212 = vmax.f32 %v1196, %v1204
        %v1213 = vrot.slane %v1212, 4
        %v1214 = vmax.f32 %v1212, %v1213
        %v1215 = vrot.slane %v1214, 2
        %v1216 = vmax.f32 %v1214, %v1215
        %v1217 = vrot.slane %v1216, 1
        %v1218 = vmax.f32 %v1216, %v1217
        %v1219 = vmax.f32 %v1197, %v1205
        %v1220 = vrot.slane %v1219, 4
        %v1221 = vmax.f32 %v1219, %v1220
        %v1222 = vrot.slane %v1221, 2
        %v1223 = vmax.f32 %v1221, %v1222
        %v1224 = vrot.slane %v1223, 1
        %v1225 = vmax.f32 %v1223, %v1224
        %v1226 = vmax.f32 %v1198, %v1206
        %v1227 = vrot.slane %v1226, 4
        %v1228 = vmax.f32 %v1226, %v1227
        %v1229 = vrot.slane %v1228, 2
        %v1230 = vmax.f32 %v1228, %v1229
        %v1231 = vrot.slane %v1230, 1
        %v1232 = vmax.f32 %v1230, %v1231
        %v1233 = vmax.f32 %v1199, %v1207
        %v1234 = vrot.slane %v1233, 4
        %v1235 = vmax.f32 %v1233, %v1234
        %v1236 = vrot.slane %v1235, 2
        %v1237 = vmax.f32 %v1235, %v1236
        %v1238 = vrot.slane %v1237, 1
        %v1239 = vmax.f32 %v1237, %v1238
        %v1240 = vmax.f32 %v1200, %v1208
        %v1241 = vrot.slane %v1240, 4
        %v1242 = vmax.f32 %v1240, %v1241
        %v1243 = vrot.slane %v1242, 2
        %v1244 = vmax.f32 %v1242, %v1243
        %v1245 = vrot.slane %v1244, 1
        %v1246 = vmax.f32 %v1244, %v1245
        %v1247 = vmax.f32 %v1201, %v1209
        %v1248 = vrot.slane %v1247, 4
        %v1249 = vmax.f32 %v1247, %v1248
        %v1250 = vrot.slane %v1249, 2
        %v1251 = vmax.f32 %v1249, %v1250
        %v1252 = vrot.slane %v1251, 1
        %v1253 = vmax.f32 %v1251, %v1252
        %v1254 = vmax.f32 %v1202, %v1210
        %v1255 = vrot.slane %v1254, 4
        %v1256 = vmax.f32 %v1254, %v1255
        %v1257 = vrot.slane %v1256, 2
        %v1258 = vmax.f32 %v1256, %v1257
        %v1259 = vrot.slane %v1258, 1
        %v1260 = vmax.f32 %v1258, %v1259
        %v1261 = vmax.f32 %v1203, %v1211
        %v1262 = vrot.slane %v1261, 4
        %v1263 = vmax.f32 %v1261, %v1262
        %v1264 = vrot.slane %v1263, 2
        %v1265 = vmax.f32 %v1263, %v1264
        %v1266 = vrot.slane %v1265, 1
        %v1267 = vmax.f32 %v1265, %v1266
        %p1268 = scmp.eq.s32.totalorder %s31, 0
        // Predicated region
        $region93: #{pointnet_encoder.3} parent=59 // pred_check
          %p1269 = pneg %p1268
        $region94: #{pointnet_encoder.3} parent=59 // pred_check_branch
          %1271 = sbr.rel (%p1269) target = $region96
        $region95: #{pointnet_encoder.3} parent=59 // pred_region
          %1272 = vst [vmem:[%s506] sm:$0xff] -inf
        $region96: #{pointnet_encoder.3} parent=59 // pred_fallthru
          _
        %v1273 = vld [vmem:[%s506] sm:$0xff]
        %v1282 = vrot.slane %v1225, 7
        %v1283 = vrot.slane %v1232, 6
        %v1284 = vrot.slane %v1239, 5
        %v1285 = vrot.slane %v1246, 4
        %v1286 = vrot.slane %v1253, 3
        %v1287 = vrot.slane %v1260, 2
        %v1288 = vrot.slane %v1267, 1
        %vm1289 = vcmask 1040384
        %v1290 = vsel %vm1289, %v1218, %v1282
        %vm1291 = vcmask 1042434
        %v1292 = vsel %vm1291, %v1283, %v1284
        %vm1293 = vcmask 1041408
        %v1294 = vsel %vm1293, %v1290, %v1292
        %vm1295 = vcmask 1044484
        %v1296 = vsel %vm1295, %v1285, %v1286
        %vm1297 = vcmask 1046534
        %v1298 = vsel %vm1297, %v1287, %v1288
        %vm1299 = vcmask 1045508
        %v1300 = vsel %vm1299, %v1296, %v1298
        %vm1301 = vcmask 1043456
        %v1302 = vsel %vm1301, %v1294, %v1300
        %v1304 = vmax.f32 %v1273, %v1302
        %1305 = vst [vmem:[%s506] sm:$0xff] %v1304
        %p1306 = scmp.lt.s32.totalorder %s30, 1
        %s1307 = scalar_select %p1306, %s30, 1
        %s1308 = smul.addr %s1307, 8
        %s1309 = scalar_lea.vmem %s10, %s1308
        // Predicated region
        $region97: #{pointnet_encoder.3} parent=59 // pred_check
          %p1310 = pneg %p273
        $region98: #{pointnet_encoder.3} parent=59 // pred_check_branch
          %1312 = sbr.rel (%p1310) target = $region100
        $region99: #{pointnet_encoder.3} parent=59 // pred_region
          _
        $region100: #{pointnet_encoder.3} parent=59 // pred_fallthru
          _
      $region60: #{pointnet_encoder.3} parent=5 // pred_fallthru
        _
      %p1313 = scmp.le.s32.totalorder 2, %s21
      // Predicated region
      $region101: #{pointnet_encoder.3} parent=5 // pred_check
        %p1314 = pneg %p1313
      $region102: #{pointnet_encoder.3} parent=5 // pred_check_branch
        %1316 = sbr.rel (%p1314) target = $region104
      $region103: #{pointnet_encoder.3} parent=5 // pred_region
        %s1317 = ssub.s32 %s21, 2
        // Predicated region
        $region105: #{pointnet_encoder.3} parent=103 // pred_check
          %p1318 = pneg %p279
        $region106: #{pointnet_encoder.3} parent=103 // pred_check_branch
          %1320 = sbr.rel (%p1318) target = $region108
        $region107: #{pointnet_encoder.3} parent=103 // pred_region
          %p1321 = scmp.lt.s32.totalorder %s32, 1
          %s1322 = scalar_select %p1321, %s32, 1
          %s1323 = smul.addr %s1322, 8
          %s1324 = scalar_lea.vmem %s10, %s1323
        $region108: #{pointnet_encoder.3} parent=103 // pred_fallthru
          _
      $region104: #{pointnet_encoder.3} parent=5 // pred_fallthru
        _
    $region6: #{pointnet_encoder.3} parent=1 // loop_footer
      %s25 = sadd.s32 1, %s21
    $region7: #{pointnet_encoder.3} parent=1 // loop_footer_branch
      %20 = sbr.rel target = $region3
    $region8: #{pointnet_encoder.3} parent=1 // loop_exit
      _
    %1325 = vsyncpa [#allocation3], 1
    %s1326 = scalar_lea.sflag [#allocation3], 1
    %1327 = vsyncpa %s1326, 1
    %1328 = vsyncpa [#allocation5], 1
    %1329 = vsyncpa [#allocation8], 1
    %1330 = vsyncpa [#allocation11], 1
    %1331 = vsyncpa [#allocation14], 1

// kernel: pointnet_encoder.5
$region0: #{pointnet_encoder.5}
  #allocation0 [shape = 'u32[]', space=smem, size = 0x4, offset = 0x4, fixed_abs, tag = 'smem constant byte address 0x4 - core index']
  #allocation1 [shape = 'u32[72,128]{1,0:T(1,128)}', space=vmem, size = 0x9000, scoped, tag = 'internal scratch']
  %s0 = inlined_call_operand.vmem [shape: f32[2,16,3], index: 0, kind: input, shape index: {}]
  %s1 = inlined_call_operand.vmem [shape: f32[2,3,64], index: 1, kind: input, shape index: {}]
  %s2 = inlined_call_operand.hbm [shape: f32[1,64], index: 2, kind: input, shape index: {}]
  %s3 = inlined_call_operand.hbm [shape: f32[1,64], index: 3, kind: input, shape index: {}]
  %s4 = inlined_call_operand.hbm [shape: bf16[64,128], index: 4, kind: input, shape index: {}]
  %s5 = inlined_call_operand.hbm [shape: f32[1,128], index: 5, kind: input, shape index: {}]
  %s6 = inlined_call_operand.hbm [shape: f32[1,128], index: 6, kind: input, shape index: {}]
  %s7 = inlined_call_operand.hbm [shape: bf16[128,1024], index: 7, kind: input, shape index: {}]
  %s8 = inlined_call_operand.hbm [shape: f32[1,1024], index: 8, kind: input, shape index: {}]
  %s9 = inlined_call_operand.hbm [shape: f32[1,1024], index: 9, kind: input, shape index: {}]
  %s10 = inlined_call_operand.vmem [shape: f32[2,1,1024], index: 10, kind: output, shape index: {}]
  %s11 = sld [smem:[#allocation0]]
  $region109: #{pointnet_encoder.5} parent=0
    _
  %s13 = ssub.s32 1, %s11
  %s14 = scalar_select 0, %s13, %s11
  $region1: #{pointnet_encoder.5} parent=0
    #allocation2 [shape = 'u8[512]{0}', space=vmem, size = 0x400, scoped, tag = 'input window, operand 2, single buffered']
    #allocation3 [shape = 's32[2]{0}', space=sflag, size = 0x8, scoped, tag = 'scoped memory for pointnet_encoder.5']
    #allocation4 [shape = 'u8[512]{0}', space=vmem, size = 0x400, scoped, tag = 'input window, operand 3, single buffered']
    #allocation5 [shape = 's32[1]{0}', space=sflag, size = 0x4, scoped, tag = 'scoped memory for pointnet_encoder.5']
    #allocation6 [shape = 'u8[16384]{0}', space=vmem, size = 0x4000, scoped, tag = 'input window, operand 4, single buffered']
    #allocation7 [shape = 'u8[512]{0}', space=vmem, size = 0x400, scoped, tag = 'input window, operand 5, single buffered']
    #allocation8 [shape = 's32[1]{0}', space=sflag, size = 0x4, scoped, tag = 'scoped memory for pointnet_encoder.5']
    #allocation9 [shape = 'u8[512]{0}', space=vmem, size = 0x400, scoped, tag = 'input window, operand 6, single buffered']
    #allocation10 [shape = 'u8[262144]{0}', space=vmem, size = 0x40000, scoped, tag = 'input window, operand 7, single buffered']
    #allocation11 [shape = 's32[1]{0}', space=sflag, size = 0x4, scoped, tag = 'scoped memory for pointnet_encoder.5']
    #allocation12 [shape = 'u8[4096]{0}', space=vmem, size = 0x1000, scoped, tag = 'input window, operand 8, single buffered']
    #allocation13 [shape = 'u8[4096]{0}', space=vmem, size = 0x1000, scoped, tag = 'input window, operand 9, single buffered']
    #allocation14 [shape = 's32[1]{0}', space=sflag, size = 0x4, scoped, tag = 'scoped memory for pointnet_encoder.5']
    %15 = vsyncpa [#allocation3], 0
    %16 = vsyncpa [#allocation5], 0
    %17 = vsyncpa [#allocation8], 0
    %18 = vsyncpa [#allocation11], 0
    %19 = vsyncpa [#allocation14], 0
    loop: start=0, step=1, limit=4
    $region2: #{pointnet_encoder.5} parent=1 // loop_pre_header
      _
    $region3: #{pointnet_encoder.5} parent=1 // loop_header
      %s21 = sphi 0, %s25
      %p22 = scmp.ge.s32.totalorder %s21, 4
      %s28 = sphi 0, %s40
      %s29 = sphi 0, %s36
      %s30 = sphi 0, %s28
      %s31 = sphi 0, %s29
      %s32 = sphi 0, %s30
      %s33 = sphi 0, %s31
      %s45 = sphi 0, %s47
      %s48 = sphi 0, %s45
      %s49 = sphi 0, %s48
      %s65 = sphi 0, %s49
      %s71 = sphi 0, %s73
      %s74 = sphi 0, %s71
      %s75 = sphi 0, %s74
      %s91 = sphi 0, %s75
      %s95 = sphi 0, %s95
      %s97 = sphi 0, %s95
      %s98 = sphi 0, %s97
      %s112 = sphi 0, %s98
      %s116 = sphi 0, %s116
      %s118 = sphi 0, %s116
      %s119 = sphi 0, %s118
      %s133 = sphi 0, %s119
      %s137 = sphi 0, %s137
      %s139 = sphi 0, %s137
      %s140 = sphi 0, %s139
      %s154 = sphi 0, %s140
      %s158 = sphi 0, %s158
      %s160 = sphi 0, %s158
      %s161 = sphi 0, %s160
      %s175 = sphi 0, %s161
      %s179 = sphi 0, %s179
      %s181 = sphi 0, %s179
      %s182 = sphi 0, %s181
      %s196 = sphi 0, %s182
      %s200 = sphi 0, %s200
      %s202 = sphi 0, %s200
      %s203 = sphi 0, %s202
      %s217 = sphi 0, %s203
      %s221 = sphi 0, %s221
      %s223 = sphi 0, %s221
      %s224 = sphi 0, %s223
      %s238 = sphi 0, %s224
      %s242 = sphi 0, %s242
      %s244 = sphi 0, %s242
      %s245 = sphi 0, %s244
      %s259 = sphi 0, %s245
      %s265 = sphi 0, %s267
      %s268 = sphi 0, %s265
      %s269 = sphi 0, %s268
      %s285 = sphi 0, %s269
    $region4: #{pointnet_encoder.5} parent=1 // loop_header_branch
      %24 = sbr.rel (%p22) target = $region8
    $region5: #{pointnet_encoder.5} parent=1 // loop_body
      %s26 = ssub.s32 %s21, 1
      %s27 = ssub.s32 %s21, 2
      %s34 = sadd.s32 1, %s29
      %p35 = scmp.ge.s32.totalorder %s34, 1
      %s36 = scalar_select %p35, 0, %s34
      %s37 = sadd.s32 1, %s28
      %s38 = scalar_select %p35, %s37, %s28
      %p39 = scmp.ge.s32.totalorder %s38, 2
      %s40 = scalar_select %p39, 0, %s38
      %s41 = ssub.s32 %s28, %s40
      %s42 = ssub.s32 %s29, %s36
      %s43 = sor.u32 %s41, %s42
      %p44 = scmp.eq.s32.totalorder %s43, 0
      %s46 = sadd.s32 %s45, 1
      %s47 = scalar_select %p44, %s45, %s46
      %p50 = pneg %p44
      %p51 = scmp.eq.s32.totalorder %s21, 1
      %p52 = por %p50, %p51
      %p53 = scmp.ne.s32.totalorder %s45, %s48
      %p54 = scmp.eq.s32.totalorder %s21, 0
      %p55 = por %p53, %p54
      %p56 = scmp.ne.s32.totalorder %s45, %s48
      %p57 = scmp.eq.s32.totalorder %s26, 1
      %p58 = por %p56, %p57
      %p59 = scmp.ne.s32.totalorder %s48, %s49
      %p60 = scmp.eq.s32.totalorder %s26, 0
      %p61 = por %p59, %p60
      %p62 = scmp.ne.s32.totalorder %s48, %s49
      %p63 = scmp.eq.s32.totalorder %s27, 1
      %p64 = por %p62, %p63
      %p66 = scmp.ne.s32.totalorder %s49, %s65
      %p67 = scmp.eq.s32.totalorder %s27, 0
      %p68 = por %p66, %p67
      %s69 = ssub.s32 %s28, %s40
      %p70 = scmp.eq.s32.totalorder %s69, 0
      %s72 = sadd.s32 %s71, 1
      %s73 = scalar_select %p70, %s71, %s72
      %p76 = pneg %p70
      %p77 = scmp.eq.s32.totalorder %s21, 1
      %p78 = por %p76, %p77
      %p79 = scmp.ne.s32.totalorder %s71, %s74
      %p80 = scmp.eq.s32.totalorder %s21, 0
      %p81 = por %p79, %p80
      %p82 = scmp.ne.s32.totalorder %s71, %s74
      %p83 = scmp.eq.s32.totalorder %s26, 1
      %p84 = por %p82, %p83
      %p85 = scmp.ne.s32.totalorder %s74, %s75
      %p86 = scmp.eq.s32.totalorder %s26, 0
      %p87 = por %p85, %p86
      %p88 = scmp.ne.s32.totalorder %s74, %s75
      %p89 = scmp.eq.s32.totalorder %s27, 1
      %p90 = por %p88, %p89
      %p92 = scmp.ne.s32.totalorder %s75, %s91
      %p93 = scmp.eq.s32.totalorder %s27, 0
      %p94 = por %p92, %p93
      %s96 = sadd.s32 %s95, 1
      %p99 = scmp.eq.s32.totalorder %s21, 1
      %p100 = scmp.ne.s32.totalorder %s95, %s97
      %p101 = scmp.eq.s32.totalorder %s21, 0
      %p102 = por %p100, %p101
      %p103 = scmp.ne.s32.totalorder %s95, %s97
      %p104 = scmp.eq.s32.totalorder %s26, 1
      %p105 = por %p103, %p104
      %p106 = scmp.ne.s32.totalorder %s97, %s98
      %p107 = scmp.eq.s32.totalorder %s26, 0
      %p108 = por %p106, %p107
      %p109 = scmp.ne.s32.totalorder %s97, %s98
      %p110 = scmp.eq.s32.totalorder %s27, 1
      %p111 = por %p109, %p110
      %p113 = scmp.ne.s32.totalorder %s98, %s112
      %p114 = scmp.eq.s32.totalorder %s27, 0
      %p115 = por %p113, %p114
      %s117 = sadd.s32 %s116, 1
      %p120 = scmp.eq.s32.totalorder %s21, 1
      %p121 = scmp.ne.s32.totalorder %s116, %s118
      %p122 = scmp.eq.s32.totalorder %s21, 0
      %p123 = por %p121, %p122
      %p124 = scmp.ne.s32.totalorder %s116, %s118
      %p125 = scmp.eq.s32.totalorder %s26, 1
      %p126 = por %p124, %p125
      %p127 = scmp.ne.s32.totalorder %s118, %s119
      %p128 = scmp.eq.s32.totalorder %s26, 0
      %p129 = por %p127, %p128
      %p130 = scmp.ne.s32.totalorder %s118, %s119
      %p131 = scmp.eq.s32.totalorder %s27, 1
      %p132 = por %p130, %p131
      %p134 = scmp.ne.s32.totalorder %s119, %s133
      %p135 = scmp.eq.s32.totalorder %s27, 0
      %p136 = por %p134, %p135
      %s138 = sadd.s32 %s137, 1
      %p141 = scmp.eq.s32.totalorder %s21, 1
      %p142 = scmp.ne.s32.totalorder %s137, %s139
      %p143 = scmp.eq.s32.totalorder %s21, 0
      %p144 = por %p142, %p143
      %p145 = scmp.ne.s32.totalorder %s137, %s139
      %p146 = scmp.eq.s32.totalorder %s26, 1
      %p147 = por %p145, %p146
      %p148 = scmp.ne.s32.totalorder %s139, %s140
      %p149 = scmp.eq.s32.totalorder %s26, 0
      %p150 = por %p148, %p149
      %p151 = scmp.ne.s32.totalorder %s139, %s140
      %p152 = scmp.eq.s32.totalorder %s27, 1
      %p153 = por %p151, %p152
      %p155 = scmp.ne.s32.totalorder %s140, %s154
      %p156 = scmp.eq.s32.totalorder %s27, 0
      %p157 = por %p155, %p156
      %s159 = sadd.s32 %s158, 1
      %p162 = scmp.eq.s32.totalorder %s21, 1
      %p163 = scmp.ne.s32.totalorder %s158, %s160
      %p164 = scmp.eq.s32.totalorder %s21, 0
      %p165 = por %p163, %p164
      %p166 = scmp.ne.s32.totalorder %s158, %s160
      %p167 = scmp.eq.s32.totalorder %s26, 1
      %p168 = por %p166, %p167
      %p169 = scmp.ne.s32.totalorder %s160, %s161
      %p170 = scmp.eq.s32.totalorder %s26, 0
      %p171 = por %p169, %p170
      %p172 = scmp.ne.s32.totalorder %s160, %s161
      %p173 = scmp.eq.s32.totalorder %s27, 1
      %p174 = por %p172, %p173
      %p176 = scmp.ne.s32.totalorder %s161, %s175
      %p177 = scmp.eq.s32.totalorder %s27, 0
      %p178 = por %p176, %p177
      %s180 = sadd.s32 %s179, 1
      %p183 = scmp.eq.s32.totalorder %s21, 1
      %p184 = scmp.ne.s32.totalorder %s179, %s181
      %p185 = scmp.eq.s32.totalorder %s21, 0
      %p186 = por %p184, %p185
      %p187 = scmp.ne.s32.totalorder %s179, %s181
      %p188 = scmp.eq.s32.totalorder %s26, 1
      %p189 = por %p187, %p188
      %p190 = scmp.ne.s32.totalorder %s181, %s182
      %p191 = scmp.eq.s32.totalorder %s26, 0
      %p192 = por %p190, %p191
      %p193 = scmp.ne.s32.totalorder %s181, %s182
      %p194 = scmp.eq.s32.totalorder %s27, 1
      %p195 = por %p193, %p194
      %p197 = scmp.ne.s32.totalorder %s182, %s196
      %p198 = scmp.eq.s32.totalorder %s27, 0
      %p199 = por %p197, %p198
      %s201 = sadd.s32 %s200, 1
      %p204 = scmp.eq.s32.totalorder %s21, 1
      %p205 = scmp.ne.s32.totalorder %s200, %s202
      %p206 = scmp.eq.s32.totalorder %s21, 0
      %p207 = por %p205, %p206
      %p208 = scmp.ne.s32.totalorder %s200, %s202
      %p209 = scmp.eq.s32.totalorder %s26, 1
      %p210 = por %p208, %p209
      %p211 = scmp.ne.s32.totalorder %s202, %s203
      %p212 = scmp.eq.s32.totalorder %s26, 0
      %p213 = por %p211, %p212
      %p214 = scmp.ne.s32.totalorder %s202, %s203
      %p215 = scmp.eq.s32.totalorder %s27, 1
      %p216 = por %p214, %p215
      %p218 = scmp.ne.s32.totalorder %s203, %s217
      %p219 = scmp.eq.s32.totalorder %s27, 0
      %p220 = por %p218, %p219
      %s222 = sadd.s32 %s221, 1
      %p225 = scmp.eq.s32.totalorder %s21, 1
      %p226 = scmp.ne.s32.totalorder %s221, %s223
      %p227 = scmp.eq.s32.totalorder %s21, 0
      %p228 = por %p226, %p227
      %p229 = scmp.ne.s32.totalorder %s221, %s223
      %p230 = scmp.eq.s32.totalorder %s26, 1
      %p231 = por %p229, %p230
      %p232 = scmp.ne.s32.totalorder %s223, %s224
      %p233 = scmp.eq.s32.totalorder %s26, 0
      %p234 = por %p232, %p233
      %p235 = scmp.ne.s32.totalorder %s223, %s224
      %p236 = scmp.eq.s32.totalorder %s27, 1
      %p237 = por %p235, %p236
      %p239 = scmp.ne.s32.totalorder %s224, %s238
      %p240 = scmp.eq.s32.totalorder %s27, 0
      %p241 = por %p239, %p240
      %s243 = sadd.s32 %s242, 1
      %p246 = scmp.eq.s32.totalorder %s21, 1
      %p247 = scmp.ne.s32.totalorder %s242, %s244
      %p248 = scmp.eq.s32.totalorder %s21, 0
      %p249 = por %p247, %p248
      %p250 = scmp.ne.s32.totalorder %s242, %s244
      %p251 = scmp.eq.s32.totalorder %s26, 1
      %p252 = por %p250, %p251
      %p253 = scmp.ne.s32.totalorder %s244, %s245
      %p254 = scmp.eq.s32.totalorder %s26, 0
      %p255 = por %p253, %p254
      %p256 = scmp.ne.s32.totalorder %s244, %s245
      %p257 = scmp.eq.s32.totalorder %s27, 1
      %p258 = por %p256, %p257
      %p260 = scmp.ne.s32.totalorder %s245, %s259
      %p261 = scmp.eq.s32.totalorder %s27, 0
      %p262 = por %p260, %p261
      %s263 = ssub.s32 %s28, %s40
      %p264 = scmp.eq.s32.totalorder %s263, 0
      %s266 = sadd.s32 %s265, 1
      %s267 = scalar_select %p264, %s265, %s266
      %p270 = pneg %p264
      %p271 = scmp.eq.s32.totalorder %s21, 1
      %p272 = por %p270, %p271
      %p273 = scmp.ne.s32.totalorder %s265, %s268
      %p274 = scmp.eq.s32.totalorder %s21, 0
      %p275 = por %p273, %p274
      %p276 = scmp.ne.s32.totalorder %s265, %s268
      %p277 = scmp.eq.s32.totalorder %s26, 1
      %p278 = por %p276, %p277
      %p279 = scmp.ne.s32.totalorder %s268, %s269
      %p280 = scmp.eq.s32.totalorder %s26, 0
      %p281 = por %p279, %p280
      %p282 = scmp.ne.s32.totalorder %s268, %s269
      %p283 = scmp.eq.s32.totalorder %s27, 1
      %p284 = por %p282, %p283
      %p286 = scmp.ne.s32.totalorder %s269, %s285
      %p287 = scmp.eq.s32.totalorder %s27, 0
      %p288 = por %p286, %p287
      %p289 = scmp.le.s32.totalorder 1, %s21
      %p290 = scmp.lt.s32.totalorder %s21, 3
      %p291 = pnand %p289, %p290
      %p292 = pneg %p291
      // Predicated region
      $region9: #{pointnet_encoder.5} parent=5 // pred_check
        _
      $region10: #{pointnet_encoder.5} parent=5 // pred_check_branch
        %294 = sbr.rel (%p291) target = $region12
      $region11: #{pointnet_encoder.5} parent=5 // pred_region
        %s295 = ssub.s32 %s21, 1
        // Predicated region
        $region13: #{pointnet_encoder.5} parent=11 // pred_check
          %p296 = pneg %p108
        $region14: #{pointnet_encoder.5} parent=11 // pred_check_branch
          %298 = sbr.rel (%p296) target = $region16
        $region15: #{pointnet_encoder.5} parent=11 // pred_region
          %300 = vsyncadd [#allocation3], 0
          %s302 = sshll.u32 %s2, 4
          %s303 = int_to_ptr.hbm [resolvable:$true] %s302
          %s304 = sshll.u32 [#allocation2], 4
          %s305 = int_to_ptr.vmem [resolvable:$true] %s304
          %307 = dma.hbm_to_vmem [thread:$0]  %s303, 16, %s305, [#allocation3]
        $region16: #{pointnet_encoder.5} parent=11 // pred_fallthru
          _
        // Predicated region
        $region17: #{pointnet_encoder.5} parent=11 // pred_check
          %p308 = pneg %p129
        $region18: #{pointnet_encoder.5} parent=11 // pred_check_branch
          %310 = sbr.rel (%p308) target = $region20
        $region19: #{pointnet_encoder.5} parent=11 // pred_region
          %312 = vsyncadd [#allocation5], 0
          %s314 = sshll.u32 %s3, 4
          %s315 = int_to_ptr.hbm [resolvable:$true] %s314
          %s316 = sshll.u32 [#allocation4], 4
          %s317 = int_to_ptr.vmem [resolvable:$true] %s316
          %319 = dma.hbm_to_vmem [thread:$0]  %s315, 16, %s317, [#allocation5]
        $region20: #{pointnet_encoder.5} parent=11 // pred_fallthru
          _
        // Predicated region
        $region21: #{pointnet_encoder.5} parent=11 // pred_check
          %p320 = pneg %p150
        $region22: #{pointnet_encoder.5} parent=11 // pred_check_branch
          %322 = sbr.rel (%p320) target = $region24
        $region23: #{pointnet_encoder.5} parent=11 // pred_region
          %324 = vsyncadd [#allocation5], 0
          %s325 = sshll.u32 %s4, 4
          %s326 = int_to_ptr.hbm [resolvable:$true] %s325
          %s327 = sshll.u32 [#allocation6], 4
          %s328 = int_to_ptr.vmem [resolvable:$true] %s327
          %333 = dma.hbm_to_vmem [thread:$0]  %s326, 512, %s328, [#allocation5], 64, 64, 4
        $region24: #{pointnet_encoder.5} parent=11 // pred_fallthru
          _
        // Predicated region
        $region25: #{pointnet_encoder.5} parent=11 // pred_check
          %p334 = pneg %p171
        $region26: #{pointnet_encoder.5} parent=11 // pred_check_branch
          %336 = sbr.rel (%p334) target = $region28
        $region27: #{pointnet_encoder.5} parent=11 // pred_region
          %338 = vsyncadd [#allocation8], 0
          %s340 = sshll.u32 %s5, 4
          %s341 = int_to_ptr.hbm [resolvable:$true] %s340
          %s342 = sshll.u32 [#allocation7], 4
          %s343 = int_to_ptr.vmem [resolvable:$true] %s342
          %345 = dma.hbm_to_vmem [thread:$0]  %s341, 16, %s343, [#allocation8]
        $region28: #{pointnet_encoder.5} parent=11 // pred_fallthru
          _
        // Predicated region
        $region29: #{pointnet_encoder.5} parent=11 // pred_check
          %p346 = pneg %p192
        $region30: #{pointnet_encoder.5} parent=11 // pred_check_branch
          %348 = sbr.rel (%p346) target = $region32
        $region31: #{pointnet_encoder.5} parent=11 // pred_region
          %350 = vsyncadd [#allocation8], 0
          %s352 = sshll.u32 %s6, 4
          %s353 = int_to_ptr.hbm [resolvable:$true] %s352
          %s354 = sshll.u32 [#allocation9], 4
          %s355 = int_to_ptr.vmem [resolvable:$true] %s354
          %357 = dma.hbm_to_vmem [thread:$0]  %s353, 16, %s355, [#allocation8]
        $region32: #{pointnet_encoder.5} parent=11 // pred_fallthru
          _
        // Predicated region
        $region33: #{pointnet_encoder.5} parent=11 // pred_check
          %p358 = pneg %p213
        $region34: #{pointnet_encoder.5} parent=11 // pred_check_branch
          %360 = sbr.rel (%p358) target = $region36
        $region35: #{pointnet_encoder.5} parent=11 // pred_region
          %362 = vsyncadd [#allocation11], 0
          %s363 = sshll.u32 %s7, 4
          %s364 = int_to_ptr.hbm [resolvable:$true] %s363
          %s365 = sshll.u32 [#allocation10], 4
          %s366 = int_to_ptr.vmem [resolvable:$true] %s365
          %371 = dma.hbm_to_vmem [thread:$0]  %s364, 8192, %s366, [#allocation11], 512, 512, 32
        $region36: #{pointnet_encoder.5} parent=11 // pred_fallthru
          _
        // Predicated region
        $region37: #{pointnet_encoder.5} parent=11 // pred_check
          %p372 = pneg %p234
        $region38: #{pointnet_encoder.5} parent=11 // pred_check_branch
          %374 = sbr.rel (%p372) target = $region40
        $region39: #{pointnet_encoder.5} parent=11 // pred_region
          %376 = vsyncadd [#allocation11], 0
          %s378 = sshll.u32 %s8, 4
          %s379 = int_to_ptr.hbm [resolvable:$true] %s378
          %s380 = sshll.u32 [#allocation12], 4
          %s381 = int_to_ptr.vmem [resolvable:$true] %s380
          %383 = dma.hbm_to_vmem [thread:$0]  %s379, 128, %s381, [#allocation11]
        $region40: #{pointnet_encoder.5} parent=11 // pred_fallthru
          _
        // Predicated region
        $region41: #{pointnet_encoder.5} parent=11 // pred_check
          %p384 = pneg %p255
        $region42: #{pointnet_encoder.5} parent=11 // pred_check_branch
          %386 = sbr.rel (%p384) target = $region44
        $region43: #{pointnet_encoder.5} parent=11 // pred_region
          %388 = vsyncadd [#allocation14], 0
          %s390 = sshll.u32 %s9, 4
          %s391 = int_to_ptr.hbm [resolvable:$true] %s390
          %s392 = sshll.u32 [#allocation13], 4
          %s393 = int_to_ptr.vmem [resolvable:$true] %s392
          %395 = dma.hbm_to_vmem [thread:$0]  %s391, 128, %s393, [#allocation14]
        $region44: #{pointnet_encoder.5} parent=11 // pred_fallthru
          _
      $region12: #{pointnet_encoder.5} parent=5 // pred_fallthru
        _
      %p396 = scmp.lt.s32.totalorder %s21, 2
      // Predicated region
      $region45: #{pointnet_encoder.5} parent=5 // pred_check
        %p397 = pneg %p396
      $region46: #{pointnet_encoder.5} parent=5 // pred_check_branch
        %399 = sbr.rel (%p397) target = $region48
      $region47: #{pointnet_encoder.5} parent=5 // pred_region
        // Predicated region
        $region49: #{pointnet_encoder.5} parent=47 // pred_check
          %p400 = pneg %p55
        $region50: #{pointnet_encoder.5} parent=47 // pred_check_branch
          %402 = sbr.rel (%p400) target = $region52
        $region51: #{pointnet_encoder.5} parent=47 // pred_region
          %s403 = smul.u32 2, %s29
          %p404 = scmp.lt.s32.totalorder %s28, 1
          %s405 = scalar_select %p404, %s28, 1
          %p406 = scmp.lt.s32.totalorder %s403, 1
          %s407 = scalar_select %p406, %s403, 1
          %s408 = smul.addr %s405, 2
          %s409 = sadd.s32 %s407, %s408
          %s410 = smul.addr %s409, 8
          %s411 = scalar_lea.vmem %s0, %s410
          %s412 = smul.u32 2, %s29
        $region52: #{pointnet_encoder.5} parent=47 // pred_fallthru
          _
        // Predicated region
        $region53: #{pointnet_encoder.5} parent=47 // pred_check
          %p413 = pneg %p81
        $region54: #{pointnet_encoder.5} parent=47 // pred_check_branch
          %415 = sbr.rel (%p413) target = $region56
        $region55: #{pointnet_encoder.5} parent=47 // pred_region
          %p416 = scmp.lt.s32.totalorder %s28, 1
          %s417 = scalar_select %p416, %s28, 1
          %s418 = smul.addr %s417, 4
          %s419 = scalar_lea.vmem %s1, %s418
        $region56: #{pointnet_encoder.5} parent=47 // pred_fallthru
          _
      $region48: #{pointnet_encoder.5} parent=5 // pred_fallthru
        _
      %p420 = scmp.le.s32.totalorder 1, %s21
      %p421 = scmp.lt.s32.totalorder %s21, 3
      %p422 = pnand %p420, %p421
      %p423 = pneg %p422
      // Predicated region
      $region57: #{pointnet_encoder.5} parent=5 // pred_check
        _
      $region58: #{pointnet_encoder.5} parent=5 // pred_check_branch
        %425 = sbr.rel (%p422) target = $region60
      $region59: #{pointnet_encoder.5} parent=5 // pred_region
        %s426 = ssub.s32 %s21, 1
        // Predicated region
        $region61: #{pointnet_encoder.5} parent=59 // pred_check
          %p427 = pneg %p108
        $region62: #{pointnet_encoder.5} parent=59 // pred_check_branch
          %429 = sbr.rel (%p427) target = $region64
        $region63: #{pointnet_encoder.5} parent=59 // pred_region
          %431 = dma.done [#allocation3], 16
        $region64: #{pointnet_encoder.5} parent=59 // pred_fallthru
          _
        // Predicated region
        $region65: #{pointnet_encoder.5} parent=59 // pred_check
          %p432 = pneg %p129
        $region66: #{pointnet_encoder.5} parent=59 // pred_check_branch
          %434 = sbr.rel (%p432) target = $region68
        $region67: #{pointnet_encoder.5} parent=59 // pred_region
          %436 = dma.done [#allocation5], 16
        $region68: #{pointnet_encoder.5} parent=59 // pred_fallthru
          _
        // Predicated region
        $region69: #{pointnet_encoder.5} parent=59 // pred_check
          %p437 = pneg %p150
        $region70: #{pointnet_encoder.5} parent=59 // pred_check_branch
          %439 = sbr.rel (%p437) target = $region72
        $region71: #{pointnet_encoder.5} parent=59 // pred_region
          %441 = dma.done [#allocation5], 512
        $region72: #{pointnet_encoder.5} parent=59 // pred_fallthru
          _
        // Predicated region
        $region73: #{pointnet_encoder.5} parent=59 // pred_check
          %p442 = pneg %p171
        $region74: #{pointnet_encoder.5} parent=59 // pred_check_branch
          %444 = sbr.rel (%p442) target = $region76
        $region75: #{pointnet_encoder.5} parent=59 // pred_region
          %446 = dma.done [#allocation8], 16
        $region76: #{pointnet_encoder.5} parent=59 // pred_fallthru
          _
        // Predicated region
        $region77: #{pointnet_encoder.5} parent=59 // pred_check
          %p447 = pneg %p192
        $region78: #{pointnet_encoder.5} parent=59 // pred_check_branch
          %449 = sbr.rel (%p447) target = $region80
        $region79: #{pointnet_encoder.5} parent=59 // pred_region
          %451 = dma.done [#allocation8], 16
        $region80: #{pointnet_encoder.5} parent=59 // pred_fallthru
          _
        // Predicated region
        $region81: #{pointnet_encoder.5} parent=59 // pred_check
          %p452 = pneg %p213
        $region82: #{pointnet_encoder.5} parent=59 // pred_check_branch
          %454 = sbr.rel (%p452) target = $region84
        $region83: #{pointnet_encoder.5} parent=59 // pred_region
          %456 = dma.done [#allocation11], 8192
        $region84: #{pointnet_encoder.5} parent=59 // pred_fallthru
          _
        // Predicated region
        $region85: #{pointnet_encoder.5} parent=59 // pred_check
          %p457 = pneg %p234
        $region86: #{pointnet_encoder.5} parent=59 // pred_check_branch
          %459 = sbr.rel (%p457) target = $region88
        $region87: #{pointnet_encoder.5} parent=59 // pred_region
          %461 = dma.done [#allocation11], 128
        $region88: #{pointnet_encoder.5} parent=59 // pred_fallthru
          _
        // Predicated region
        $region89: #{pointnet_encoder.5} parent=59 // pred_check
          %p462 = pneg %p255
        $region90: #{pointnet_encoder.5} parent=59 // pred_check_branch
          %464 = sbr.rel (%p462) target = $region92
        $region91: #{pointnet_encoder.5} parent=59 // pred_region
          %466 = dma.done [#allocation14], 128
        $region92: #{pointnet_encoder.5} parent=59 // pred_fallthru
          _
        %s467 = smul.u32 2, %s31
        %p468 = scmp.lt.s32.totalorder %s30, 1
        %s469 = scalar_select %p468, %s30, 1
        %p470 = scmp.lt.s32.totalorder %s467, 1
        %s471 = scalar_select %p470, %s467, 1
        %s472 = smul.addr %s469, 2
        %s473 = sadd.s32 %s471, %s472
        %s474 = smul.addr %s473, 8
        %s475 = scalar_lea.vmem %s0, %s474
        %p476 = pneg %p61
        %p477 = pneg %p58
        %p478 = scmp.lt.s32.totalorder %s30, 1
        %s479 = scalar_select %p478, %s30, 1
        %s480 = smul.addr %s479, 4
        %s481 = scalar_lea.vmem %s1, %s480
        %p482 = pneg %p87
        %p483 = pneg %p84
        %p484 = pneg %p108
        %p485 = pneg %p105
        %p486 = pneg %p129
        %p487 = pneg %p126
        %p488 = pneg %p150
        %p489 = pneg %p147
        %p490 = pneg %p171
        %p491 = pneg %p168
        %p492 = pneg %p192
        %p493 = pneg %p189
        %p494 = pneg %p213
        %p495 = pneg %p210
        %p496 = pneg %p234
        %p497 = pneg %p231
        %p498 = pneg %p255
        %p499 = pneg %p252
        %p500 = pneg %p281
        %p501 = pneg %p278
        %p502 = scmp.lt.s32.totalorder %s30, 1
        %s503 = scalar_select %p502, %s30, 1
        %s504 = smul.addr %s503, 8
        %s505 = scalar_lea.vmem %s10, %s504
        %s506 = smul.u32 2, %s31
        %p507 = scmp.lt.s32.totalorder %s30, 1
        %s508 = scalar_select %p507, %s30, 1
        %p509 = scmp.lt.s32.totalorder %s506, 1
        %s510 = scalar_select %p509, %s506, 1
        %s511 = smul.addr %s508, 2
        %s512 = sadd.s32 %s510, %s511
        %s513 = smul.addr %s512, 8
        %s514 = scalar_lea.vmem %s0, %s513
        %s515 = smul.u32 2, %s31
        %p516 = scmp.lt.s32.totalorder %s30, 1
        %s517 = scalar_select %p516, %s30, 1
        %s518 = smul.addr %s517, 4
        %s519 = scalar_lea.vmem %s1, %s518
        %p520 = scmp.lt.s32.totalorder %s30, 1
        %s521 = scalar_select %p520, %s30, 1
        %s522 = smul.addr %s521, 8
        %s523 = scalar_lea.vmem %s10, %s522
        %v525 = vld [vmem:[%s514] sm:$0xff]
        %v526 = vld [vmem:[%s514 + $0x8] sm:$0xff]
        %v527 = vld [vmem:[%s519] sm:$0x7]
        %529 = vset.pattern.permute.xlu0 0
        %530 = vperm.xlu0 %529, %v525
        %v531 = vpop.permute.xlu0 %530
        %534 = vset.pattern.permute.xlu0 0
        %535 = vperm.xlu0 %534, %v526
        %v536 = vpop.permute.xlu0 %535
        %v538 = vperm.slane %v527, 0
        %v539 = vmul.f32 %v531, %v538
        %v540 = vmul.f32 %v536, %v538
        %v541 = vadd.f32 %v539, 0.0
        %v542 = vadd.f32 %v540, 0.0
        %543 = vset.pattern.permute.xlu0 1
        %544 = vperm.xlu0 %543, %v525
        %v545 = vpop.permute.xlu0 %544
        %547 = vset.pattern.permute.xlu0 1
        %548 = vperm.xlu0 %547, %v526
        %v549 = vpop.permute.xlu0 %548
        %v551 = vperm.slane %v527, 1
        %v552 = vmul.f32 %v545, %v551
        %v553 = vmul.f32 %v549, %v551
        %v554 = vadd.f32 %v541, %v552
        %v555 = vadd.f32 %v542, %v553
        %556 = vset.pattern.permute.xlu0 2
        %557 = vperm.xlu0 %556, %v525
        %v558 = vpop.permute.xlu0 %557
        %560 = vset.pattern.permute.xlu0 2
        %561 = vperm.xlu0 %560, %v526
        %v562 = vpop.permute.xlu0 %561
        %v564 = vperm.slane %v527, 2
        %v565 = vmul.f32 %v558, %v564
        %v566 = vmul.f32 %v562, %v564
        %v567 = vadd.f32 %v554, %v565
        %v568 = vadd.f32 %v555, %v566
        %v569 = vld [vmem:[#allocation2] sm:$0x1]
        %v571 = vperm.slane %v569, 0
        %v573 = vmul.f32 %v567, %v571
        %v574 = vmul.f32 %v568, %v571
        %v575 = vld [vmem:[#allocation4] sm:$0x1]
        %v577 = vperm.slane %v575, 0
        %v579 = vadd.f32 %v573, %v577
        %v580 = vadd.f32 %v574, %v577
        %v581 = vmax.f32 %v579, 0.0
        %v582 = vmax.f32 %v580, 0.0
        %v583 = vpack.c.bf16 %v582, %v581
        %v584 = vld [vmem:[#allocation6] sm:$0xf]
        %v585 = vld [vmem:[#allocation6 + $0x4] sm:$0xf]
        %v586 = vld [vmem:[#allocation6 + $0x8] sm:$0xf]
        %v587 = vld [vmem:[#allocation6 + $0xc] sm:$0xf]
        %v588 = vld [vmem:[#allocation6 + $0x10] sm:$0xf]
        %v589 = vld [vmem:[#allocation6 + $0x14] sm:$0xf]
        %v590 = vld [vmem:[#allocation6 + $0x18] sm:$0xf]
        %v591 = vld [vmem:[#allocation6 + $0x1c] sm:$0xf]
        %v600 = vunpack.c.l.b16 %v584
        %v601 = vunpack.c.l.b16 %v585
        %v602 = vunpack.c.l.b16 %v586
        %v603 = vunpack.c.l.b16 %v587
        %v604 = vunpack.c.l.b16 %v588
        %v605 = vunpack.c.l.b16 %v589
        %v606 = vunpack.c.l.b16 %v590
        %v607 = vunpack.c.l.b16 %v591
        %v608 = vpack.c.b16 %v601, %v600
        %v609 = vpack.c.b16 %v603, %v602
        %v610 = vpack.c.b16 %v605, %v604
        %v611 = vpack.c.b16 %v607, %v606
        %vm616 = vcmask 523264
        %v618 = vsel %vm616, %v583, 0
        %620 = vmatpush.bf16.msra.mxu0 0
        %621 = vmatpush.bf16.msra.mxu0 0
        %622 = vmatpush.bf16.msra.mxu0 0
        %623 = vmatpush.bf16.msra.mxu0 0
        %624 = vmatpush.bf16.msra.mxu0 %v611
        %625 = vmatpush.bf16.msra.mxu0 %v610
        %626 = vmatpush.bf16.msra.mxu0 %v609
        %627 = vmatpush.bf16.msra.mxu0 %v608
        %628 = vmatmul.bf16.gmra.mxu0 %v618
        %v629 = vpop.f32.mrf.mxu0
        %v630 = vadd.f32 0.0, %v629
        %v631 = vpop.f32.mrf.mxu0
        %v632 = vadd.f32 0.0, %v631
        %633 = vdwg.mxu0
        %v634 = vld [vmem:[#allocation7] sm:$0x1]
        %v636 = vperm.slane %v634, 0
        %v638 = vmul.f32 %v630, %v636
        %v639 = vmul.f32 %v632, %v636
        %v640 = vld [vmem:[#allocation9] sm:$0x1]
        %v642 = vperm.slane %v640, 0
        %v644 = vadd.f32 %v638, %v642
        %v645 = vadd.f32 %v639, %v642
        %v646 = vmax.f32 %v644, 0.0
        %v647 = vmax.f32 %v645, 0.0
        %v648 = vpack.c.bf16 %v647, %v646
        %v649 = vld [vmem:[#allocation10] sm:$0xff]
        %v650 = vld [vmem:[#allocation10 + $0x8] sm:$0xff]
        %v651 = vld [vmem:[#allocation10 + $0x10] sm:$0xff]
        %v652 = vld [vmem:[#allocation10 + $0x18] sm:$0xff]
        %v653 = vld [vmem:[#allocation10 + $0x20] sm:$0xff]
        %v654 = vld [vmem:[#allocation10 + $0x28] sm:$0xff]
        %v655 = vld [vmem:[#allocation10 + $0x30] sm:$0xff]
        %v656 = vld [vmem:[#allocation10 + $0x38] sm:$0xff]
        %v657 = vld [vmem:[#allocation10 + $0x40] sm:$0xff]
        %v658 = vld [vmem:[#allocation10 + $0x48] sm:$0xff]
        %v659 = vld [vmem:[#allocation10 + $0x50] sm:$0xff]
        %v660 = vld [vmem:[#allocation10 + $0x58] sm:$0xff]
        %v661 = vld [vmem:[#allocation10 + $0x60] sm:$0xff]
        %v662 = vld [vmem:[#allocation10 + $0x68] sm:$0xff]
        %v663 = vld [vmem:[#allocation10 + $0x70] sm:$0xff]
        %v664 = vld [vmem:[#allocation10 + $0x78] sm:$0xff]
        %v665 = vld [vmem:[#allocation10 + $0x80] sm:$0xff]
        %v666 = vld [vmem:[#allocation10 + $0x88] sm:$0xff]
        %v667 = vld [vmem:[#allocation10 + $0x90] sm:$0xff]
        %v668 = vld [vmem:[#allocation10 + $0x98] sm:$0xff]
        %v669 = vld [vmem:[#allocation10 + $0xa0] sm:$0xff]
        %v670 = vld [vmem:[#allocation10 + $0xa8] sm:$0xff]
        %v671 = vld [vmem:[#allocation10 + $0xb0] sm:$0xff]
        %v672 = vld [vmem:[#allocation10 + $0xb8] sm:$0xff]
        %v673 = vld [vmem:[#allocation10 + $0xc0] sm:$0xff]
        %v674 = vld [vmem:[#allocation10 + $0xc8] sm:$0xff]
        %v675 = vld [vmem:[#allocation10 + $0xd0] sm:$0xff]
        %v676 = vld [vmem:[#allocation10 + $0xd8] sm:$0xff]
        %v677 = vld [vmem:[#allocation10 + $0xe0] sm:$0xff]
        %v678 = vld [vmem:[#allocation10 + $0xe8] sm:$0xff]
        %v679 = vld [vmem:[#allocation10 + $0xf0] sm:$0xff]
        %v680 = vld [vmem:[#allocation10 + $0xf8] sm:$0xff]
        %v681 = vld [vmem:[#allocation10 + $0x100] sm:$0xff]
        %v682 = vld [vmem:[#allocation10 + $0x108] sm:$0xff]
        %v683 = vld [vmem:[#allocation10 + $0x110] sm:$0xff]
        %v684 = vld [vmem:[#allocation10 + $0x118] sm:$0xff]
        %v685 = vld [vmem:[#allocation10 + $0x120] sm:$0xff]
        %v686 = vld [vmem:[#allocation10 + $0x128] sm:$0xff]
        %v687 = vld [vmem:[#allocation10 + $0x130] sm:$0xff]
        %v688 = vld [vmem:[#allocation10 + $0x138] sm:$0xff]
        %v689 = vld [vmem:[#allocation10 + $0x140] sm:$0xff]
        %v690 = vld [vmem:[#allocation10 + $0x148] sm:$0xff]
        %v691 = vld [vmem:[#allocation10 + $0x150] sm:$0xff]
        %v692 = vld [vmem:[#allocation10 + $0x158] sm:$0xff]
        %v693 = vld [vmem:[#allocation10 + $0x160] sm:$0xff]
        %v694 = vld [vmem:[#allocation10 + $0x168] sm:$0xff]
        %v695 = vld [vmem:[#allocation10 + $0x170] sm:$0xff]
        %v696 = vld [vmem:[#allocation10 + $0x178] sm:$0xff]
        %v697 = vld [vmem:[#allocation10 + $0x180] sm:$0xff]
        %v698 = vld [vmem:[#allocation10 + $0x188] sm:$0xff]
        %v699 = vld [vmem:[#allocation10 + $0x190] sm:$0xff]
        %v700 = vld [vmem:[#allocation10 + $0x198] sm:$0xff]
        %v701 = vld [vmem:[#allocation10 + $0x1a0] sm:$0xff]
        %v702 = vld [vmem:[#allocation10 + $0x1a8] sm:$0xff]
        %v703 = vld [vmem:[#allocation10 + $0x1b0] sm:$0xff]
        %v704 = vld [vmem:[#allocation10 + $0x1b8] sm:$0xff]
        %v705 = vld [vmem:[#allocation10 + $0x1c0] sm:$0xff]
        %v706 = vld [vmem:[#allocation10 + $0x1c8] sm:$0xff]
        %v707 = vld [vmem:[#allocation10 + $0x1d0] sm:$0xff]
        %v708 = vld [vmem:[#allocation10 + $0x1d8] sm:$0xff]
        %v709 = vld [vmem:[#allocation10 + $0x1e0] sm:$0xff]
        %v710 = vld [vmem:[#allocation10 + $0x1e8] sm:$0xff]
        %v711 = vld [vmem:[#allocation10 + $0x1f0] sm:$0xff]
        %v712 = vld [vmem:[#allocation10 + $0x1f8] sm:$0xff]
        %v777 = vunpack.c.l.b16 %v649
        %v778 = vunpack.c.h.b16 %v649
        %v779 = vunpack.c.l.b16 %v650
        %v780 = vunpack.c.h.b16 %v650
        %v781 = vunpack.c.l.b16 %v651
        %v782 = vunpack.c.h.b16 %v651
        %v783 = vunpack.c.l.b16 %v652
        %v784 = vunpack.c.h.b16 %v652
        %v785 = vunpack.c.l.b16 %v653
        %v786 = vunpack.c.h.b16 %v653
        %v787 = vunpack.c.l.b16 %v654
        %v788 = vunpack.c.h.b16 %v654
        %v789 = vunpack.c.l.b16 %v655
        %v790 = vunpack.c.h.b16 %v655
        %v791 = vunpack.c.l.b16 %v656
        %v792 = vunpack.c.h.b16 %v656
        %v793 = vunpack.c.l.b16 %v657
        %v794 = vunpack.c.h.b16 %v657
        %v795 = vunpack.c.l.b16 %v658
        %v796 = vunpack.c.h.b16 %v658
        %v797 = vunpack.c.l.b16 %v659
        %v798 = vunpack.c.h.b16 %v659
        %v799 = vunpack.c.l.b16 %v660
        %v800 = vunpack.c.h.b16 %v660
        %v801 = vunpack.c.l.b16 %v661
        %v802 = vunpack.c.h.b16 %v661
        %v803 = vunpack.c.l.b16 %v662
        %v804 = vunpack.c.h.b16 %v662
        %v805 = vunpack.c.l.b16 %v663
        %v806 = vunpack.c.h.b16 %v663
        %v807 = vunpack.c.l.b16 %v664
        %v808 = vunpack.c.h.b16 %v664
        %v809 = vunpack.c.l.b16 %v665
        %v810 = vunpack.c.h.b16 %v665
        %v811 = vunpack.c.l.b16 %v666
        %v812 = vunpack.c.h.b16 %v666
        %v813 = vunpack.c.l.b16 %v667
        %v814 = vunpack.c.h.b16 %v667
        %v815 = vunpack.c.l.b16 %v668
        %v816 = vunpack.c.h.b16 %v668
        %v817 = vunpack.c.l.b16 %v669
        %v818 = vunpack.c.h.b16 %v669
        %v819 = vunpack.c.l.b16 %v670
        %v820 = vunpack.c.h.b16 %v670
        %v821 = vunpack.c.l.b16 %v671
        %v822 = vunpack.c.h.b16 %v671
        %v823 = vunpack.c.l.b16 %v672
        %v824 = vunpack.c.h.b16 %v672
        %v825 = vunpack.c.l.b16 %v673
        %v826 = vunpack.c.h.b16 %v673
        %v827 = vunpack.c.l.b16 %v674
        %v828 = vunpack.c.h.b16 %v674
        %v829 = vunpack.c.l.b16 %v675
        %v830 = vunpack.c.h.b16 %v675
        %v831 = vunpack.c.l.b16 %v676
        %v832 = vunpack.c.h.b16 %v676
        %v833 = vunpack.c.l.b16 %v677
        %v834 = vunpack.c.h.b16 %v677
        %v835 = vunpack.c.l.b16 %v678
        %v836 = vunpack.c.h.b16 %v678
        %v837 = vunpack.c.l.b16 %v679
        %v838 = vunpack.c.h.b16 %v679
        %v839 = vunpack.c.l.b16 %v680
        %v840 = vunpack.c.h.b16 %v680
        %v841 = vunpack.c.l.b16 %v681
        %v842 = vunpack.c.h.b16 %v681
        %v843 = vunpack.c.l.b16 %v682
        %v844 = vunpack.c.h.b16 %v682
        %v845 = vunpack.c.l.b16 %v683
        %v846 = vunpack.c.h.b16 %v683
        %v847 = vunpack.c.l.b16 %v684
        %v848 = vunpack.c.h.b16 %v684
        %v849 = vunpack.c.l.b16 %v685
        %v850 = vunpack.c.h.b16 %v685
        %v851 = vunpack.c.l.b16 %v686
        %v852 = vunpack.c.h.b16 %v686
        %v853 = vunpack.c.l.b16 %v687
        %v854 = vunpack.c.h.b16 %v687
        %v855 = vunpack.c.l.b16 %v688
        %v856 = vunpack.c.h.b16 %v688
        %v857 = vunpack.c.l.b16 %v689
        %v858 = vunpack.c.h.b16 %v689
        %v859 = vunpack.c.l.b16 %v690
        %v860 = vunpack.c.h.b16 %v690
        %v861 = vunpack.c.l.b16 %v691
        %v862 = vunpack.c.h.b16 %v691
        %v863 = vunpack.c.l.b16 %v692
        %v864 = vunpack.c.h.b16 %v692
        %v865 = vunpack.c.l.b16 %v693
        %v866 = vunpack.c.h.b16 %v693
        %v867 = vunpack.c.l.b16 %v694
        %v868 = vunpack.c.h.b16 %v694
        %v869 = vunpack.c.l.b16 %v695
        %v870 = vunpack.c.h.b16 %v695
        %v871 = vunpack.c.l.b16 %v696
        %v872 = vunpack.c.h.b16 %v696
        %v873 = vunpack.c.l.b16 %v697
        %v874 = vunpack.c.h.b16 %v697
        %v875 = vunpack.c.l.b16 %v698
        %v876 = vunpack.c.h.b16 %v698
        %v877 = vunpack.c.l.b16 %v699
        %v878 = vunpack.c.h.b16 %v699
        %v879 = vunpack.c.l.b16 %v700
        %v880 = vunpack.c.h.b16 %v700
        %v881 = vunpack.c.l.b16 %v701
        %v882 = vunpack.c.h.b16 %v701
        %v883 = vunpack.c.l.b16 %v702
        %v884 = vunpack.c.h.b16 %v702
        %v885 = vunpack.c.l.b16 %v703
        %v886 = vunpack.c.h.b16 %v703
        %v887 = vunpack.c.l.b16 %v704
        %v888 = vunpack.c.h.b16 %v704
        %v889 = vunpack.c.l.b16 %v705
        %v890 = vunpack.c.h.b16 %v705
        %v891 = vunpack.c.l.b16 %v706
        %v892 = vunpack.c.h.b16 %v706
        %v893 = vunpack.c.l.b16 %v707
        %v894 = vunpack.c.h.b16 %v707
        %v895 = vunpack.c.l.b16 %v708
        %v896 = vunpack.c.h.b16 %v708
        %v897 = vunpack.c.l.b16 %v709
        %v898 = vunpack.c.h.b16 %v709
        %v899 = vunpack.c.l.b16 %v710
        %v900 = vunpack.c.h.b16 %v710
        %v901 = vunpack.c.l.b16 %v711
        %v902 = vunpack.c.h.b16 %v711
        %v903 = vunpack.c.l.b16 %v712
        %v904 = vunpack.c.h.b16 %v712
        %v905 = vpack.c.b16 %v785, %v777
        %v906 = vpack.c.b16 %v786, %v778
        %v907 = vpack.c.b16 %v787, %v779
        %v908 = vpack.c.b16 %v788, %v780
        %v909 = vpack.c.b16 %v789, %v781
        %v910 = vpack.c.b16 %v790, %v782
        %v911 = vpack.c.b16 %v791, %v783
        %v912 = vpack.c.b16 %v792, %v784
        %v913 = vpack.c.b16 %v801, %v793
        %v914 = vpack.c.b16 %v802, %v794
        %v915 = vpack.c.b16 %v803, %v795
        %v916 = vpack.c.b16 %v804, %v796
        %v917 = vpack.c.b16 %v805, %v797
        %v918 = vpack.c.b16 %v806, %v798
        %v919 = vpack.c.b16 %v807, %v799
        %v920 = vpack.c.b16 %v808, %v800
        %v921 = vpack.c.b16 %v817, %v809
        %v922 = vpack.c.b16 %v818, %v810
        %v923 = vpack.c.b16 %v819, %v811
        %v924 = vpack.c.b16 %v820, %v812
        %v925 = vpack.c.b16 %v821, %v813
        %v926 = vpack.c.b16 %v822, %v814
        %v927 = vpack.c.b16 %v823, %v815
        %v928 = vpack.c.b16 %v824, %v816
        %v929 = vpack.c.b16 %v833, %v825
        %v930 = vpack.c.b16 %v834, %v826
        %v931 = vpack.c.b16 %v835, %v827
        %v932 = vpack.c.b16 %v836, %v828
        %v933 = vpack.c.b16 %v837, %v829
        %v934 = vpack.c.b16 %v838, %v830
        %v935 = vpack.c.b16 %v839, %v831
        %v936 = vpack.c.b16 %v840, %v832
        %v937 = vpack.c.b16 %v849, %v841
        %v938 = vpack.c.b16 %v850, %v842
        %v939 = vpack.c.b16 %v851, %v843
        %v940 = vpack.c.b16 %v852, %v844
        %v941 = vpack.c.b16 %v853, %v845
        %v942 = vpack.c.b16 %v854, %v846
        %v943 = vpack.c.b16 %v855, %v847
        %v944 = vpack.c.b16 %v856, %v848
        %v945 = vpack.c.b16 %v865, %v857
        %v946 = vpack.c.b16 %v866, %v858
        %v947 = vpack.c.b16 %v867, %v859
        %v948 = vpack.c.b16 %v868, %v860
        %v949 = vpack.c.b16 %v869, %v861
        %v950 = vpack.c.b16 %v870, %v862
        %v951 = vpack.c.b16 %v871, %v863
        %v952 = vpack.c.b16 %v872, %v864
        %v953 = vpack.c.b16 %v881, %v873
        %v954 = vpack.c.b16 %v882, %v874
        %v955 = vpack.c.b16 %v883, %v875
        %v956 = vpack.c.b16 %v884, %v876
        %v957 = vpack.c.b16 %v885, %v877
        %v958 = vpack.c.b16 %v886, %v878
        %v959 = vpack.c.b16 %v887, %v879
        %v960 = vpack.c.b16 %v888, %v880
        %v961 = vpack.c.b16 %v897, %v889
        %v962 = vpack.c.b16 %v898, %v890
        %v963 = vpack.c.b16 %v899, %v891
        %v964 = vpack.c.b16 %v900, %v892
        %v965 = vpack.c.b16 %v901, %v893
        %v966 = vpack.c.b16 %v902, %v894
        %v967 = vpack.c.b16 %v903, %v895
        %v968 = vpack.c.b16 %v904, %v896
        %1033 = vmatpush.bf16.msra.mxu0 %v961
        %1034 = vmatpush.bf16.msra.mxu0 %v953
        %1035 = vmatpush.bf16.msra.mxu0 %v945
        %1036 = vmatpush.bf16.msra.mxu0 %v937
        %1037 = vmatpush.bf16.msra.mxu0 %v929
        %1038 = vmatpush.bf16.msra.mxu0 %v921
        %1039 = vmatpush.bf16.msra.mxu0 %v913
        %1040 = vmatpush.bf16.msra.mxu0 %v905
        %1041 = vmatmul.bf16.gmra.mxu0 %v648
        %v1042 = vpop.f32.mrf.mxu0
        %v1043 = vadd.f32 0.0, %v1042
        %v1044 = vpop.f32.mrf.mxu0
        %v1045 = vadd.f32 0.0, %v1044
        %1046 = vdwg.mxu0
        %1047 = vmatpush.bf16.msra.mxu0 %v962
        %1048 = vmatpush.bf16.msra.mxu0 %v954
        %1049 = vmatpush.bf16.msra.mxu0 %v946
        %1050 = vmatpush.bf16.msra.mxu0 %v938
        %1051 = vmatpush.bf16.msra.mxu0 %v930
        %1052 = vmatpush.bf16.msra.mxu0 %v922
        %1053 = vmatpush.bf16.msra.mxu0 %v914
        %1054 = vmatpush.bf16.msra.mxu0 %v906
        %1055 = vmatmul.bf16.gmra.mxu0 %v648
        %v1056 = vpop.f32.mrf.mxu0
        %v1057 = vadd.f32 0.0, %v1056
        %v1058 = vpop.f32.mrf.mxu0
        %v1059 = vadd.f32 0.0, %v1058
        %1060 = vdwg.mxu0
        %1061 = vmatpush.bf16.msra.mxu0 %v963
        %1062 = vmatpush.bf16.msra.mxu0 %v955
        %1063 = vmatpush.bf16.msra.mxu0 %v947
        %1064 = vmatpush.bf16.msra.mxu0 %v939
        %1065 = vmatpush.bf16.msra.mxu0 %v931
        %1066 = vmatpush.bf16.msra.mxu0 %v923
        %1067 = vmatpush.bf16.msra.mxu0 %v915
        %1068 = vmatpush.bf16.msra.mxu0 %v907
        %1069 = vmatmul.bf16.gmra.mxu0 %v648
        %v1070 = vpop.f32.mrf.mxu0
        %v1071 = vadd.f32 0.0, %v1070
        %v1072 = vpop.f32.mrf.mxu0
        %v1073 = vadd.f32 0.0, %v1072
        %1074 = vdwg.mxu0
        %1075 = vmatpush.bf16.msra.mxu0 %v964
        %1076 = vmatpush.bf16.msra.mxu0 %v956
        %1077 = vmatpush.bf16.msra.mxu0 %v948
        %1078 = vmatpush.bf16.msra.mxu0 %v940
        %1079 = vmatpush.bf16.msra.mxu0 %v932
        %1080 = vmatpush.bf16.msra.mxu0 %v924
        %1081 = vmatpush.bf16.msra.mxu0 %v916
        %1082 = vmatpush.bf16.msra.mxu0 %v908
        %1083 = vmatmul.bf16.gmra.mxu0 %v648
        %v1084 = vpop.f32.mrf.mxu0
        %v1085 = vadd.f32 0.0, %v1084
        %v1086 = vpop.f32.mrf.mxu0
        %v1087 = vadd.f32 0.0, %v1086
        %1088 = vdwg.mxu0
        %1089 = vmatpush.bf16.msra.mxu0 %v965
        %1090 = vmatpush.bf16.msra.mxu0 %v957
        %1091 = vmatpush.bf16.msra.mxu0 %v949
        %1092 = vmatpush.bf16.msra.mxu0 %v941
        %1093 = vmatpush.bf16.msra.mxu0 %v933
        %1094 = vmatpush.bf16.msra.mxu0 %v925
        %1095 = vmatpush.bf16.msra.mxu0 %v917
        %1096 = vmatpush.bf16.msra.mxu0 %v909
        %1097 = vmatmul.bf16.gmra.mxu0 %v648
        %v1098 = vpop.f32.mrf.mxu0
        %v1099 = vadd.f32 0.0, %v1098
        %v1100 = vpop.f32.mrf.mxu0
        %v1101 = vadd.f32 0.0, %v1100
        %1102 = vdwg.mxu0
        %1103 = vmatpush.bf16.msra.mxu0 %v966
        %1104 = vmatpush.bf16.msra.mxu0 %v958
        %1105 = vmatpush.bf16.msra.mxu0 %v950
        %1106 = vmatpush.bf16.msra.mxu0 %v942
        %1107 = vmatpush.bf16.msra.mxu0 %v934
        %1108 = vmatpush.bf16.msra.mxu0 %v926
        %1109 = vmatpush.bf16.msra.mxu0 %v918
        %1110 = vmatpush.bf16.msra.mxu0 %v910
        %1111 = vmatmul.bf16.gmra.mxu0 %v648
        %v1112 = vpop.f32.mrf.mxu0
        %v1113 = vadd.f32 0.0, %v1112
        %v1114 = vpop.f32.mrf.mxu0
        %v1115 = vadd.f32 0.0, %v1114
        %1116 = vdwg.mxu0
        %1117 = vmatpush.bf16.msra.mxu0 %v967
        %1118 = vmatpush.bf16.msra.mxu0 %v959
        %1119 = vmatpush.bf16.msra.mxu0 %v951
        %1120 = vmatpush.bf16.msra.mxu0 %v943
        %1121 = vmatpush.bf16.msra.mxu0 %v935
        %1122 = vmatpush.bf16.msra.mxu0 %v927
        %1123 = vmatpush.bf16.msra.mxu0 %v919
        %1124 = vmatpush.bf16.msra.mxu0 %v911
        %1125 = vmatmul.bf16.gmra.mxu0 %v648
        %v1126 = vpop.f32.mrf.mxu0
        %v1127 = vadd.f32 0.0, %v1126
        %v1128 = vpop.f32.mrf.mxu0
        %v1129 = vadd.f32 0.0, %v1128
        %1130 = vdwg.mxu0
        %1131 = vmatpush.bf16.msra.mxu0 %v968
        %1132 = vmatpush.bf16.msra.mxu0 %v960
        %1133 = vmatpush.bf16.msra.mxu0 %v952
        %1134 = vmatpush.bf16.msra.mxu0 %v944
        %1135 = vmatpush.bf16.msra.mxu0 %v936
        %1136 = vmatpush.bf16.msra.mxu0 %v928
        %1137 = vmatpush.bf16.msra.mxu0 %v920
        %1138 = vmatpush.bf16.msra.mxu0 %v912
        %1139 = vmatmul.bf16.gmra.mxu0 %v648
        %v1140 = vpop.f32.mrf.mxu0
        %v1141 = vadd.f32 0.0, %v1140
        %v1142 = vpop.f32.mrf.mxu0
        %v1143 = vadd.f32 0.0, %v1142
        %1144 = vdwg.mxu0
        %v1145 = vld [vmem:[#allocation12] sm:$0xff]
        %v1147 = vperm.slane %v1145, 0
        %v1148 = vperm.slane %v1145, 1
        %v1149 = vperm.slane %v1145, 2
        %v1150 = vperm.slane %v1145, 3
        %v1151 = vperm.slane %v1145, 4
        %v1152 = vperm.slane %v1145, 5
        %v1153 = vperm.slane %v1145, 6
        %v1154 = vperm.slane %v1145, 7
        %v1163 = vmul.f32 %v1043, %v1147
        %v1164 = vmul.f32 %v1057, %v1148
        %v1165 = vmul.f32 %v1071, %v1149
        %v1166 = vmul.f32 %v1085, %v1150
        %v1167 = vmul.f32 %v1099, %v1151
        %v1168 = vmul.f32 %v1113, %v1152
        %v1169 = vmul.f32 %v1127, %v1153
        %v1170 = vmul.f32 %v1141, %v1154
        %v1171 = vmul.f32 %v1045, %v1147
        %v1172 = vmul.f32 %v1059, %v1148
        %v1173 = vmul.f32 %v1073, %v1149
        %v1174 = vmul.f32 %v1087, %v1150
        %v1175 = vmul.f32 %v1101, %v1151
        %v1176 = vmul.f32 %v1115, %v1152
        %v1177 = vmul.f32 %v1129, %v1153
        %v1178 = vmul.f32 %v1143, %v1154
        %v1179 = vld [vmem:[#allocation13] sm:$0xff]
        %v1181 = vperm.slane %v1179, 0
        %v1182 = vperm.slane %v1179, 1
        %v1183 = vperm.slane %v1179, 2
        %v1184 = vperm.slane %v1179, 3
        %v1185 = vperm.slane %v1179, 4
        %v1186 = vperm.slane %v1179, 5
        %v1187 = vperm.slane %v1179, 6
        %v1188 = vperm.slane %v1179, 7
        %v1197 = vadd.f32 %v1163, %v1181
        %v1198 = vadd.f32 %v1164, %v1182
        %v1199 = vadd.f32 %v1165, %v1183
        %v1200 = vadd.f32 %v1166, %v1184
        %v1201 = vadd.f32 %v1167, %v1185
        %v1202 = vadd.f32 %v1168, %v1186
        %v1203 = vadd.f32 %v1169, %v1187
        %v1204 = vadd.f32 %v1170, %v1188
        %v1205 = vadd.f32 %v1171, %v1181
        %v1206 = vadd.f32 %v1172, %v1182
        %v1207 = vadd.f32 %v1173, %v1183
        %v1208 = vadd.f32 %v1174, %v1184
        %v1209 = vadd.f32 %v1175, %v1185
        %v1210 = vadd.f32 %v1176, %v1186
        %v1211 = vadd.f32 %v1177, %v1187
        %v1212 = vadd.f32 %v1178, %v1188
        %v1213 = vmax.f32 %v1197, %v1205
        %v1214 = vrot.slane %v1213, 4
        %v1215 = vmax.f32 %v1213, %v1214
        %v1216 = vrot.slane %v1215, 2
        %v1217 = vmax.f32 %v1215, %v1216
        %v1218 = vrot.slane %v1217, 1
        %v1219 = vmax.f32 %v1217, %v1218
        %v1220 = vmax.f32 %v1198, %v1206
        %v1221 = vrot.slane %v1220, 4
        %v1222 = vmax.f32 %v1220, %v1221
        %v1223 = vrot.slane %v1222, 2
        %v1224 = vmax.f32 %v1222, %v1223
        %v1225 = vrot.slane %v1224, 1
        %v1226 = vmax.f32 %v1224, %v1225
        %v1227 = vmax.f32 %v1199, %v1207
        %v1228 = vrot.slane %v1227, 4
        %v1229 = vmax.f32 %v1227, %v1228
        %v1230 = vrot.slane %v1229, 2
        %v1231 = vmax.f32 %v1229, %v1230
        %v1232 = vrot.slane %v1231, 1
        %v1233 = vmax.f32 %v1231, %v1232
        %v1234 = vmax.f32 %v1200, %v1208
        %v1235 = vrot.slane %v1234, 4
        %v1236 = vmax.f32 %v1234, %v1235
        %v1237 = vrot.slane %v1236, 2
        %v1238 = vmax.f32 %v1236, %v1237
        %v1239 = vrot.slane %v1238, 1
        %v1240 = vmax.f32 %v1238, %v1239
        %v1241 = vmax.f32 %v1201, %v1209
        %v1242 = vrot.slane %v1241, 4
        %v1243 = vmax.f32 %v1241, %v1242
        %v1244 = vrot.slane %v1243, 2
        %v1245 = vmax.f32 %v1243, %v1244
        %v1246 = vrot.slane %v1245, 1
        %v1247 = vmax.f32 %v1245, %v1246
        %v1248 = vmax.f32 %v1202, %v1210
        %v1249 = vrot.slane %v1248, 4
        %v1250 = vmax.f32 %v1248, %v1249
        %v1251 = vrot.slane %v1250, 2
        %v1252 = vmax.f32 %v1250, %v1251
        %v1253 = vrot.slane %v1252, 1
        %v1254 = vmax.f32 %v1252, %v1253
        %v1255 = vmax.f32 %v1203, %v1211
        %v1256 = vrot.slane %v1255, 4
        %v1257 = vmax.f32 %v1255, %v1256
        %v1258 = vrot.slane %v1257, 2
        %v1259 = vmax.f32 %v1257, %v1258
        %v1260 = vrot.slane %v1259, 1
        %v1261 = vmax.f32 %v1259, %v1260
        %v1262 = vmax.f32 %v1204, %v1212
        %v1263 = vrot.slane %v1262, 4
        %v1264 = vmax.f32 %v1262, %v1263
        %v1265 = vrot.slane %v1264, 2
        %v1266 = vmax.f32 %v1264, %v1265
        %v1267 = vrot.slane %v1266, 1
        %v1268 = vmax.f32 %v1266, %v1267
        %p1269 = scmp.eq.s32.totalorder %s31, 0
        // Predicated region
        $region93: #{pointnet_encoder.5} parent=59 // pred_check
          %p1270 = pneg %p1269
        $region94: #{pointnet_encoder.5} parent=59 // pred_check_branch
          %1272 = sbr.rel (%p1270) target = $region96
        $region95: #{pointnet_encoder.5} parent=59 // pred_region
          %1273 = vst [vmem:[%s523] sm:$0xff] -inf
        $region96: #{pointnet_encoder.5} parent=59 // pred_fallthru
          _
        %v1274 = vld [vmem:[%s523] sm:$0xff]
        %v1283 = vrot.slane %v1226, 7
        %v1284 = vrot.slane %v1233, 6
        %v1285 = vrot.slane %v1240, 5
        %v1286 = vrot.slane %v1247, 4
        %v1287 = vrot.slane %v1254, 3
        %v1288 = vrot.slane %v1261, 2
        %v1289 = vrot.slane %v1268, 1
        %vm1290 = vcmask 1040384
        %v1291 = vsel %vm1290, %v1219, %v1283
        %vm1292 = vcmask 1042434
        %v1293 = vsel %vm1292, %v1284, %v1285
        %vm1294 = vcmask 1041408
        %v1295 = vsel %vm1294, %v1291, %v1293
        %vm1296 = vcmask 1044484
        %v1297 = vsel %vm1296, %v1286, %v1287
        %vm1298 = vcmask 1046534
        %v1299 = vsel %vm1298, %v1288, %v1289
        %vm1300 = vcmask 1045508
        %v1301 = vsel %vm1300, %v1297, %v1299
        %vm1302 = vcmask 1043456
        %v1303 = vsel %vm1302, %v1295, %v1301
        %v1305 = vmax.f32 %v1274, %v1303
        %1306 = vst [vmem:[%s523] sm:$0xff] %v1305
        %p1307 = scmp.lt.s32.totalorder %s30, 1
        %s1308 = scalar_select %p1307, %s30, 1
        %s1309 = smul.addr %s1308, 8
        %s1310 = scalar_lea.vmem %s10, %s1309
        // Predicated region
        $region97: #{pointnet_encoder.5} parent=59 // pred_check
          %p1311 = pneg %p278
        $region98: #{pointnet_encoder.5} parent=59 // pred_check_branch
          %1313 = sbr.rel (%p1311) target = $region100
        $region99: #{pointnet_encoder.5} parent=59 // pred_region
          _
        $region100: #{pointnet_encoder.5} parent=59 // pred_fallthru
          _
      $region60: #{pointnet_encoder.5} parent=5 // pred_fallthru
        _
      %p1314 = scmp.le.s32.totalorder 2, %s21
      // Predicated region
      $region101: #{pointnet_encoder.5} parent=5 // pred_check
        %p1315 = pneg %p1314
      $region102: #{pointnet_encoder.5} parent=5 // pred_check_branch
        %1317 = sbr.rel (%p1315) target = $region104
      $region103: #{pointnet_encoder.5} parent=5 // pred_region
        %s1318 = ssub.s32 %s21, 2
        // Predicated region
        $region105: #{pointnet_encoder.5} parent=103 // pred_check
          %p1319 = pneg %p284
        $region106: #{pointnet_encoder.5} parent=103 // pred_check_branch
          %1321 = sbr.rel (%p1319) target = $region108
        $region107: #{pointnet_encoder.5} parent=103 // pred_region
          %p1322 = scmp.lt.s32.totalorder %s32, 1
          %s1323 = scalar_select %p1322, %s32, 1
          %s1324 = smul.addr %s1323, 8
          %s1325 = scalar_lea.vmem %s10, %s1324
        $region108: #{pointnet_encoder.5} parent=103 // pred_fallthru
          _
      $region104: #{pointnet_encoder.5} parent=5 // pred_fallthru
        _
    $region6: #{pointnet_encoder.5} parent=1 // loop_footer
      %s25 = sadd.s32 1, %s21
    $region7: #{pointnet_encoder.5} parent=1 // loop_footer_branch
      %20 = sbr.rel target = $region3
    $region8: #{pointnet_encoder.5} parent=1 // loop_exit
      _
    %1326 = vsyncpa [#allocation3], 1
    %s1327 = scalar_lea.sflag [#allocation3], 1
    %1328 = vsyncpa %s1327, 1
    %1329 = vsyncpa [#allocation5], 1
    %1330 = vsyncpa [#allocation8], 1
    %1331 = vsyncpa [#allocation11], 1
    %1332 = vsyncpa [#allocation14], 1

// kernel: pointnet_encoder.4
$region0: #{pointnet_encoder.4}
  #allocation0 [shape = 'u32[]', space=smem, size = 0x4, offset = 0x4, fixed_abs, tag = 'smem constant byte address 0x4 - core index']
  #allocation1 [shape = 'u32[72,128]{1,0:T(1,128)}', space=vmem, size = 0x9000, scoped, tag = 'internal scratch']
  %s0 = inlined_call_operand.vmem [shape: f32[8,1024], index: 0, kind: input, shape index: {}]
  %s1 = inlined_call_operand.hbm [shape: f32[1024,512], index: 1, kind: input, shape index: {}]
  %s2 = inlined_call_operand.hbm [shape: f32[1,512], index: 2, kind: input, shape index: {}]
  %s3 = inlined_call_operand.hbm [shape: f32[1,512], index: 3, kind: input, shape index: {}]
  %s4 = inlined_call_operand.hbm [shape: f32[512,256], index: 4, kind: input, shape index: {}]
  %s5 = inlined_call_operand.hbm [shape: f32[1,256], index: 5, kind: input, shape index: {}]
  %s6 = inlined_call_operand.hbm [shape: f32[1,256], index: 6, kind: input, shape index: {}]
  %s7 = inlined_call_operand.vmem [shape: f32[256,9], index: 7, kind: input, shape index: {}]
  %s8 = inlined_call_operand.hbm [shape: f32[1,9], index: 8, kind: input, shape index: {}]
  %s9 = inlined_call_operand.vmem [shape: f32[8,9], index: 9, kind: output, shape index: {}]
  %s10 = sld [smem:[#allocation0]]
  $region74: #{pointnet_encoder.4} parent=0
    _
  %s12 = ssub.s32 1, %s10
  %s13 = scalar_select 0, %s12, %s10
  $region1: #{pointnet_encoder.4} parent=0
    #allocation2 [shape = 'u8[2097152]{0}', space=vmem, size = 0x200000, scoped, tag = 'input window, operand 1, single buffered']
    #allocation3 [shape = 's32[1]{0}', space=sflag, size = 0x4, scoped, tag = 'scoped memory for pointnet_encoder.4']
    #allocation4 [shape = 'u8[2048]{0}', space=vmem, size = 0x800, scoped, tag = 'input window, operand 2, single buffered']
    #allocation5 [shape = 's32[1]{0}', space=sflag, size = 0x4, scoped, tag = 'scoped memory for pointnet_encoder.4']
    #allocation6 [shape = 'u8[2048]{0}', space=vmem, size = 0x800, scoped, tag = 'input window, operand 3, single buffered']
    #allocation7 [shape = 'u8[524288]{0}', space=vmem, size = 0x80000, scoped, tag = 'input window, operand 4, single buffered']
    #allocation8 [shape = 's32[1]{0}', space=sflag, size = 0x4, scoped, tag = 'scoped memory for pointnet_encoder.4']
    #allocation9 [shape = 'u8[1024]{0}', space=vmem, size = 0x400, scoped, tag = 'input window, operand 5, single buffered']
    #allocation10 [shape = 'u8[1024]{0}', space=vmem, size = 0x400, scoped, tag = 'input window, operand 6, single buffered']
    #allocation11 [shape = 's32[1]{0}', space=sflag, size = 0x4, scoped, tag = 'scoped memory for pointnet_encoder.4']
    #allocation12 [shape = 'u8[512]{0}', space=vmem, size = 0x400, scoped, tag = 'input window, operand 8, single buffered']
    %14 = vsyncpa [#allocation3], 0
    %15 = vsyncpa [#allocation5], 0
    %16 = vsyncpa [#allocation8], 0
    %17 = vsyncpa [#allocation11], 0
    // Predicated region
    $region2: #{pointnet_encoder.4} parent=1 // pred_check
      _
    $region3: #{pointnet_encoder.4} parent=1 // pred_check_branch
      %19 = sbr.rel (0) target = $region5
    $region4: #{pointnet_encoder.4} parent=1 // pred_region
      _
    $region5: #{pointnet_encoder.4} parent=1 // pred_fallthru
      _
    // Predicated region
    $region6: #{pointnet_encoder.4} parent=1 // pred_check
      _
    $region7: #{pointnet_encoder.4} parent=1 // pred_check_branch
      %21 = sbr.rel (0) target = $region9
    $region8: #{pointnet_encoder.4} parent=1 // pred_region
      %23 = vsyncadd [#allocation3], 0
      %s24 = sshll.u32 %s1, 4
      %s25 = int_to_ptr.hbm [resolvable:$true] %s24
      %s26 = sshll.u32 [#allocation2], 4
      %s27 = int_to_ptr.vmem [resolvable:$true] %s26
      %32 = dma.hbm_to_vmem [thread:$0]  %s25, 65536, %s27, [#allocation3], 512, 512, 32
    $region9: #{pointnet_encoder.4} parent=1 // pred_fallthru
      _
    // Predicated region
    $region10: #{pointnet_encoder.4} parent=1 // pred_check
      _
    $region11: #{pointnet_encoder.4} parent=1 // pred_check_branch
      %34 = sbr.rel (0) target = $region13
    $region12: #{pointnet_encoder.4} parent=1 // pred_region
      %36 = vsyncadd [#allocation5], 0
      %s38 = sshll.u32 %s2, 4
      %s39 = int_to_ptr.hbm [resolvable:$true] %s38
      %s40 = sshll.u32 [#allocation4], 4
      %s41 = int_to_ptr.vmem [resolvable:$true] %s40
      %43 = dma.hbm_to_vmem [thread:$0]  %s39, 64, %s41, [#allocation5]
    $region13: #{pointnet_encoder.4} parent=1 // pred_fallthru
      _
    // Predicated region
    $region14: #{pointnet_encoder.4} parent=1 // pred_check
      _
    $region15: #{pointnet_encoder.4} parent=1 // pred_check_branch
      %45 = sbr.rel (0) target = $region17
    $region16: #{pointnet_encoder.4} parent=1 // pred_region
      %47 = vsyncadd [#allocation5], 0
      %s49 = sshll.u32 %s3, 4
      %s50 = int_to_ptr.hbm [resolvable:$true] %s49
      %s51 = sshll.u32 [#allocation6], 4
      %s52 = int_to_ptr.vmem [resolvable:$true] %s51
      %54 = dma.hbm_to_vmem [thread:$0]  %s50, 64, %s52, [#allocation5]
    $region17: #{pointnet_encoder.4} parent=1 // pred_fallthru
      _
    // Predicated region
    $region18: #{pointnet_encoder.4} parent=1 // pred_check
      _
    $region19: #{pointnet_encoder.4} parent=1 // pred_check_branch
      %56 = sbr.rel (0) target = $region21
    $region20: #{pointnet_encoder.4} parent=1 // pred_region
      %58 = vsyncadd [#allocation8], 0
      %s59 = sshll.u32 %s4, 4
      %s60 = int_to_ptr.hbm [resolvable:$true] %s59
      %s61 = sshll.u32 [#allocation7], 4
      %s62 = int_to_ptr.vmem [resolvable:$true] %s61
      %67 = dma.hbm_to_vmem [thread:$0]  %s60, 16384, %s62, [#allocation8], 256, 256, 16
    $region21: #{pointnet_encoder.4} parent=1 // pred_fallthru
      _
    // Predicated region
    $region22: #{pointnet_encoder.4} parent=1 // pred_check
      _
    $region23: #{pointnet_encoder.4} parent=1 // pred_check_branch
      %69 = sbr.rel (0) target = $region25
    $region24: #{pointnet_encoder.4} parent=1 // pred_region
      %71 = vsyncadd [#allocation8], 0
      %s73 = sshll.u32 %s5, 4
      %s74 = int_to_ptr.hbm [resolvable:$true] %s73
      %s75 = sshll.u32 [#allocation9], 4
      %s76 = int_to_ptr.vmem [resolvable:$true] %s75
      %78 = dma.hbm_to_vmem [thread:$0]  %s74, 32, %s76, [#allocation8]
    $region25: #{pointnet_encoder.4} parent=1 // pred_fallthru
      _
    // Predicated region
    $region26: #{pointnet_encoder.4} parent=1 // pred_check
      _
    $region27: #{pointnet_encoder.4} parent=1 // pred_check_branch
      %80 = sbr.rel (0) target = $region29
    $region28: #{pointnet_encoder.4} parent=1 // pred_region
      %82 = vsyncadd [#allocation11], 0
      %s84 = sshll.u32 %s6, 4
      %s85 = int_to_ptr.hbm [resolvable:$true] %s84
      %s86 = sshll.u32 [#allocation10], 4
      %s87 = int_to_ptr.vmem [resolvable:$true] %s86
      %89 = dma.hbm_to_vmem [thread:$0]  %s85, 32, %s87, [#allocation11]
    $region29: #{pointnet_encoder.4} parent=1 // pred_fallthru
      _
    // Predicated region
    $region30: #{pointnet_encoder.4} parent=1 // pred_check
      _
    $region31: #{pointnet_encoder.4} parent=1 // pred_check_branch
      %91 = sbr.rel (0) target = $region33
    $region32: #{pointnet_encoder.4} parent=1 // pred_region
      _
    $region33: #{pointnet_encoder.4} parent=1 // pred_fallthru
      _
    // Predicated region
    $region34: #{pointnet_encoder.4} parent=1 // pred_check
      _
    $region35: #{pointnet_encoder.4} parent=1 // pred_check_branch
      %93 = sbr.rel (0) target = $region37
    $region36: #{pointnet_encoder.4} parent=1 // pred_region
      %95 = vsyncadd [#allocation11], 0
      %s97 = sshll.u32 %s8, 4
      %s98 = int_to_ptr.hbm [resolvable:$true] %s97
      %s99 = sshll.u32 [#allocation12], 4
      %s100 = int_to_ptr.vmem [resolvable:$true] %s99
      %102 = dma.hbm_to_vmem [thread:$0]  %s98, 16, %s100, [#allocation11]
    $region37: #{pointnet_encoder.4} parent=1 // pred_fallthru
      _
    // Predicated region
    $region38: #{pointnet_encoder.4} parent=1 // pred_check
      _
    $region39: #{pointnet_encoder.4} parent=1 // pred_check_branch
      %104 = sbr.rel (0) target = $region41
    $region40: #{pointnet_encoder.4} parent=1 // pred_region
      %106 = dma.done [#allocation3], 65536
    $region41: #{pointnet_encoder.4} parent=1 // pred_fallthru
      _
    // Predicated region
    $region42: #{pointnet_encoder.4} parent=1 // pred_check
      _
    $region43: #{pointnet_encoder.4} parent=1 // pred_check_branch
      %108 = sbr.rel (0) target = $region45
    $region44: #{pointnet_encoder.4} parent=1 // pred_region
      %110 = dma.done [#allocation5], 64
    $region45: #{pointnet_encoder.4} parent=1 // pred_fallthru
      _
    // Predicated region
    $region46: #{pointnet_encoder.4} parent=1 // pred_check
      _
    $region47: #{pointnet_encoder.4} parent=1 // pred_check_branch
      %112 = sbr.rel (0) target = $region49
    $region48: #{pointnet_encoder.4} parent=1 // pred_region
      %114 = dma.done [#allocation5], 64
    $region49: #{pointnet_encoder.4} parent=1 // pred_fallthru
      _
    // Predicated region
    $region50: #{pointnet_encoder.4} parent=1 // pred_check
      _
    $region51: #{pointnet_encoder.4} parent=1 // pred_check_branch
      %116 = sbr.rel (0) target = $region53
    $region52: #{pointnet_encoder.4} parent=1 // pred_region
      %118 = dma.done [#allocation8], 16384
    $region53: #{pointnet_encoder.4} parent=1 // pred_fallthru
      _
    // Predicated region
    $region54: #{pointnet_encoder.4} parent=1 // pred_check
      _
    $region55: #{pointnet_encoder.4} parent=1 // pred_check_branch
      %120 = sbr.rel (0) target = $region57
    $region56: #{pointnet_encoder.4} parent=1 // pred_region
      %122 = dma.done [#allocation8], 32
    $region57: #{pointnet_encoder.4} parent=1 // pred_fallthru
      _
    // Predicated region
    $region58: #{pointnet_encoder.4} parent=1 // pred_check
      _
    $region59: #{pointnet_encoder.4} parent=1 // pred_check_branch
      %124 = sbr.rel (0) target = $region61
    $region60: #{pointnet_encoder.4} parent=1 // pred_region
      %126 = dma.done [#allocation11], 32
    $region61: #{pointnet_encoder.4} parent=1 // pred_fallthru
      _
    // Predicated region
    $region62: #{pointnet_encoder.4} parent=1 // pred_check
      _
    $region63: #{pointnet_encoder.4} parent=1 // pred_check_branch
      %128 = sbr.rel (0) target = $region65
    $region64: #{pointnet_encoder.4} parent=1 // pred_region
      %130 = dma.done [#allocation11], 16
    $region65: #{pointnet_encoder.4} parent=1 // pred_fallthru
      _
    %v131 = vld [vmem:[%s0] sm:$0xff]
    %v132 = vld [vmem:[%s0 + $0x8] sm:$0xff]
    %v133 = vld [vmem:[%s0 + $0x10] sm:$0xff]
    %v134 = vld [vmem:[%s0 + $0x18] sm:$0xff]
    %v135 = vld [vmem:[%s0 + $0x20] sm:$0xff]
    %v136 = vld [vmem:[%s0 + $0x28] sm:$0xff]
    %v137 = vld [vmem:[%s0 + $0x30] sm:$0xff]
    %v138 = vld [vmem:[%s0 + $0x38] sm:$0xff]
    %v139 = vld [vmem:[#allocation2] sm:$0xff]
    %v140 = vld [vmem:[#allocation2 + $0x8] sm:$0xff]
    %v141 = vld [vmem:[#allocation2 + $0x10] sm:$0xff]
    %v142 = vld [vmem:[#allocation2 + $0x18] sm:$0xff]
    %v143 = vld [vmem:[#allocation2 + $0x20] sm:$0xff]
    %v144 = vld [vmem:[#allocation2 + $0x28] sm:$0xff]
    %v145 = vld [vmem:[#allocation2 + $0x30] sm:$0xff]
    %v146 = vld [vmem:[#allocation2 + $0x38] sm:$0xff]
    %v147 = vld [vmem:[#allocation2 + $0x40] sm:$0xff]
    %v148 = vld [vmem:[#allocation2 + $0x48] sm:$0xff]
    %v149 = vld [vmem:[#allocation2 + $0x50] sm:$0xff]
    %v150 = vld [vmem:[#allocation2 + $0x58] sm:$0xff]
    %v151 = vld [vmem:[#allocation2 + $0x60] sm:$0xff]
    %v152 = vld [vmem:[#allocation2 + $0x68] sm:$0xff]
    %v153 = vld [vmem:[#allocation2 + $0x70] sm:$0xff]
    %v154 = vld [vmem:[#allocation2 + $0x78] sm:$0xff]
    %v155 = vld [vmem:[#allocation2 + $0x80] sm:$0xff]
    %v156 = vld [vmem:[#allocation2 + $0x88] sm:$0xff]
    %v157 = vld [vmem:[#allocation2 + $0x90] sm:$0xff]
    %v158 = vld [vmem:[#allocation2 + $0x98] sm:$0xff]
    %v159 = vld [vmem:[#allocation2 + $0xa0] sm:$0xff]
    %v160 = vld [vmem:[#allocation2 + $0xa8] sm:$0xff]
    %v161 = vld [vmem:[#allocation2 + $0xb0] sm:$0xff]
    %v162 = vld [vmem:[#allocation2 + $0xb8] sm:$0xff]
    %v163 = vld [vmem:[#allocation2 + $0xc0] sm:$0xff]
    %v164 = vld [vmem:[#allocation2 + $0xc8] sm:$0xff]
    %v165 = vld [vmem:[#allocation2 + $0xd0] sm:$0xff]
    %v166 = vld [vmem:[#allocation2 + $0xd8] sm:$0xff]
    %v167 = vld [vmem:[#allocation2 + $0xe0] sm:$0xff]
    %v168 = vld [vmem:[#allocation2 + $0xe8] sm:$0xff]
    %v169 = vld [vmem:[#allocation2 + $0xf0] sm:$0xff]
    %v170 = vld [vmem:[#allocation2 + $0xf8] sm:$0xff]
    %v171 = vld [vmem:[#allocation2 + $0x100] sm:$0xff]
    %v172 = vld [vmem:[#allocation2 + $0x108] sm:$0xff]
    %v173 = vld [vmem:[#allocation2 + $0x110] sm:$0xff]
    %v174 = vld [vmem:[#allocation2 + $0x118] sm:$0xff]
    %v175 = vld [vmem:[#allocation2 + $0x120] sm:$0xff]
    %v176 = vld [vmem:[#allocation2 + $0x128] sm:$0xff]
    %v177 = vld [vmem:[#allocation2 + $0x130] sm:$0xff]
    %v178 = vld [vmem:[#allocation2 + $0x138] sm:$0xff]
    %v179 = vld [vmem:[#allocation2 + $0x140] sm:$0xff]
    %v180 = vld [vmem:[#allocation2 + $0x148] sm:$0xff]
    %v181 = vld [vmem:[#allocation2 + $0x150] sm:$0xff]
    %v182 = vld [vmem:[#allocation2 + $0x158] sm:$0xff]
    %v183 = vld [vmem:[#allocation2 + $0x160] sm:$0xff]
    %v184 = vld [vmem:[#allocation2 + $0x168] sm:$0xff]
    %v185 = vld [vmem:[#allocation2 + $0x170] sm:$0xff]
    %v186 = vld [vmem:[#allocation2 + $0x178] sm:$0xff]
    %v187 = vld [vmem:[#allocation2 + $0x180] sm:$0xff]
    %v188 = vld [vmem:[#allocation2 + $0x188] sm:$0xff]
    %v189 = vld [vmem:[#allocation2 + $0x190] sm:$0xff]
    %v190 = vld [vmem:[#allocation2 + $0x198] sm:$0xff]
    %v191 = vld [vmem:[#allocation2 + $0x1a0] sm:$0xff]
    %v192 = vld [vmem:[#allocation2 + $0x1a8] sm:$0xff]
    %v193 = vld [vmem:[#allocation2 + $0x1b0] sm:$0xff]
    %v194 = vld [vmem:[#allocation2 + $0x1b8] sm:$0xff]
    %v195 = vld [vmem:[#allocation2 + $0x1c0] sm:$0xff]
    %v196 = vld [vmem:[#allocation2 + $0x1c8] sm:$0xff]
    %v197 = vld [vmem:[#allocation2 + $0x1d0] sm:$0xff]
    %v198 = vld [vmem:[#allocation2 + $0x1d8] sm:$0xff]
    %v199 = vld [vmem:[#allocation2 + $0x1e0] sm:$0xff]
    %v200 = vld [vmem:[#allocation2 + $0x1e8] sm:$0xff]
    %v201 = vld [vmem:[#allocation2 + $0x1f0] sm:$0xff]
    %v202 = vld [vmem:[#allocation2 + $0x1f8] sm:$0xff]
    %v203 = vld [vmem:[#allocation2 + $0x200] sm:$0xff]
    %v204 = vld [vmem:[#allocation2 + $0x208] sm:$0xff]
    %v205 = vld [vmem:[#allocation2 + $0x210] sm:$0xff]
    %v206 = vld [vmem:[#allocation2 + $0x218] sm:$0xff]
    %v207 = vld [vmem:[#allocation2 + $0x220] sm:$0xff]
    %v208 = vld [vmem:[#allocation2 + $0x228] sm:$0xff]
    %v209 = vld [vmem:[#allocation2 + $0x230] sm:$0xff]
    %v210 = vld [vmem:[#allocation2 + $0x238] sm:$0xff]
    %v211 = vld [vmem:[#allocation2 + $0x240] sm:$0xff]
    %v212 = vld [vmem:[#allocation2 + $0x248] sm:$0xff]
    %v213 = vld [vmem:[#allocation2 + $0x250] sm:$0xff]
    %v214 = vld [vmem:[#allocation2 + $0x258] sm:$0xff]
    %v215 = vld [vmem:[#allocation2 + $0x260] sm:$0xff]
    %v216 = vld [vmem:[#allocation2 + $0x268] sm:$0xff]
    %v217 = vld [vmem:[#allocation2 + $0x270] sm:$0xff]
    %v218 = vld [vmem:[#allocation2 + $0x278] sm:$0xff]
    %v219 = vld [vmem:[#allocation2 + $0x280] sm:$0xff]
    %v220 = vld [vmem:[#allocation2 + $0x288] sm:$0xff]
    %v221 = vld [vmem:[#allocation2 + $0x290] sm:$0xff]
    %v222 = vld [vmem:[#allocation2 + $0x298] sm:$0xff]
    %v223 = vld [vmem:[#allocation2 + $0x2a0] sm:$0xff]
    %v224 = vld [vmem:[#allocation2 + $0x2a8] sm:$0xff]
    %v225 = vld [vmem:[#allocation2 + $0x2b0] sm:$0xff]
    %v226 = vld [vmem:[#allocation2 + $0x2b8] sm:$0xff]
    %v227 = vld [vmem:[#allocation2 + $0x2c0] sm:$0xff]
    %v228 = vld [vmem:[#allocation2 + $0x2c8] sm:$0xff]
    %v229 = vld [vmem:[#allocation2 + $0x2d0] sm:$0xff]
    %v230 = vld [vmem:[#allocation2 + $0x2d8] sm:$0xff]
    %v231 = vld [vmem:[#allocation2 + $0x2e0] sm:$0xff]
    %v232 = vld [vmem:[#allocation2 + $0x2e8] sm:$0xff]
    %v233 = vld [vmem:[#allocation2 + $0x2f0] sm:$0xff]
    %v234 = vld [vmem:[#allocation2 + $0x2f8] sm:$0xff]
    %v235 = vld [vmem:[#allocation2 + $0x300] sm:$0xff]
    %v236 = vld [vmem:[#allocation2 + $0x308] sm:$0xff]
    %v237 = vld [vmem:[#allocation2 + $0x310] sm:$0xff]
    %v238 = vld [vmem:[#allocation2 + $0x318] sm:$0xff]
    %v239 = vld [vmem:[#allocation2 + $0x320] sm:$0xff]
    %v240 = vld [vmem:[#allocation2 + $0x328] sm:$0xff]
    %v241 = vld [vmem:[#allocation2 + $0x330] sm:$0xff]
    %v242 = vld [vmem:[#allocation2 + $0x338] sm:$0xff]
    %v243 = vld [vmem:[#allocation2 + $0x340] sm:$0xff]
    %v244 = vld [vmem:[#allocation2 + $0x348] sm:$0xff]
    %v245 = vld [vmem:[#allocation2 + $0x350] sm:$0xff]
    %v246 = vld [vmem:[#allocation2 + $0x358] sm:$0xff]
    %v247 = vld [vmem:[#allocation2 + $0x360] sm:$0xff]
    %v248 = vld [vmem:[#allocation2 + $0x368] sm:$0xff]
    %v249 = vld [vmem:[#allocation2 + $0x370] sm:$0xff]
    %v250 = vld [vmem:[#allocation2 + $0x378] sm:$0xff]
    %v251 = vld [vmem:[#allocation2 + $0x380] sm:$0xff]
    %v252 = vld [vmem:[#allocation2 + $0x388] sm:$0xff]
    %v253 = vld [vmem:[#allocation2 + $0x390] sm:$0xff]
    %v254 = vld [vmem:[#allocation2 + $0x398] sm:$0xff]
    %v255 = vld [vmem:[#allocation2 + $0x3a0] sm:$0xff]
    %v256 = vld [vmem:[#allocation2 + $0x3a8] sm:$0xff]
    %v257 = vld [vmem:[#allocation2 + $0x3b0] sm:$0xff]
    %v258 = vld [vmem:[#allocation2 + $0x3b8] sm:$0xff]
    %v259 = vld [vmem:[#allocation2 + $0x3c0] sm:$0xff]
    %v260 = vld [vmem:[#allocation2 + $0x3c8] sm:$0xff]
    %v261 = vld [vmem:[#allocation2 + $0x3d0] sm:$0xff]
    %v262 = vld [vmem:[#allocation2 + $0x3d8] sm:$0xff]
    %v263 = vld [vmem:[#allocation2 + $0x3e0] sm:$0xff]
    %v264 = vld [vmem:[#allocation2 + $0x3e8] sm:$0xff]
    %v265 = vld [vmem:[#allocation2 + $0x3f0] sm:$0xff]
    %v266 = vld [vmem:[#allocation2 + $0x3f8] sm:$0xff]
    %v267 = vld [vmem:[#allocation2 + $0x400] sm:$0xff]
    %v268 = vld [vmem:[#allocation2 + $0x408] sm:$0xff]
    %v269 = vld [vmem:[#allocation2 + $0x410] sm:$0xff]
    %v270 = vld [vmem:[#allocation2 + $0x418] sm:$0xff]
    %v271 = vld [vmem:[#allocation2 + $0x420] sm:$0xff]
    %v272 = vld [vmem:[#allocation2 + $0x428] sm:$0xff]
    %v273 = vld [vmem:[#allocation2 + $0x430] sm:$0xff]
    %v274 = vld [vmem:[#allocation2 + $0x438] sm:$0xff]
    %v275 = vld [vmem:[#allocation2 + $0x440] sm:$0xff]
    %v276 = vld [vmem:[#allocation2 + $0x448] sm:$0xff]
    %v277 = vld [vmem:[#allocation2 + $0x450] sm:$0xff]
    %v278 = vld [vmem:[#allocation2 + $0x458] sm:$0xff]
    %v279 = vld [vmem:[#allocation2 + $0x460] sm:$0xff]
    %v280 = vld [vmem:[#allocation2 + $0x468] sm:$0xff]
    %v281 = vld [vmem:[#allocation2 + $0x470] sm:$0xff]
    %v282 = vld [vmem:[#allocation2 + $0x478] sm:$0xff]
    %v283 = vld [vmem:[#allocation2 + $0x480] sm:$0xff]
    %v284 = vld [vmem:[#allocation2 + $0x488] sm:$0xff]
    %v285 = vld [vmem:[#allocation2 + $0x490] sm:$0xff]
    %v286 = vld [vmem:[#allocation2 + $0x498] sm:$0xff]
    %v287 = vld [vmem:[#allocation2 + $0x4a0] sm:$0xff]
    %v288 = vld [vmem:[#allocation2 + $0x4a8] sm:$0xff]
    %v289 = vld [vmem:[#allocation2 + $0x4b0] sm:$0xff]
    %v290 = vld [vmem:[#allocation2 + $0x4b8] sm:$0xff]
    %v291 = vld [vmem:[#allocation2 + $0x4c0] sm:$0xff]
    %v292 = vld [vmem:[#allocation2 + $0x4c8] sm:$0xff]
    %v293 = vld [vmem:[#allocation2 + $0x4d0] sm:$0xff]
    %v294 = vld [vmem:[#allocation2 + $0x4d8] sm:$0xff]
    %v295 = vld [vmem:[#allocation2 + $0x4e0] sm:$0xff]
    %v296 = vld [vmem:[#allocation2 + $0x4e8] sm:$0xff]
    %v297 = vld [vmem:[#allocation2 + $0x4f0] sm:$0xff]
    %v298 = vld [vmem:[#allocation2 + $0x4f8] sm:$0xff]
    %v299 = vld [vmem:[#allocation2 + $0x500] sm:$0xff]
    %v300 = vld [vmem:[#allocation2 + $0x508] sm:$0xff]
    %v301 = vld [vmem:[#allocation2 + $0x510] sm:$0xff]
    %v302 = vld [vmem:[#allocation2 + $0x518] sm:$0xff]
    %v303 = vld [vmem:[#allocation2 + $0x520] sm:$0xff]
    %v304 = vld [vmem:[#allocation2 + $0x528] sm:$0xff]
    %v305 = vld [vmem:[#allocation2 + $0x530] sm:$0xff]
    %v306 = vld [vmem:[#allocation2 + $0x538] sm:$0xff]
    %v307 = vld [vmem:[#allocation2 + $0x540] sm:$0xff]
    %v308 = vld [vmem:[#allocation2 + $0x548] sm:$0xff]
    %v309 = vld [vmem:[#allocation2 + $0x550] sm:$0xff]
    %v310 = vld [vmem:[#allocation2 + $0x558] sm:$0xff]
    %v311 = vld [vmem:[#allocation2 + $0x560] sm:$0xff]
    %v312 = vld [vmem:[#allocation2 + $0x568] sm:$0xff]
    %v313 = vld [vmem:[#allocation2 + $0x570] sm:$0xff]
    %v314 = vld [vmem:[#allocation2 + $0x578] sm:$0xff]
    %v315 = vld [vmem:[#allocation2 + $0x580] sm:$0xff]
    %v316 = vld [vmem:[#allocation2 + $0x588] sm:$0xff]
    %v317 = vld [vmem:[#allocation2 + $0x590] sm:$0xff]
    %v318 = vld [vmem:[#allocation2 + $0x598] sm:$0xff]
    %v319 = vld [vmem:[#allocation2 + $0x5a0] sm:$0xff]
    %v320 = vld [vmem:[#allocation2 + $0x5a8] sm:$0xff]
    %v321 = vld [vmem:[#allocation2 + $0x5b0] sm:$0xff]
    %v322 = vld [vmem:[#allocation2 + $0x5b8] sm:$0xff]
    %v323 = vld [vmem:[#allocation2 + $0x5c0] sm:$0xff]
    %v324 = vld [vmem:[#allocation2 + $0x5c8] sm:$0xff]
    %v325 = vld [vmem:[#allocation2 + $0x5d0] sm:$0xff]
    %v326 = vld [vmem:[#allocation2 + $0x5d8] sm:$0xff]
    %v327 = vld [vmem:[#allocation2 + $0x5e0] sm:$0xff]
    %v328 = vld [vmem:[#allocation2 + $0x5e8] sm:$0xff]
    %v329 = vld [vmem:[#allocation2 + $0x5f0] sm:$0xff]
    %v330 = vld [vmem:[#allocation2 + $0x5f8] sm:$0xff]
    %v331 = vld [vmem:[#allocation2 + $0x600] sm:$0xff]
    %v332 = vld [vmem:[#allocation2 + $0x608] sm:$0xff]
    %v333 = vld [vmem:[#allocation2 + $0x610] sm:$0xff]
    %v334 = vld [vmem:[#allocation2 + $0x618] sm:$0xff]
    %v335 = vld [vmem:[#allocation2 + $0x620] sm:$0xff]
    %v336 = vld [vmem:[#allocation2 + $0x628] sm:$0xff]
    %v337 = vld [vmem:[#allocation2 + $0x630] sm:$0xff]
    %v338 = vld [vmem:[#allocation2 + $0x638] sm:$0xff]
    %v339 = vld [vmem:[#allocation2 + $0x640] sm:$0xff]
    %v340 = vld [vmem:[#allocation2 + $0x648] sm:$0xff]
    %v341 = vld [vmem:[#allocation2 + $0x650] sm:$0xff]
    %v342 = vld [vmem:[#allocation2 + $0x658] sm:$0xff]
    %v343 = vld [vmem:[#allocation2 + $0x660] sm:$0xff]
    %v344 = vld [vmem:[#allocation2 + $0x668] sm:$0xff]
    %v345 = vld [vmem:[#allocation2 + $0x670] sm:$0xff]
    %v346 = vld [vmem:[#allocation2 + $0x678] sm:$0xff]
    %v347 = vld [vmem:[#allocation2 + $0x680] sm:$0xff]
    %v348 = vld [vmem:[#allocation2 + $0x688] sm:$0xff]
    %v349 = vld [vmem:[#allocation2 + $0x690] sm:$0xff]
    %v350 = vld [vmem:[#allocation2 + $0x698] sm:$0xff]
    %v351 = vld [vmem:[#allocation2 + $0x6a0] sm:$0xff]
    %v352 = vld [vmem:[#allocation2 + $0x6a8] sm:$0xff]
    %v353 = vld [vmem:[#allocation2 + $0x6b0] sm:$0xff]
    %v354 = vld [vmem:[#allocation2 + $0x6b8] sm:$0xff]
    %v355 = vld [vmem:[#allocation2 + $0x6c0] sm:$0xff]
    %v356 = vld [vmem:[#allocation2 + $0x6c8] sm:$0xff]
    %v357 = vld [vmem:[#allocation2 + $0x6d0] sm:$0xff]
    %v358 = vld [vmem:[#allocation2 + $0x6d8] sm:$0xff]
    %v359 = vld [vmem:[#allocation2 + $0x6e0] sm:$0xff]
    %v360 = vld [vmem:[#allocation2 + $0x6e8] sm:$0xff]
    %v361 = vld [vmem:[#allocation2 + $0x6f0] sm:$0xff]
    %v362 = vld [vmem:[#allocation2 + $0x6f8] sm:$0xff]
    %v363 = vld [vmem:[#allocation2 + $0x700] sm:$0xff]
    %v364 = vld [vmem:[#allocation2 + $0x708] sm:$0xff]
    %v365 = vld [vmem:[#allocation2 + $0x710] sm:$0xff]
    %v366 = vld [vmem:[#allocation2 + $0x718] sm:$0xff]
    %v367 = vld [vmem:[#allocation2 + $0x720] sm:$0xff]
    %v368 = vld [vmem:[#allocation2 + $0x728] sm:$0xff]
    %v369 = vld [vmem:[#allocation2 + $0x730] sm:$0xff]
    %v370 = vld [vmem:[#allocation2 + $0x738] sm:$0xff]
    %v371 = vld [vmem:[#allocation2 + $0x740] sm:$0xff]
    %v372 = vld [vmem:[#allocation2 + $0x748] sm:$0xff]
    %v373 = vld [vmem:[#allocation2 + $0x750] sm:$0xff]
    %v374 = vld [vmem:[#allocation2 + $0x758] sm:$0xff]
    %v375 = vld [vmem:[#allocation2 + $0x760] sm:$0xff]
    %v376 = vld [vmem:[#allocation2 + $0x768] sm:$0xff]
    %v377 = vld [vmem:[#allocation2 + $0x770] sm:$0xff]
    %v378 = vld [vmem:[#allocation2 + $0x778] sm:$0xff]
    %v379 = vld [vmem:[#allocation2 + $0x780] sm:$0xff]
    %v380 = vld [vmem:[#allocation2 + $0x788] sm:$0xff]
    %v381 = vld [vmem:[#allocation2 + $0x790] sm:$0xff]
    %v382 = vld [vmem:[#allocation2 + $0x798] sm:$0xff]
    %v383 = vld [vmem:[#allocation2 + $0x7a0] sm:$0xff]
    %v384 = vld [vmem:[#allocation2 + $0x7a8] sm:$0xff]
    %v385 = vld [vmem:[#allocation2 + $0x7b0] sm:$0xff]
    %v386 = vld [vmem:[#allocation2 + $0x7b8] sm:$0xff]
    %v387 = vld [vmem:[#allocation2 + $0x7c0] sm:$0xff]
    %v388 = vld [vmem:[#allocation2 + $0x7c8] sm:$0xff]
    %v389 = vld [vmem:[#allocation2 + $0x7d0] sm:$0xff]
    %v390 = vld [vmem:[#allocation2 + $0x7d8] sm:$0xff]
    %v391 = vld [vmem:[#allocation2 + $0x7e0] sm:$0xff]
    %v392 = vld [vmem:[#allocation2 + $0x7e8] sm:$0xff]
    %v393 = vld [vmem:[#allocation2 + $0x7f0] sm:$0xff]
    %v394 = vld [vmem:[#allocation2 + $0x7f8] sm:$0xff]
    %v395 = vld [vmem:[#allocation2 + $0x800] sm:$0xff]
    %v396 = vld [vmem:[#allocation2 + $0x808] sm:$0xff]
    %v397 = vld [vmem:[#allocation2 + $0x810] sm:$0xff]
    %v398 = vld [vmem:[#allocation2 + $0x818] sm:$0xff]
    %v399 = vld [vmem:[#allocation2 + $0x820] sm:$0xff]
    %v400 = vld [vmem:[#allocation2 + $0x828] sm:$0xff]
    %v401 = vld [vmem:[#allocation2 + $0x830] sm:$0xff]
    %v402 = vld [vmem:[#allocation2 + $0x838] sm:$0xff]
    %v403 = vld [vmem:[#allocation2 + $0x840] sm:$0xff]
    %v404 = vld [vmem:[#allocation2 + $0x848] sm:$0xff]
    %v405 = vld [vmem:[#allocation2 + $0x850] sm:$0xff]
    %v406 = vld [vmem:[#allocation2 + $0x858] sm:$0xff]
    %v407 = vld [vmem:[#allocation2 + $0x860] sm:$0xff]
    %v408 = vld [vmem:[#allocation2 + $0x868] sm:$0xff]
    %v409 = vld [vmem:[#allocation2 + $0x870] sm:$0xff]
    %v410 = vld [vmem:[#allocation2 + $0x878] sm:$0xff]
    %v411 = vld [vmem:[#allocation2 + $0x880] sm:$0xff]
    %v412 = vld [vmem:[#allocation2 + $0x888] sm:$0xff]
    %v413 = vld [vmem:[#allocation2 + $0x890] sm:$0xff]
    %v414 = vld [vmem:[#allocation2 + $0x898] sm:$0xff]
    %v415 = vld [vmem:[#allocation2 + $0x8a0] sm:$0xff]
    %v416 = vld [vmem:[#allocation2 + $0x8a8] sm:$0xff]
    %v417 = vld [vmem:[#allocation2 + $0x8b0] sm:$0xff]
    %v418 = vld [vmem:[#allocation2 + $0x8b8] sm:$0xff]
    %v419 = vld [vmem:[#allocation2 + $0x8c0] sm:$0xff]
    %v420 = vld [vmem:[#allocation2 + $0x8c8] sm:$0xff]
    %v421 = vld [vmem:[#allocation2 + $0x8d0] sm:$0xff]
    %v422 = vld [vmem:[#allocation2 + $0x8d8] sm:$0xff]
    %v423 = vld [vmem:[#allocation2 + $0x8e0] sm:$0xff]
    %v424 = vld [vmem:[#allocation2 + $0x8e8] sm:$0xff]
    %v425 = vld [vmem:[#allocation2 + $0x8f0] sm:$0xff]
    %v426 = vld [vmem:[#allocation2 + $0x8f8] sm:$0xff]
    %v427 = vld [vmem:[#allocation2 + $0x900] sm:$0xff]
    %v428 = vld [vmem:[#allocation2 + $0x908] sm:$0xff]
    %v429 = vld [vmem:[#allocation2 + $0x910] sm:$0xff]
    %v430 = vld [vmem:[#allocation2 + $0x918] sm:$0xff]
    %v431 = vld [vmem:[#allocation2 + $0x920] sm:$0xff]
    %v432 = vld [vmem:[#allocation2 + $0x928] sm:$0xff]
    %v433 = vld [vmem:[#allocation2 + $0x930] sm:$0xff]
    %v434 = vld [vmem:[#allocation2 + $0x938] sm:$0xff]
    %v435 = vld [vmem:[#allocation2 + $0x940] sm:$0xff]
    %v436 = vld [vmem:[#allocation2 + $0x948] sm:$0xff]
    %v437 = vld [vmem:[#allocation2 + $0x950] sm:$0xff]
    %v438 = vld [vmem:[#allocation2 + $0x958] sm:$0xff]
    %v439 = vld [vmem:[#allocation2 + $0x960] sm:$0xff]
    %v440 = vld [vmem:[#allocation2 + $0x968] sm:$0xff]
    %v441 = vld [vmem:[#allocation2 + $0x970] sm:$0xff]
    %v442 = vld [vmem:[#allocation2 + $0x978] sm:$0xff]
    %v443 = vld [vmem:[#allocation2 + $0x980] sm:$0xff]
    %v444 = vld [vmem:[#allocation2 + $0x988] sm:$0xff]
    %v445 = vld [vmem:[#allocation2 + $0x990] sm:$0xff]
    %v446 = vld [vmem:[#allocation2 + $0x998] sm:$0xff]
    %v447 = vld [vmem:[#allocation2 + $0x9a0] sm:$0xff]
    %v448 = vld [vmem:[#allocation2 + $0x9a8] sm:$0xff]
    %v449 = vld [vmem:[#allocation2 + $0x9b0] sm:$0xff]
    %v450 = vld [vmem:[#allocation2 + $0x9b8] sm:$0xff]
    %v451 = vld [vmem:[#allocation2 + $0x9c0] sm:$0xff]
    %v452 = vld [vmem:[#allocation2 + $0x9c8] sm:$0xff]
    %v453 = vld [vmem:[#allocation2 + $0x9d0] sm:$0xff]
    %v454 = vld [vmem:[#allocation2 + $0x9d8] sm:$0xff]
    %v455 = vld [vmem:[#allocation2 + $0x9e0] sm:$0xff]
    %v456 = vld [vmem:[#allocation2 + $0x9e8] sm:$0xff]
    %v457 = vld [vmem:[#allocation2 + $0x9f0] sm:$0xff]
    %v458 = vld [vmem:[#allocation2 + $0x9f8] sm:$0xff]
    %v459 = vld [vmem:[#allocation2 + $0xa00] sm:$0xff]
    %v460 = vld [vmem:[#allocation2 + $0xa08] sm:$0xff]
    %v461 = vld [vmem:[#allocation2 + $0xa10] sm:$0xff]
    %v462 = vld [vmem:[#allocation2 + $0xa18] sm:$0xff]
    %v463 = vld [vmem:[#allocation2 + $0xa20] sm:$0xff]
    %v464 = vld [vmem:[#allocation2 + $0xa28] sm:$0xff]
    %v465 = vld [vmem:[#allocation2 + $0xa30] sm:$0xff]
    %v466 = vld [vmem:[#allocation2 + $0xa38] sm:$0xff]
    %v467 = vld [vmem:[#allocation2 + $0xa40] sm:$0xff]
    %v468 = vld [vmem:[#allocation2 + $0xa48] sm:$0xff]
    %v469 = vld [vmem:[#allocation2 + $0xa50] sm:$0xff]
    %v470 = vld [vmem:[#allocation2 + $0xa58] sm:$0xff]
    %v471 = vld [vmem:[#allocation2 + $0xa60] sm:$0xff]
    %v472 = vld [vmem:[#allocation2 + $0xa68] sm:$0xff]
    %v473 = vld [vmem:[#allocation2 + $0xa70] sm:$0xff]
    %v474 = vld [vmem:[#allocation2 + $0xa78] sm:$0xff]
    %v475 = vld [vmem:[#allocation2 + $0xa80] sm:$0xff]
    %v476 = vld [vmem:[#allocation2 + $0xa88] sm:$0xff]
    %v477 = vld [vmem:[#allocation2 + $0xa90] sm:$0xff]
    %v478 = vld [vmem:[#allocation2 + $0xa98] sm:$0xff]
    %v479 = vld [vmem:[#allocation2 + $0xaa0] sm:$0xff]
    %v480 = vld [vmem:[#allocation2 + $0xaa8] sm:$0xff]
    %v481 = vld [vmem:[#allocation2 + $0xab0] sm:$0xff]
    %v482 = vld [vmem:[#allocation2 + $0xab8] sm:$0xff]
    %v483 = vld [vmem:[#allocation2 + $0xac0] sm:$0xff]
    %v484 = vld [vmem:[#allocation2 + $0xac8] sm:$0xff]
    %v485 = vld [vmem:[#allocation2 + $0xad0] sm:$0xff]
    %v486 = vld [vmem:[#allocation2 + $0xad8] sm:$0xff]
    %v487 = vld [vmem:[#allocation2 + $0xae0] sm:$0xff]
    %v488 = vld [vmem:[#allocation2 + $0xae8] sm:$0xff]
    %v489 = vld [vmem:[#allocation2 + $0xaf0] sm:$0xff]
    %v490 = vld [vmem:[#allocation2 + $0xaf8] sm:$0xff]
    %v491 = vld [vmem:[#allocation2 + $0xb00] sm:$0xff]
    %v492 = vld [vmem:[#allocation2 + $0xb08] sm:$0xff]
    %v493 = vld [vmem:[#allocation2 + $0xb10] sm:$0xff]
    %v494 = vld [vmem:[#allocation2 + $0xb18] sm:$0xff]
    %v495 = vld [vmem:[#allocation2 + $0xb20] sm:$0xff]
    %v496 = vld [vmem:[#allocation2 + $0xb28] sm:$0xff]
    %v497 = vld [vmem:[#allocation2 + $0xb30] sm:$0xff]
    %v498 = vld [vmem:[#allocation2 + $0xb38] sm:$0xff]
    %v499 = vld [vmem:[#allocation2 + $0xb40] sm:$0xff]
    %v500 = vld [vmem:[#allocation2 + $0xb48] sm:$0xff]
    %v501 = vld [vmem:[#allocation2 + $0xb50] sm:$0xff]
    %v502 = vld [vmem:[#allocation2 + $0xb58] sm:$0xff]
    %v503 = vld [vmem:[#allocation2 + $0xb60] sm:$0xff]
    %v504 = vld [vmem:[#allocation2 + $0xb68] sm:$0xff]
    %v505 = vld [vmem:[#allocation2 + $0xb70] sm:$0xff]
    %v506 = vld [vmem:[#allocation2 + $0xb78] sm:$0xff]
    %v507 = vld [vmem:[#allocation2 + $0xb80] sm:$0xff]
    %v508 = vld [vmem:[#allocation2 + $0xb88] sm:$0xff]
    %v509 = vld [vmem:[#allocation2 + $0xb90] sm:$0xff]
    %v510 = vld [vmem:[#allocation2 + $0xb98] sm:$0xff]
    %v511 = vld [vmem:[#allocation2 + $0xba0] sm:$0xff]
    %v512 = vld [vmem:[#allocation2 + $0xba8] sm:$0xff]
    %v513 = vld [vmem:[#allocation2 + $0xbb0] sm:$0xff]
    %v514 = vld [vmem:[#allocation2 + $0xbb8] sm:$0xff]
    %v515 = vld [vmem:[#allocation2 + $0xbc0] sm:$0xff]
    %v516 = vld [vmem:[#allocation2 + $0xbc8] sm:$0xff]
    %v517 = vld [vmem:[#allocation2 + $0xbd0] sm:$0xff]
    %v518 = vld [vmem:[#allocation2 + $0xbd8] sm:$0xff]
    %v519 = vld [vmem:[#allocation2 + $0xbe0] sm:$0xff]
    %v520 = vld [vmem:[#allocation2 + $0xbe8] sm:$0xff]
    %v521 = vld [vmem:[#allocation2 + $0xbf0] sm:$0xff]
    %v522 = vld [vmem:[#allocation2 + $0xbf8] sm:$0xff]
    %v523 = vld [vmem:[#allocation2 + $0xc00] sm:$0xff]
    %v524 = vld [vmem:[#allocation2 + $0xc08] sm:$0xff]
    %v525 = vld [vmem:[#allocation2 + $0xc10] sm:$0xff]
    %v526 = vld [vmem:[#allocation2 + $0xc18] sm:$0xff]
    %v527 = vld [vmem:[#allocation2 + $0xc20] sm:$0xff]
    %v528 = vld [vmem:[#allocation2 + $0xc28] sm:$0xff]
    %v529 = vld [vmem:[#allocation2 + $0xc30] sm:$0xff]
    %v530 = vld [vmem:[#allocation2 + $0xc38] sm:$0xff]
    %v531 = vld [vmem:[#allocation2 + $0xc40] sm:$0xff]
    %v532 = vld [vmem:[#allocation2 + $0xc48] sm:$0xff]
    %v533 = vld [vmem:[#allocation2 + $0xc50] sm:$0xff]
    %v534 = vld [vmem:[#allocation2 + $0xc58] sm:$0xff]
    %v535 = vld [vmem:[#allocation2 + $0xc60] sm:$0xff]
    %v536 = vld [vmem:[#allocation2 + $0xc68] sm:$0xff]
    %v537 = vld [vmem:[#allocation2 + $0xc70] sm:$0xff]
    %v538 = vld [vmem:[#allocation2 + $0xc78] sm:$0xff]
    %v539 = vld [vmem:[#allocation2 + $0xc80] sm:$0xff]
    %v540 = vld [vmem:[#allocation2 + $0xc88] sm:$0xff]
    %v541 = vld [vmem:[#allocation2 + $0xc90] sm:$0xff]
    %v542 = vld [vmem:[#allocation2 + $0xc98] sm:$0xff]
    %v543 = vld [vmem:[#allocation2 + $0xca0] sm:$0xff]
    %v544 = vld [vmem:[#allocation2 + $0xca8] sm:$0xff]
    %v545 = vld [vmem:[#allocation2 + $0xcb0] sm:$0xff]
    %v546 = vld [vmem:[#allocation2 + $0xcb8] sm:$0xff]
    %v547 = vld [vmem:[#allocation2 + $0xcc0] sm:$0xff]
    %v548 = vld [vmem:[#allocation2 + $0xcc8] sm:$0xff]
    %v549 = vld [vmem:[#allocation2 + $0xcd0] sm:$0xff]
    %v550 = vld [vmem:[#allocation2 + $0xcd8] sm:$0xff]
    %v551 = vld [vmem:[#allocation2 + $0xce0] sm:$0xff]
    %v552 = vld [vmem:[#allocation2 + $0xce8] sm:$0xff]
    %v553 = vld [vmem:[#allocation2 + $0xcf0] sm:$0xff]
    %v554 = vld [vmem:[#allocation2 + $0xcf8] sm:$0xff]
    %v555 = vld [vmem:[#allocation2 + $0xd00] sm:$0xff]
    %v556 = vld [vmem:[#allocation2 + $0xd08] sm:$0xff]
    %v557 = vld [vmem:[#allocation2 + $0xd10] sm:$0xff]
    %v558 = vld [vmem:[#allocation2 + $0xd18] sm:$0xff]
    %v559 = vld [vmem:[#allocation2 + $0xd20] sm:$0xff]
    %v560 = vld [vmem:[#allocation2 + $0xd28] sm:$0xff]
    %v561 = vld [vmem:[#allocation2 + $0xd30] sm:$0xff]
    %v562 = vld [vmem:[#allocation2 + $0xd38] sm:$0xff]
    %v563 = vld [vmem:[#allocation2 + $0xd40] sm:$0xff]
    %v564 = vld [vmem:[#allocation2 + $0xd48] sm:$0xff]
    %v565 = vld [vmem:[#allocation2 + $0xd50] sm:$0xff]
    %v566 = vld [vmem:[#allocation2 + $0xd58] sm:$0xff]
    %v567 = vld [vmem:[#allocation2 + $0xd60] sm:$0xff]
    %v568 = vld [vmem:[#allocation2 + $0xd68] sm:$0xff]
    %v569 = vld [vmem:[#allocation2 + $0xd70] sm:$0xff]
    %v570 = vld [vmem:[#allocation2 + $0xd78] sm:$0xff]
    %v571 = vld [vmem:[#allocation2 + $0xd80] sm:$0xff]
    %v572 = vld [vmem:[#allocation2 + $0xd88] sm:$0xff]
    %v573 = vld [vmem:[#allocation2 + $0xd90] sm:$0xff]
    %v574 = vld [vmem:[#allocation2 + $0xd98] sm:$0xff]
    %v575 = vld [vmem:[#allocation2 + $0xda0] sm:$0xff]
    %v576 = vld [vmem:[#allocation2 + $0xda8] sm:$0xff]
    %v577 = vld [vmem:[#allocation2 + $0xdb0] sm:$0xff]
    %v578 = vld [vmem:[#allocation2 + $0xdb8] sm:$0xff]
    %v579 = vld [vmem:[#allocation2 + $0xdc0] sm:$0xff]
    %v580 = vld [vmem:[#allocation2 + $0xdc8] sm:$0xff]
    %v581 = vld [vmem:[#allocation2 + $0xdd0] sm:$0xff]
    %v582 = vld [vmem:[#allocation2 + $0xdd8] sm:$0xff]
    %v583 = vld [vmem:[#allocation2 + $0xde0] sm:$0xff]
    %v584 = vld [vmem:[#allocation2 + $0xde8] sm:$0xff]
    %v585 = vld [vmem:[#allocation2 + $0xdf0] sm:$0xff]
    %v586 = vld [vmem:[#allocation2 + $0xdf8] sm:$0xff]
    %v587 = vld [vmem:[#allocation2 + $0xe00] sm:$0xff]
    %v588 = vld [vmem:[#allocation2 + $0xe08] sm:$0xff]
    %v589 = vld [vmem:[#allocation2 + $0xe10] sm:$0xff]
    %v590 = vld [vmem:[#allocation2 + $0xe18] sm:$0xff]
    %v591 = vld [vmem:[#allocation2 + $0xe20] sm:$0xff]
    %v592 = vld [vmem:[#allocation2 + $0xe28] sm:$0xff]
    %v593 = vld [vmem:[#allocation2 + $0xe30] sm:$0xff]
    %v594 = vld [vmem:[#allocation2 + $0xe38] sm:$0xff]
    %v595 = vld [vmem:[#allocation2 + $0xe40] sm:$0xff]
    %v596 = vld [vmem:[#allocation2 + $0xe48] sm:$0xff]
    %v597 = vld [vmem:[#allocation2 + $0xe50] sm:$0xff]
    %v598 = vld [vmem:[#allocation2 + $0xe58] sm:$0xff]
    %v599 = vld [vmem:[#allocation2 + $0xe60] sm:$0xff]
    %v600 = vld [vmem:[#allocation2 + $0xe68] sm:$0xff]
    %v601 = vld [vmem:[#allocation2 + $0xe70] sm:$0xff]
    %v602 = vld [vmem:[#allocation2 + $0xe78] sm:$0xff]
    %v603 = vld [vmem:[#allocation2 + $0xe80] sm:$0xff]
    %v604 = vld [vmem:[#allocation2 + $0xe88] sm:$0xff]
    %v605 = vld [vmem:[#allocation2 + $0xe90] sm:$0xff]
    %v606 = vld [vmem:[#allocation2 + $0xe98] sm:$0xff]
    %v607 = vld [vmem:[#allocation2 + $0xea0] sm:$0xff]
    %v608 = vld [vmem:[#allocation2 + $0xea8] sm:$0xff]
    %v609 = vld [vmem:[#allocation2 + $0xeb0] sm:$0xff]
    %v610 = vld [vmem:[#allocation2 + $0xeb8] sm:$0xff]
    %v611 = vld [vmem:[#allocation2 + $0xec0] sm:$0xff]
    %v612 = vld [vmem:[#allocation2 + $0xec8] sm:$0xff]
    %v613 = vld [vmem:[#allocation2 + $0xed0] sm:$0xff]
    %v614 = vld [vmem:[#allocation2 + $0xed8] sm:$0xff]
    %v615 = vld [vmem:[#allocation2 + $0xee0] sm:$0xff]
    %v616 = vld [vmem:[#allocation2 + $0xee8] sm:$0xff]
    %v617 = vld [vmem:[#allocation2 + $0xef0] sm:$0xff]
    %v618 = vld [vmem:[#allocation2 + $0xef8] sm:$0xff]
    %v619 = vld [vmem:[#allocation2 + $0xf00] sm:$0xff]
    %v620 = vld [vmem:[#allocation2 + $0xf08] sm:$0xff]
    %v621 = vld [vmem:[#allocation2 + $0xf10] sm:$0xff]
    %v622 = vld [vmem:[#allocation2 + $0xf18] sm:$0xff]
    %v623 = vld [vmem:[#allocation2 + $0xf20] sm:$0xff]
    %v624 = vld [vmem:[#allocation2 + $0xf28] sm:$0xff]
    %v625 = vld [vmem:[#allocation2 + $0xf30] sm:$0xff]
    %v626 = vld [vmem:[#allocation2 + $0xf38] sm:$0xff]
    %v627 = vld [vmem:[#allocation2 + $0xf40] sm:$0xff]
    %v628 = vld [vmem:[#allocation2 + $0xf48] sm:$0xff]
    %v629 = vld [vmem:[#allocation2 + $0xf50] sm:$0xff]
    %v630 = vld [vmem:[#allocation2 + $0xf58] sm:$0xff]
    %v631 = vld [vmem:[#allocation2 + $0xf60] sm:$0xff]
    %v632 = vld [vmem:[#allocation2 + $0xf68] sm:$0xff]
    %v633 = vld [vmem:[#allocation2 + $0xf70] sm:$0xff]
    %v634 = vld [vmem:[#allocation2 + $0xf78] sm:$0xff]
    %v635 = vld [vmem:[#allocation2 + $0xf80] sm:$0xff]
    %v636 = vld [vmem:[#allocation2 + $0xf88] sm:$0xff]
    %v637 = vld [vmem:[#allocation2 + $0xf90] sm:$0xff]
    %v638 = vld [vmem:[#allocation2 + $0xf98] sm:$0xff]
    %v639 = vld [vmem:[#allocation2 + $0xfa0] sm:$0xff]
    %v640 = vld [vmem:[#allocation2 + $0xfa8] sm:$0xff]
    %v641 = vld [vmem:[#allocation2 + $0xfb0] sm:$0xff]
    %v642 = vld [vmem:[#allocation2 + $0xfb8] sm:$0xff]
    %v643 = vld [vmem:[#allocation2 + $0xfc0] sm:$0xff]
    %v644 = vld [vmem:[#allocation2 + $0xfc8] sm:$0xff]
    %v645 = vld [vmem:[#allocation2 + $0xfd0] sm:$0xff]
    %v646 = vld [vmem:[#allocation2 + $0xfd8] sm:$0xff]
    %v647 = vld [vmem:[#allocation2 + $0xfe0] sm:$0xff]
    %v648 = vld [vmem:[#allocation2 + $0xfe8] sm:$0xff]
    %v649 = vld [vmem:[#allocation2 + $0xff0] sm:$0xff]
    %v650 = vld [vmem:[#allocation2 + $0xff8] sm:$0xff]
    %651 = vmatpush.msra.mxu0 %v199
    %652 = vmatpush.msra.mxu0 %v195
    %653 = vmatpush.msra.mxu0 %v191
    %654 = vmatpush.msra.mxu0 %v187
    %655 = vmatpush.msra.mxu0 %v183
    %656 = vmatpush.msra.mxu0 %v179
    %657 = vmatpush.msra.mxu0 %v175
    %658 = vmatpush.msra.mxu0 %v171
    %659 = vmatpush.msra.mxu0 %v167
    %660 = vmatpush.msra.mxu0 %v163
    %661 = vmatpush.msra.mxu0 %v159
    %662 = vmatpush.msra.mxu0 %v155
    %663 = vmatpush.msra.mxu0 %v151
    %664 = vmatpush.msra.mxu0 %v147
    %665 = vmatpush.msra.mxu0 %v143
    %666 = vmatpush.msra.mxu0 %v139
    %667 = vmatmul.f32.gmra.mxu0 %v131
    %v668 = vpop.f32.mrf.mxu0
    %v669 = vadd.f32 0.0, %v668
    %670 = vdwg.mxu0
    %671 = vmatpush.msra.mxu0 %v263
    %672 = vmatpush.msra.mxu0 %v259
    %673 = vmatpush.msra.mxu0 %v255
    %674 = vmatpush.msra.mxu0 %v251
    %675 = vmatpush.msra.mxu0 %v247
    %676 = vmatpush.msra.mxu0 %v243
    %677 = vmatpush.msra.mxu0 %v239
    %678 = vmatpush.msra.mxu0 %v235
    %679 = vmatpush.msra.mxu0 %v231
    %680 = vmatpush.msra.mxu0 %v227
    %681 = vmatpush.msra.mxu0 %v223
    %682 = vmatpush.msra.mxu0 %v219
    %683 = vmatpush.msra.mxu0 %v215
    %684 = vmatpush.msra.mxu0 %v211
    %685 = vmatpush.msra.mxu0 %v207
    %686 = vmatpush.msra.mxu0 %v203
    %687 = vmatmul.f32.gmra.mxu0 %v132
    %v688 = vpop.f32.mrf.mxu0
    %v689 = vadd.f32 %v669, %v688
    %690 = vdwg.mxu0
    %691 = vmatpush.msra.mxu0 %v327
    %692 = vmatpush.msra.mxu0 %v323
    %693 = vmatpush.msra.mxu0 %v319
    %694 = vmatpush.msra.mxu0 %v315
    %695 = vmatpush.msra.mxu0 %v311
    %696 = vmatpush.msra.mxu0 %v307
    %697 = vmatpush.msra.mxu0 %v303
    %698 = vmatpush.msra.mxu0 %v299
    %699 = vmatpush.msra.mxu0 %v295
    %700 = vmatpush.msra.mxu0 %v291
    %701 = vmatpush.msra.mxu0 %v287
    %702 = vmatpush.msra.mxu0 %v283
    %703 = vmatpush.msra.mxu0 %v279
    %704 = vmatpush.msra.mxu0 %v275
    %705 = vmatpush.msra.mxu0 %v271
    %706 = vmatpush.msra.mxu0 %v267
    %707 = vmatmul.f32.gmra.mxu0 %v133
    %v708 = vpop.f32.mrf.mxu0
    %v709 = vadd.f32 %v689, %v708
    %710 = vdwg.mxu0
    %711 = vmatpush.msra.mxu0 %v391
    %712 = vmatpush.msra.mxu0 %v387
    %713 = vmatpush.msra.mxu0 %v383
    %714 = vmatpush.msra.mxu0 %v379
    %715 = vmatpush.msra.mxu0 %v375
    %716 = vmatpush.msra.mxu0 %v371
    %717 = vmatpush.msra.mxu0 %v367
    %718 = vmatpush.msra.mxu0 %v363
    %719 = vmatpush.msra.mxu0 %v359
    %720 = vmatpush.msra.mxu0 %v355
    %721 = vmatpush.msra.mxu0 %v351
    %722 = vmatpush.msra.mxu0 %v347
    %723 = vmatpush.msra.mxu0 %v343
    %724 = vmatpush.msra.mxu0 %v339
    %725 = vmatpush.msra.mxu0 %v335
    %726 = vmatpush.msra.mxu0 %v331
    %727 = vmatmul.f32.gmra.mxu0 %v134
    %v728 = vpop.f32.mrf.mxu0
    %v729 = vadd.f32 %v709, %v728
    %730 = vdwg.mxu0
    %731 = vmatpush.msra.mxu0 %v455
    %732 = vmatpush.msra.mxu0 %v451
    %733 = vmatpush.msra.mxu0 %v447
    %734 = vmatpush.msra.mxu0 %v443
    %735 = vmatpush.msra.mxu0 %v439
    %736 = vmatpush.msra.mxu0 %v435
    %737 = vmatpush.msra.mxu0 %v431
    %738 = vmatpush.msra.mxu0 %v427
    %739 = vmatpush.msra.mxu0 %v423
    %740 = vmatpush.msra.mxu0 %v419
    %741 = vmatpush.msra.mxu0 %v415
    %742 = vmatpush.msra.mxu0 %v411
    %743 = vmatpush.msra.mxu0 %v407
    %744 = vmatpush.msra.mxu0 %v403
    %745 = vmatpush.msra.mxu0 %v399
    %746 = vmatpush.msra.mxu0 %v395
    %747 = vmatmul.f32.gmra.mxu0 %v135
    %v748 = vpop.f32.mrf.mxu0
    %v749 = vadd.f32 %v729, %v748
    %750 = vdwg.mxu0
    %751 = vmatpush.msra.mxu0 %v519
    %752 = vmatpush.msra.mxu0 %v515
    %753 = vmatpush.msra.mxu0 %v511
    %754 = vmatpush.msra.mxu0 %v507
    %755 = vmatpush.msra.mxu0 %v503
    %756 = vmatpush.msra.mxu0 %v499
    %757 = vmatpush.msra.mxu0 %v495
    %758 = vmatpush.msra.mxu0 %v491
    %759 = vmatpush.msra.mxu0 %v487
    %760 = vmatpush.msra.mxu0 %v483
    %761 = vmatpush.msra.mxu0 %v479
    %762 = vmatpush.msra.mxu0 %v475
    %763 = vmatpush.msra.mxu0 %v471
    %764 = vmatpush.msra.mxu0 %v467
    %765 = vmatpush.msra.mxu0 %v463
    %766 = vmatpush.msra.mxu0 %v459
    %767 = vmatmul.f32.gmra.mxu0 %v136
    %v768 = vpop.f32.mrf.mxu0
    %v769 = vadd.f32 %v749, %v768
    %770 = vdwg.mxu0
    %771 = vmatpush.msra.mxu0 %v583
    %772 = vmatpush.msra.mxu0 %v579
    %773 = vmatpush.msra.mxu0 %v575
    %774 = vmatpush.msra.mxu0 %v571
    %775 = vmatpush.msra.mxu0 %v567
    %776 = vmatpush.msra.mxu0 %v563
    %777 = vmatpush.msra.mxu0 %v559
    %778 = vmatpush.msra.mxu0 %v555
    %779 = vmatpush.msra.mxu0 %v551
    %780 = vmatpush.msra.mxu0 %v547
    %781 = vmatpush.msra.mxu0 %v543
    %782 = vmatpush.msra.mxu0 %v539
    %783 = vmatpush.msra.mxu0 %v535
    %784 = vmatpush.msra.mxu0 %v531
    %785 = vmatpush.msra.mxu0 %v527
    %786 = vmatpush.msra.mxu0 %v523
    %787 = vmatmul.f32.gmra.mxu0 %v137
    %v788 = vpop.f32.mrf.mxu0
    %v789 = vadd.f32 %v769, %v788
    %790 = vdwg.mxu0
    %791 = vmatpush.msra.mxu0 %v647
    %792 = vmatpush.msra.mxu0 %v643
    %793 = vmatpush.msra.mxu0 %v639
    %794 = vmatpush.msra.mxu0 %v635
    %795 = vmatpush.msra.mxu0 %v631
    %796 = vmatpush.msra.mxu0 %v627
    %797 = vmatpush.msra.mxu0 %v623
    %798 = vmatpush.msra.mxu0 %v619
    %799 = vmatpush.msra.mxu0 %v615
    %800 = vmatpush.msra.mxu0 %v611
    %801 = vmatpush.msra.mxu0 %v607
    %802 = vmatpush.msra.mxu0 %v603
    %803 = vmatpush.msra.mxu0 %v599
    %804 = vmatpush.msra.mxu0 %v595
    %805 = vmatpush.msra.mxu0 %v591
    %806 = vmatpush.msra.mxu0 %v587
    %807 = vmatmul.f32.gmra.mxu0 %v138
    %v808 = vpop.f32.mrf.mxu0
    %v809 = vadd.f32 %v789, %v808
    %810 = vdwg.mxu0
    %811 = vmatpush.msra.mxu0 %v200
    %812 = vmatpush.msra.mxu0 %v196
    %813 = vmatpush.msra.mxu0 %v192
    %814 = vmatpush.msra.mxu0 %v188
    %815 = vmatpush.msra.mxu0 %v184
    %816 = vmatpush.msra.mxu0 %v180
    %817 = vmatpush.msra.mxu0 %v176
    %818 = vmatpush.msra.mxu0 %v172
    %819 = vmatpush.msra.mxu0 %v168
    %820 = vmatpush.msra.mxu0 %v164
    %821 = vmatpush.msra.mxu0 %v160
    %822 = vmatpush.msra.mxu0 %v156
    %823 = vmatpush.msra.mxu0 %v152
    %824 = vmatpush.msra.mxu0 %v148
    %825 = vmatpush.msra.mxu0 %v144
    %826 = vmatpush.msra.mxu0 %v140
    %827 = vmatmul.f32.gmra.mxu0 %v131
    %v828 = vpop.f32.mrf.mxu0
    %v829 = vadd.f32 0.0, %v828
    %830 = vdwg.mxu0
    %831 = vmatpush.msra.mxu0 %v264
    %832 = vmatpush.msra.mxu0 %v260
    %833 = vmatpush.msra.mxu0 %v256
    %834 = vmatpush.msra.mxu0 %v252
    %835 = vmatpush.msra.mxu0 %v248
    %836 = vmatpush.msra.mxu0 %v244
    %837 = vmatpush.msra.mxu0 %v240
    %838 = vmatpush.msra.mxu0 %v236
    %839 = vmatpush.msra.mxu0 %v232
    %840 = vmatpush.msra.mxu0 %v228
    %841 = vmatpush.msra.mxu0 %v224
    %842 = vmatpush.msra.mxu0 %v220
    %843 = vmatpush.msra.mxu0 %v216
    %844 = vmatpush.msra.mxu0 %v212
    %845 = vmatpush.msra.mxu0 %v208
    %846 = vmatpush.msra.mxu0 %v204
    %847 = vmatmul.f32.gmra.mxu0 %v132
    %v848 = vpop.f32.mrf.mxu0
    %v849 = vadd.f32 %v829, %v848
    %850 = vdwg.mxu0
    %851 = vmatpush.msra.mxu0 %v328
    %852 = vmatpush.msra.mxu0 %v324
    %853 = vmatpush.msra.mxu0 %v320
    %854 = vmatpush.msra.mxu0 %v316
    %855 = vmatpush.msra.mxu0 %v312
    %856 = vmatpush.msra.mxu0 %v308
    %857 = vmatpush.msra.mxu0 %v304
    %858 = vmatpush.msra.mxu0 %v300
    %859 = vmatpush.msra.mxu0 %v296
    %860 = vmatpush.msra.mxu0 %v292
    %861 = vmatpush.msra.mxu0 %v288
    %862 = vmatpush.msra.mxu0 %v284
    %863 = vmatpush.msra.mxu0 %v280
    %864 = vmatpush.msra.mxu0 %v276
    %865 = vmatpush.msra.mxu0 %v272
    %866 = vmatpush.msra.mxu0 %v268
    %867 = vmatmul.f32.gmra.mxu0 %v133
    %v868 = vpop.f32.mrf.mxu0
    %v869 = vadd.f32 %v849, %v868
    %870 = vdwg.mxu0
    %871 = vmatpush.msra.mxu0 %v392
    %872 = vmatpush.msra.mxu0 %v388
    %873 = vmatpush.msra.mxu0 %v384
    %874 = vmatpush.msra.mxu0 %v380
    %875 = vmatpush.msra.mxu0 %v376
    %876 = vmatpush.msra.mxu0 %v372
    %877 = vmatpush.msra.mxu0 %v368
    %878 = vmatpush.msra.mxu0 %v364
    %879 = vmatpush.msra.mxu0 %v360
    %880 = vmatpush.msra.mxu0 %v356
    %881 = vmatpush.msra.mxu0 %v352
    %882 = vmatpush.msra.mxu0 %v348
    %883 = vmatpush.msra.mxu0 %v344
    %884 = vmatpush.msra.mxu0 %v340
    %885 = vmatpush.msra.mxu0 %v336
    %886 = vmatpush.msra.mxu0 %v332
    %887 = vmatmul.f32.gmra.mxu0 %v134
    %v888 = vpop.f32.mrf.mxu0
    %v889 = vadd.f32 %v869, %v888
    %890 = vdwg.mxu0
    %891 = vmatpush.msra.mxu0 %v456
    %892 = vmatpush.msra.mxu0 %v452
    %893 = vmatpush.msra.mxu0 %v448
    %894 = vmatpush.msra.mxu0 %v444
    %895 = vmatpush.msra.mxu0 %v440
    %896 = vmatpush.msra.mxu0 %v436
    %897 = vmatpush.msra.mxu0 %v432
    %898 = vmatpush.msra.mxu0 %v428
    %899 = vmatpush.msra.mxu0 %v424
    %900 = vmatpush.msra.mxu0 %v420
    %901 = vmatpush.msra.mxu0 %v416
    %902 = vmatpush.msra.mxu0 %v412
    %903 = vmatpush.msra.mxu0 %v408
    %904 = vmatpush.msra.mxu0 %v404
    %905 = vmatpush.msra.mxu0 %v400
    %906 = vmatpush.msra.mxu0 %v396
    %907 = vmatmul.f32.gmra.mxu0 %v135
    %v908 = vpop.f32.mrf.mxu0
    %v909 = vadd.f32 %v889, %v908
    %910 = vdwg.mxu0
    %911 = vmatpush.msra.mxu0 %v520
    %912 = vmatpush.msra.mxu0 %v516
    %913 = vmatpush.msra.mxu0 %v512
    %914 = vmatpush.msra.mxu0 %v508
    %915 = vmatpush.msra.mxu0 %v504
    %916 = vmatpush.msra.mxu0 %v500
    %917 = vmatpush.msra.mxu0 %v496
    %918 = vmatpush.msra.mxu0 %v492
    %919 = vmatpush.msra.mxu0 %v488
    %920 = vmatpush.msra.mxu0 %v484
    %921 = vmatpush.msra.mxu0 %v480
    %922 = vmatpush.msra.mxu0 %v476
    %923 = vmatpush.msra.mxu0 %v472
    %924 = vmatpush.msra.mxu0 %v468
    %925 = vmatpush.msra.mxu0 %v464
    %926 = vmatpush.msra.mxu0 %v460
    %927 = vmatmul.f32.gmra.mxu0 %v136
    %v928 = vpop.f32.mrf.mxu0
    %v929 = vadd.f32 %v909, %v928
    %930 = vdwg.mxu0
    %931 = vmatpush.msra.mxu0 %v584
    %932 = vmatpush.msra.mxu0 %v580
    %933 = vmatpush.msra.mxu0 %v576
    %934 = vmatpush.msra.mxu0 %v572
    %935 = vmatpush.msra.mxu0 %v568
    %936 = vmatpush.msra.mxu0 %v564
    %937 = vmatpush.msra.mxu0 %v560
    %938 = vmatpush.msra.mxu0 %v556
    %939 = vmatpush.msra.mxu0 %v552
    %940 = vmatpush.msra.mxu0 %v548
    %941 = vmatpush.msra.mxu0 %v544
    %942 = vmatpush.msra.mxu0 %v540
    %943 = vmatpush.msra.mxu0 %v536
    %944 = vmatpush.msra.mxu0 %v532
    %945 = vmatpush.msra.mxu0 %v528
    %946 = vmatpush.msra.mxu0 %v524
    %947 = vmatmul.f32.gmra.mxu0 %v137
    %v948 = vpop.f32.mrf.mxu0
    %v949 = vadd.f32 %v929, %v948
    %950 = vdwg.mxu0
    %951 = vmatpush.msra.mxu0 %v648
    %952 = vmatpush.msra.mxu0 %v644
    %953 = vmatpush.msra.mxu0 %v640
    %954 = vmatpush.msra.mxu0 %v636
    %955 = vmatpush.msra.mxu0 %v632
    %956 = vmatpush.msra.mxu0 %v628
    %957 = vmatpush.msra.mxu0 %v624
    %958 = vmatpush.msra.mxu0 %v620
    %959 = vmatpush.msra.mxu0 %v616
    %960 = vmatpush.msra.mxu0 %v612
    %961 = vmatpush.msra.mxu0 %v608
    %962 = vmatpush.msra.mxu0 %v604
    %963 = vmatpush.msra.mxu0 %v600
    %964 = vmatpush.msra.mxu0 %v596
    %965 = vmatpush.msra.mxu0 %v592
    %966 = vmatpush.msra.mxu0 %v588
    %967 = vmatmul.f32.gmra.mxu0 %v138
    %v968 = vpop.f32.mrf.mxu0
    %v969 = vadd.f32 %v949, %v968
    %970 = vdwg.mxu0
    %971 = vmatpush.msra.mxu0 %v201
    %972 = vmatpush.msra.mxu0 %v197
    %973 = vmatpush.msra.mxu0 %v193
    %974 = vmatpush.msra.mxu0 %v189
    %975 = vmatpush.msra.mxu0 %v185
    %976 = vmatpush.msra.mxu0 %v181
    %977 = vmatpush.msra.mxu0 %v177
    %978 = vmatpush.msra.mxu0 %v173
    %979 = vmatpush.msra.mxu0 %v169
    %980 = vmatpush.msra.mxu0 %v165
    %981 = vmatpush.msra.mxu0 %v161
    %982 = vmatpush.msra.mxu0 %v157
    %983 = vmatpush.msra.mxu0 %v153
    %984 = vmatpush.msra.mxu0 %v149
    %985 = vmatpush.msra.mxu0 %v145
    %986 = vmatpush.msra.mxu0 %v141
    %987 = vmatmul.f32.gmra.mxu0 %v131
    %v988 = vpop.f32.mrf.mxu0
    %v989 = vadd.f32 0.0, %v988
    %990 = vdwg.mxu0
    %991 = vmatpush.msra.mxu0 %v265
    %992 = vmatpush.msra.mxu0 %v261
    %993 = vmatpush.msra.mxu0 %v257
    %994 = vmatpush.msra.mxu0 %v253
    %995 = vmatpush.msra.mxu0 %v249
    %996 = vmatpush.msra.mxu0 %v245
    %997 = vmatpush.msra.mxu0 %v241
    %998 = vmatpush.msra.mxu0 %v237
    %999 = vmatpush.msra.mxu0 %v233
    %1000 = vmatpush.msra.mxu0 %v229
    %1001 = vmatpush.msra.mxu0 %v225
    %1002 = vmatpush.msra.mxu0 %v221
    %1003 = vmatpush.msra.mxu0 %v217
    %1004 = vmatpush.msra.mxu0 %v213
    %1005 = vmatpush.msra.mxu0 %v209
    %1006 = vmatpush.msra.mxu0 %v205
    %1007 = vmatmul.f32.gmra.mxu0 %v132
    %v1008 = vpop.f32.mrf.mxu0
    %v1009 = vadd.f32 %v989, %v1008
    %1010 = vdwg.mxu0
    %1011 = vmatpush.msra.mxu0 %v329
    %1012 = vmatpush.msra.mxu0 %v325
    %1013 = vmatpush.msra.mxu0 %v321
    %1014 = vmatpush.msra.mxu0 %v317
    %1015 = vmatpush.msra.mxu0 %v313
    %1016 = vmatpush.msra.mxu0 %v309
    %1017 = vmatpush.msra.mxu0 %v305
    %1018 = vmatpush.msra.mxu0 %v301
    %1019 = vmatpush.msra.mxu0 %v297
    %1020 = vmatpush.msra.mxu0 %v293
    %1021 = vmatpush.msra.mxu0 %v289
    %1022 = vmatpush.msra.mxu0 %v285
    %1023 = vmatpush.msra.mxu0 %v281
    %1024 = vmatpush.msra.mxu0 %v277
    %1025 = vmatpush.msra.mxu0 %v273
    %1026 = vmatpush.msra.mxu0 %v269
    %1027 = vmatmul.f32.gmra.mxu0 %v133
    %v1028 = vpop.f32.mrf.mxu0
    %v1029 = vadd.f32 %v1009, %v1028
    %1030 = vdwg.mxu0
    %1031 = vmatpush.msra.mxu0 %v393
    %1032 = vmatpush.msra.mxu0 %v389
    %1033 = vmatpush.msra.mxu0 %v385
    %1034 = vmatpush.msra.mxu0 %v381
    %1035 = vmatpush.msra.mxu0 %v377
    %1036 = vmatpush.msra.mxu0 %v373
    %1037 = vmatpush.msra.mxu0 %v369
    %1038 = vmatpush.msra.mxu0 %v365
    %1039 = vmatpush.msra.mxu0 %v361
    %1040 = vmatpush.msra.mxu0 %v357
    %1041 = vmatpush.msra.mxu0 %v353
    %1042 = vmatpush.msra.mxu0 %v349
    %1043 = vmatpush.msra.mxu0 %v345
    %1044 = vmatpush.msra.mxu0 %v341
    %1045 = vmatpush.msra.mxu0 %v337
    %1046 = vmatpush.msra.mxu0 %v333
    %1047 = vmatmul.f32.gmra.mxu0 %v134
    %v1048 = vpop.f32.mrf.mxu0
    %v1049 = vadd.f32 %v1029, %v1048
    %1050 = vdwg.mxu0
    %1051 = vmatpush.msra.mxu0 %v457
    %1052 = vmatpush.msra.mxu0 %v453
    %1053 = vmatpush.msra.mxu0 %v449
    %1054 = vmatpush.msra.mxu0 %v445
    %1055 = vmatpush.msra.mxu0 %v441
    %1056 = vmatpush.msra.mxu0 %v437
    %1057 = vmatpush.msra.mxu0 %v433
    %1058 = vmatpush.msra.mxu0 %v429
    %1059 = vmatpush.msra.mxu0 %v425
    %1060 = vmatpush.msra.mxu0 %v421
    %1061 = vmatpush.msra.mxu0 %v417
    %1062 = vmatpush.msra.mxu0 %v413
    %1063 = vmatpush.msra.mxu0 %v409
    %1064 = vmatpush.msra.mxu0 %v405
    %1065 = vmatpush.msra.mxu0 %v401
    %1066 = vmatpush.msra.mxu0 %v397
    %1067 = vmatmul.f32.gmra.mxu0 %v135
    %v1068 = vpop.f32.mrf.mxu0
    %v1069 = vadd.f32 %v1049, %v1068
    %1070 = vdwg.mxu0
    %1071 = vmatpush.msra.mxu0 %v521
    %1072 = vmatpush.msra.mxu0 %v517
    %1073 = vmatpush.msra.mxu0 %v513
    %1074 = vmatpush.msra.mxu0 %v509
    %1075 = vmatpush.msra.mxu0 %v505
    %1076 = vmatpush.msra.mxu0 %v501
    %1077 = vmatpush.msra.mxu0 %v497
    %1078 = vmatpush.msra.mxu0 %v493
    %1079 = vmatpush.msra.mxu0 %v489
    %1080 = vmatpush.msra.mxu0 %v485
    %1081 = vmatpush.msra.mxu0 %v481
    %1082 = vmatpush.msra.mxu0 %v477
    %1083 = vmatpush.msra.mxu0 %v473
    %1084 = vmatpush.msra.mxu0 %v469
    %1085 = vmatpush.msra.mxu0 %v465
    %1086 = vmatpush.msra.mxu0 %v461
    %1087 = vmatmul.f32.gmra.mxu0 %v136
    %v1088 = vpop.f32.mrf.mxu0
    %v1089 = vadd.f32 %v1069, %v1088
    %1090 = vdwg.mxu0
    %1091 = vmatpush.msra.mxu0 %v585
    %1092 = vmatpush.msra.mxu0 %v581
    %1093 = vmatpush.msra.mxu0 %v577
    %1094 = vmatpush.msra.mxu0 %v573
    %1095 = vmatpush.msra.mxu0 %v569
    %1096 = vmatpush.msra.mxu0 %v565
    %1097 = vmatpush.msra.mxu0 %v561
    %1098 = vmatpush.msra.mxu0 %v557
    %1099 = vmatpush.msra.mxu0 %v553
    %1100 = vmatpush.msra.mxu0 %v549
    %1101 = vmatpush.msra.mxu0 %v545
    %1102 = vmatpush.msra.mxu0 %v541
    %1103 = vmatpush.msra.mxu0 %v537
    %1104 = vmatpush.msra.mxu0 %v533
    %1105 = vmatpush.msra.mxu0 %v529
    %1106 = vmatpush.msra.mxu0 %v525
    %1107 = vmatmul.f32.gmra.mxu0 %v137
    %v1108 = vpop.f32.mrf.mxu0
    %v1109 = vadd.f32 %v1089, %v1108
    %1110 = vdwg.mxu0
    %1111 = vmatpush.msra.mxu0 %v649
    %1112 = vmatpush.msra.mxu0 %v645
    %1113 = vmatpush.msra.mxu0 %v641
    %1114 = vmatpush.msra.mxu0 %v637
    %1115 = vmatpush.msra.mxu0 %v633
    %1116 = vmatpush.msra.mxu0 %v629
    %1117 = vmatpush.msra.mxu0 %v625
    %1118 = vmatpush.msra.mxu0 %v621
    %1119 = vmatpush.msra.mxu0 %v617
    %1120 = vmatpush.msra.mxu0 %v613
    %1121 = vmatpush.msra.mxu0 %v609
    %1122 = vmatpush.msra.mxu0 %v605
    %1123 = vmatpush.msra.mxu0 %v601
    %1124 = vmatpush.msra.mxu0 %v597
    %1125 = vmatpush.msra.mxu0 %v593
    %1126 = vmatpush.msra.mxu0 %v589
    %1127 = vmatmul.f32.gmra.mxu0 %v138
    %v1128 = vpop.f32.mrf.mxu0
    %v1129 = vadd.f32 %v1109, %v1128
    %1130 = vdwg.mxu0
    %1131 = vmatpush.msra.mxu0 %v202
    %1132 = vmatpush.msra.mxu0 %v198
    %1133 = vmatpush.msra.mxu0 %v194
    %1134 = vmatpush.msra.mxu0 %v190
    %1135 = vmatpush.msra.mxu0 %v186
    %1136 = vmatpush.msra.mxu0 %v182
    %1137 = vmatpush.msra.mxu0 %v178
    %1138 = vmatpush.msra.mxu0 %v174
    %1139 = vmatpush.msra.mxu0 %v170
    %1140 = vmatpush.msra.mxu0 %v166
    %1141 = vmatpush.msra.mxu0 %v162
    %1142 = vmatpush.msra.mxu0 %v158
    %1143 = vmatpush.msra.mxu0 %v154
    %1144 = vmatpush.msra.mxu0 %v150
    %1145 = vmatpush.msra.mxu0 %v146
    %1146 = vmatpush.msra.mxu0 %v142
    %1147 = vmatmul.f32.gmra.mxu0 %v131
    %v1148 = vpop.f32.mrf.mxu0
    %v1149 = vadd.f32 0.0, %v1148
    %1150 = vdwg.mxu0
    %1151 = vmatpush.msra.mxu0 %v266
    %1152 = vmatpush.msra.mxu0 %v262
    %1153 = vmatpush.msra.mxu0 %v258
    %1154 = vmatpush.msra.mxu0 %v254
    %1155 = vmatpush.msra.mxu0 %v250
    %1156 = vmatpush.msra.mxu0 %v246
    %1157 = vmatpush.msra.mxu0 %v242
    %1158 = vmatpush.msra.mxu0 %v238
    %1159 = vmatpush.msra.mxu0 %v234
    %1160 = vmatpush.msra.mxu0 %v230
    %1161 = vmatpush.msra.mxu0 %v226
    %1162 = vmatpush.msra.mxu0 %v222
    %1163 = vmatpush.msra.mxu0 %v218
    %1164 = vmatpush.msra.mxu0 %v214
    %1165 = vmatpush.msra.mxu0 %v210
    %1166 = vmatpush.msra.mxu0 %v206
    %1167 = vmatmul.f32.gmra.mxu0 %v132
    %v1168 = vpop.f32.mrf.mxu0
    %v1169 = vadd.f32 %v1149, %v1168
    %1170 = vdwg.mxu0
    %1171 = vmatpush.msra.mxu0 %v330
    %1172 = vmatpush.msra.mxu0 %v326
    %1173 = vmatpush.msra.mxu0 %v322
    %1174 = vmatpush.msra.mxu0 %v318
    %1175 = vmatpush.msra.mxu0 %v314
    %1176 = vmatpush.msra.mxu0 %v310
    %1177 = vmatpush.msra.mxu0 %v306
    %1178 = vmatpush.msra.mxu0 %v302
    %1179 = vmatpush.msra.mxu0 %v298
    %1180 = vmatpush.msra.mxu0 %v294
    %1181 = vmatpush.msra.mxu0 %v290
    %1182 = vmatpush.msra.mxu0 %v286
    %1183 = vmatpush.msra.mxu0 %v282
    %1184 = vmatpush.msra.mxu0 %v278
    %1185 = vmatpush.msra.mxu0 %v274
    %1186 = vmatpush.msra.mxu0 %v270
    %1187 = vmatmul.f32.gmra.mxu0 %v133
    %v1188 = vpop.f32.mrf.mxu0
    %v1189 = vadd.f32 %v1169, %v1188
    %1190 = vdwg.mxu0
    %1191 = vmatpush.msra.mxu0 %v394
    %1192 = vmatpush.msra.mxu0 %v390
    %1193 = vmatpush.msra.mxu0 %v386
    %1194 = vmatpush.msra.mxu0 %v382
    %1195 = vmatpush.msra.mxu0 %v378
    %1196 = vmatpush.msra.mxu0 %v374
    %1197 = vmatpush.msra.mxu0 %v370
    %1198 = vmatpush.msra.mxu0 %v366
    %1199 = vmatpush.msra.mxu0 %v362
    %1200 = vmatpush.msra.mxu0 %v358
    %1201 = vmatpush.msra.mxu0 %v354
    %1202 = vmatpush.msra.mxu0 %v350
    %1203 = vmatpush.msra.mxu0 %v346
    %1204 = vmatpush.msra.mxu0 %v342
    %1205 = vmatpush.msra.mxu0 %v338
    %1206 = vmatpush.msra.mxu0 %v334
    %1207 = vmatmul.f32.gmra.mxu0 %v134
    %v1208 = vpop.f32.mrf.mxu0
    %v1209 = vadd.f32 %v1189, %v1208
    %1210 = vdwg.mxu0
    %1211 = vmatpush.msra.mxu0 %v458
    %1212 = vmatpush.msra.mxu0 %v454
    %1213 = vmatpush.msra.mxu0 %v450
    %1214 = vmatpush.msra.mxu0 %v446
    %1215 = vmatpush.msra.mxu0 %v442
    %1216 = vmatpush.msra.mxu0 %v438
    %1217 = vmatpush.msra.mxu0 %v434
    %1218 = vmatpush.msra.mxu0 %v430
    %1219 = vmatpush.msra.mxu0 %v426
    %1220 = vmatpush.msra.mxu0 %v422
    %1221 = vmatpush.msra.mxu0 %v418
    %1222 = vmatpush.msra.mxu0 %v414
    %1223 = vmatpush.msra.mxu0 %v410
    %1224 = vmatpush.msra.mxu0 %v406
    %1225 = vmatpush.msra.mxu0 %v402
    %1226 = vmatpush.msra.mxu0 %v398
    %1227 = vmatmul.f32.gmra.mxu0 %v135
    %v1228 = vpop.f32.mrf.mxu0
    %v1229 = vadd.f32 %v1209, %v1228
    %1230 = vdwg.mxu0
    %1231 = vmatpush.msra.mxu0 %v522
    %1232 = vmatpush.msra.mxu0 %v518
    %1233 = vmatpush.msra.mxu0 %v514
    %1234 = vmatpush.msra.mxu0 %v510
    %1235 = vmatpush.msra.mxu0 %v506
    %1236 = vmatpush.msra.mxu0 %v502
    %1237 = vmatpush.msra.mxu0 %v498
    %1238 = vmatpush.msra.mxu0 %v494
    %1239 = vmatpush.msra.mxu0 %v490
    %1240 = vmatpush.msra.mxu0 %v486
    %1241 = vmatpush.msra.mxu0 %v482
    %1242 = vmatpush.msra.mxu0 %v478
    %1243 = vmatpush.msra.mxu0 %v474
    %1244 = vmatpush.msra.mxu0 %v470
    %1245 = vmatpush.msra.mxu0 %v466
    %1246 = vmatpush.msra.mxu0 %v462
    %1247 = vmatmul.f32.gmra.mxu0 %v136
    %v1248 = vpop.f32.mrf.mxu0
    %v1249 = vadd.f32 %v1229, %v1248
    %1250 = vdwg.mxu0
    %1251 = vmatpush.msra.mxu0 %v586
    %1252 = vmatpush.msra.mxu0 %v582
    %1253 = vmatpush.msra.mxu0 %v578
    %1254 = vmatpush.msra.mxu0 %v574
    %1255 = vmatpush.msra.mxu0 %v570
    %1256 = vmatpush.msra.mxu0 %v566
    %1257 = vmatpush.msra.mxu0 %v562
    %1258 = vmatpush.msra.mxu0 %v558
    %1259 = vmatpush.msra.mxu0 %v554
    %1260 = vmatpush.msra.mxu0 %v550
    %1261 = vmatpush.msra.mxu0 %v546
    %1262 = vmatpush.msra.mxu0 %v542
    %1263 = vmatpush.msra.mxu0 %v538
    %1264 = vmatpush.msra.mxu0 %v534
    %1265 = vmatpush.msra.mxu0 %v530
    %1266 = vmatpush.msra.mxu0 %v526
    %1267 = vmatmul.f32.gmra.mxu0 %v137
    %v1268 = vpop.f32.mrf.mxu0
    %v1269 = vadd.f32 %v1249, %v1268
    %1270 = vdwg.mxu0
    %1271 = vmatpush.msra.mxu0 %v650
    %1272 = vmatpush.msra.mxu0 %v646
    %1273 = vmatpush.msra.mxu0 %v642
    %1274 = vmatpush.msra.mxu0 %v638
    %1275 = vmatpush.msra.mxu0 %v634
    %1276 = vmatpush.msra.mxu0 %v630
    %1277 = vmatpush.msra.mxu0 %v626
    %1278 = vmatpush.msra.mxu0 %v622
    %1279 = vmatpush.msra.mxu0 %v618
    %1280 = vmatpush.msra.mxu0 %v614
    %1281 = vmatpush.msra.mxu0 %v610
    %1282 = vmatpush.msra.mxu0 %v606
    %1283 = vmatpush.msra.mxu0 %v602
    %1284 = vmatpush.msra.mxu0 %v598
    %1285 = vmatpush.msra.mxu0 %v594
    %1286 = vmatpush.msra.mxu0 %v590
    %1287 = vmatmul.f32.gmra.mxu0 %v138
    %v1288 = vpop.f32.mrf.mxu0
    %v1289 = vadd.f32 %v1269, %v1288
    %1290 = vdwg.mxu0
    %v1291 = vld [vmem:[#allocation4] sm:$0xf]
    %v1293 = vperm.slane %v1291, 0
    %v1294 = vperm.slane %v1291, 1
    %v1295 = vperm.slane %v1291, 2
    %v1296 = vperm.slane %v1291, 3
    %v1301 = vmul.f32 %v809, %v1293
    %v1302 = vmul.f32 %v969, %v1294
    %v1303 = vmul.f32 %v1129, %v1295
    %v1304 = vmul.f32 %v1289, %v1296
    %v1305 = vld [vmem:[#allocation6] sm:$0xf]
    %v1307 = vperm.slane %v1305, 0
    %v1308 = vperm.slane %v1305, 1
    %v1309 = vperm.slane %v1305, 2
    %v1310 = vperm.slane %v1305, 3
    %v1315 = vadd.f32 %v1301, %v1307
    %v1316 = vadd.f32 %v1302, %v1308
    %v1317 = vadd.f32 %v1303, %v1309
    %v1318 = vadd.f32 %v1304, %v1310
    %v1319 = vmax.f32 %v1315, 0.0
    %v1320 = vmax.f32 %v1316, 0.0
    %v1321 = vmax.f32 %v1317, 0.0
    %v1322 = vmax.f32 %v1318, 0.0
    %v1323 = vld [vmem:[#allocation7] sm:$0xff]
    %v1324 = vld [vmem:[#allocation7 + $0x8] sm:$0xff]
    %v1325 = vld [vmem:[#allocation7 + $0x10] sm:$0xff]
    %v1326 = vld [vmem:[#allocation7 + $0x18] sm:$0xff]
    %v1327 = vld [vmem:[#allocation7 + $0x20] sm:$0xff]
    %v1328 = vld [vmem:[#allocation7 + $0x28] sm:$0xff]
    %v1329 = vld [vmem:[#allocation7 + $0x30] sm:$0xff]
    %v1330 = vld [vmem:[#allocation7 + $0x38] sm:$0xff]
    %v1331 = vld [vmem:[#allocation7 + $0x40] sm:$0xff]
    %v1332 = vld [vmem:[#allocation7 + $0x48] sm:$0xff]
    %v1333 = vld [vmem:[#allocation7 + $0x50] sm:$0xff]
    %v1334 = vld [vmem:[#allocation7 + $0x58] sm:$0xff]
    %v1335 = vld [vmem:[#allocation7 + $0x60] sm:$0xff]
    %v1336 = vld [vmem:[#allocation7 + $0x68] sm:$0xff]
    %v1337 = vld [vmem:[#allocation7 + $0x70] sm:$0xff]
    %v1338 = vld [vmem:[#allocation7 + $0x78] sm:$0xff]
    %v1339 = vld [vmem:[#allocation7 + $0x80] sm:$0xff]
    %v1340 = vld [vmem:[#allocation7 + $0x88] sm:$0xff]
    %v1341 = vld [vmem:[#allocation7 + $0x90] sm:$0xff]
    %v1342 = vld [vmem:[#allocation7 + $0x98] sm:$0xff]
    %v1343 = vld [vmem:[#allocation7 + $0xa0] sm:$0xff]
    %v1344 = vld [vmem:[#allocation7 + $0xa8] sm:$0xff]
    %v1345 = vld [vmem:[#allocation7 + $0xb0] sm:$0xff]
    %v1346 = vld [vmem:[#allocation7 + $0xb8] sm:$0xff]
    %v1347 = vld [vmem:[#allocation7 + $0xc0] sm:$0xff]
    %v1348 = vld [vmem:[#allocation7 + $0xc8] sm:$0xff]
    %v1349 = vld [vmem:[#allocation7 + $0xd0] sm:$0xff]
    %v1350 = vld [vmem:[#allocation7 + $0xd8] sm:$0xff]
    %v1351 = vld [vmem:[#allocation7 + $0xe0] sm:$0xff]
    %v1352 = vld [vmem:[#allocation7 + $0xe8] sm:$0xff]
    %v1353 = vld [vmem:[#allocation7 + $0xf0] sm:$0xff]
    %v1354 = vld [vmem:[#allocation7 + $0xf8] sm:$0xff]
    %v1355 = vld [vmem:[#allocation7 + $0x100] sm:$0xff]
    %v1356 = vld [vmem:[#allocation7 + $0x108] sm:$0xff]
    %v1357 = vld [vmem:[#allocation7 + $0x110] sm:$0xff]
    %v1358 = vld [vmem:[#allocation7 + $0x118] sm:$0xff]
    %v1359 = vld [vmem:[#allocation7 + $0x120] sm:$0xff]
    %v1360 = vld [vmem:[#allocation7 + $0x128] sm:$0xff]
    %v1361 = vld [vmem:[#allocation7 + $0x130] sm:$0xff]
    %v1362 = vld [vmem:[#allocation7 + $0x138] sm:$0xff]
    %v1363 = vld [vmem:[#allocation7 + $0x140] sm:$0xff]
    %v1364 = vld [vmem:[#allocation7 + $0x148] sm:$0xff]
    %v1365 = vld [vmem:[#allocation7 + $0x150] sm:$0xff]
    %v1366 = vld [vmem:[#allocation7 + $0x158] sm:$0xff]
    %v1367 = vld [vmem:[#allocation7 + $0x160] sm:$0xff]
    %v1368 = vld [vmem:[#allocation7 + $0x168] sm:$0xff]
    %v1369 = vld [vmem:[#allocation7 + $0x170] sm:$0xff]
    %v1370 = vld [vmem:[#allocation7 + $0x178] sm:$0xff]
    %v1371 = vld [vmem:[#allocation7 + $0x180] sm:$0xff]
    %v1372 = vld [vmem:[#allocation7 + $0x188] sm:$0xff]
    %v1373 = vld [vmem:[#allocation7 + $0x190] sm:$0xff]
    %v1374 = vld [vmem:[#allocation7 + $0x198] sm:$0xff]
    %v1375 = vld [vmem:[#allocation7 + $0x1a0] sm:$0xff]
    %v1376 = vld [vmem:[#allocation7 + $0x1a8] sm:$0xff]
    %v1377 = vld [vmem:[#allocation7 + $0x1b0] sm:$0xff]
    %v1378 = vld [vmem:[#allocation7 + $0x1b8] sm:$0xff]
    %v1379 = vld [vmem:[#allocation7 + $0x1c0] sm:$0xff]
    %v1380 = vld [vmem:[#allocation7 + $0x1c8] sm:$0xff]
    %v1381 = vld [vmem:[#allocation7 + $0x1d0] sm:$0xff]
    %v1382 = vld [vmem:[#allocation7 + $0x1d8] sm:$0xff]
    %v1383 = vld [vmem:[#allocation7 + $0x1e0] sm:$0xff]
    %v1384 = vld [vmem:[#allocation7 + $0x1e8] sm:$0xff]
    %v1385 = vld [vmem:[#allocation7 + $0x1f0] sm:$0xff]
    %v1386 = vld [vmem:[#allocation7 + $0x1f8] sm:$0xff]
    %v1387 = vld [vmem:[#allocation7 + $0x200] sm:$0xff]
    %v1388 = vld [vmem:[#allocation7 + $0x208] sm:$0xff]
    %v1389 = vld [vmem:[#allocation7 + $0x210] sm:$0xff]
    %v1390 = vld [vmem:[#allocation7 + $0x218] sm:$0xff]
    %v1391 = vld [vmem:[#allocation7 + $0x220] sm:$0xff]
    %v1392 = vld [vmem:[#allocation7 + $0x228] sm:$0xff]
    %v1393 = vld [vmem:[#allocation7 + $0x230] sm:$0xff]
    %v1394 = vld [vmem:[#allocation7 + $0x238] sm:$0xff]
    %v1395 = vld [vmem:[#allocation7 + $0x240] sm:$0xff]
    %v1396 = vld [vmem:[#allocation7 + $0x248] sm:$0xff]
    %v1397 = vld [vmem:[#allocation7 + $0x250] sm:$0xff]
    %v1398 = vld [vmem:[#allocation7 + $0x258] sm:$0xff]
    %v1399 = vld [vmem:[#allocation7 + $0x260] sm:$0xff]
    %v1400 = vld [vmem:[#allocation7 + $0x268] sm:$0xff]
    %v1401 = vld [vmem:[#allocation7 + $0x270] sm:$0xff]
    %v1402 = vld [vmem:[#allocation7 + $0x278] sm:$0xff]
    %v1403 = vld [vmem:[#allocation7 + $0x280] sm:$0xff]
    %v1404 = vld [vmem:[#allocation7 + $0x288] sm:$0xff]
    %v1405 = vld [vmem:[#allocation7 + $0x290] sm:$0xff]
    %v1406 = vld [vmem:[#allocation7 + $0x298] sm:$0xff]
    %v1407 = vld [vmem:[#allocation7 + $0x2a0] sm:$0xff]
    %v1408 = vld [vmem:[#allocation7 + $0x2a8] sm:$0xff]
    %v1409 = vld [vmem:[#allocation7 + $0x2b0] sm:$0xff]
    %v1410 = vld [vmem:[#allocation7 + $0x2b8] sm:$0xff]
    %v1411 = vld [vmem:[#allocation7 + $0x2c0] sm:$0xff]
    %v1412 = vld [vmem:[#allocation7 + $0x2c8] sm:$0xff]
    %v1413 = vld [vmem:[#allocation7 + $0x2d0] sm:$0xff]
    %v1414 = vld [vmem:[#allocation7 + $0x2d8] sm:$0xff]
    %v1415 = vld [vmem:[#allocation7 + $0x2e0] sm:$0xff]
    %v1416 = vld [vmem:[#allocation7 + $0x2e8] sm:$0xff]
    %v1417 = vld [vmem:[#allocation7 + $0x2f0] sm:$0xff]
    %v1418 = vld [vmem:[#allocation7 + $0x2f8] sm:$0xff]
    %v1419 = vld [vmem:[#allocation7 + $0x300] sm:$0xff]
    %v1420 = vld [vmem:[#allocation7 + $0x308] sm:$0xff]
    %v1421 = vld [vmem:[#allocation7 + $0x310] sm:$0xff]
    %v1422 = vld [vmem:[#allocation7 + $0x318] sm:$0xff]
    %v1423 = vld [vmem:[#allocation7 + $0x320] sm:$0xff]
    %v1424 = vld [vmem:[#allocation7 + $0x328] sm:$0xff]
    %v1425 = vld [vmem:[#allocation7 + $0x330] sm:$0xff]
    %v1426 = vld [vmem:[#allocation7 + $0x338] sm:$0xff]
    %v1427 = vld [vmem:[#allocation7 + $0x340] sm:$0xff]
    %v1428 = vld [vmem:[#allocation7 + $0x348] sm:$0xff]
    %v1429 = vld [vmem:[#allocation7 + $0x350] sm:$0xff]
    %v1430 = vld [vmem:[#allocation7 + $0x358] sm:$0xff]
    %v1431 = vld [vmem:[#allocation7 + $0x360] sm:$0xff]
    %v1432 = vld [vmem:[#allocation7 + $0x368] sm:$0xff]
    %v1433 = vld [vmem:[#allocation7 + $0x370] sm:$0xff]
    %v1434 = vld [vmem:[#allocation7 + $0x378] sm:$0xff]
    %v1435 = vld [vmem:[#allocation7 + $0x380] sm:$0xff]
    %v1436 = vld [vmem:[#allocation7 + $0x388] sm:$0xff]
    %v1437 = vld [vmem:[#allocation7 + $0x390] sm:$0xff]
    %v1438 = vld [vmem:[#allocation7 + $0x398] sm:$0xff]
    %v1439 = vld [vmem:[#allocation7 + $0x3a0] sm:$0xff]
    %v1440 = vld [vmem:[#allocation7 + $0x3a8] sm:$0xff]
    %v1441 = vld [vmem:[#allocation7 + $0x3b0] sm:$0xff]
    %v1442 = vld [vmem:[#allocation7 + $0x3b8] sm:$0xff]
    %v1443 = vld [vmem:[#allocation7 + $0x3c0] sm:$0xff]
    %v1444 = vld [vmem:[#allocation7 + $0x3c8] sm:$0xff]
    %v1445 = vld [vmem:[#allocation7 + $0x3d0] sm:$0xff]
    %v1446 = vld [vmem:[#allocation7 + $0x3d8] sm:$0xff]
    %v1447 = vld [vmem:[#allocation7 + $0x3e0] sm:$0xff]
    %v1448 = vld [vmem:[#allocation7 + $0x3e8] sm:$0xff]
    %v1449 = vld [vmem:[#allocation7 + $0x3f0] sm:$0xff]
    %v1450 = vld [vmem:[#allocation7 + $0x3f8] sm:$0xff]
    %1451 = vmatpush.msra.mxu0 %v1353
    %1452 = vmatpush.msra.mxu0 %v1351
    %1453 = vmatpush.msra.mxu0 %v1349
    %1454 = vmatpush.msra.mxu0 %v1347
    %1455 = vmatpush.msra.mxu0 %v1345
    %1456 = vmatpush.msra.mxu0 %v1343
    %1457 = vmatpush.msra.mxu0 %v1341
    %1458 = vmatpush.msra.mxu0 %v1339
    %1459 = vmatpush.msra.mxu0 %v1337
    %1460 = vmatpush.msra.mxu0 %v1335
    %1461 = vmatpush.msra.mxu0 %v1333
    %1462 = vmatpush.msra.mxu0 %v1331
    %1463 = vmatpush.msra.mxu0 %v1329
    %1464 = vmatpush.msra.mxu0 %v1327
    %1465 = vmatpush.msra.mxu0 %v1325
    %1466 = vmatpush.msra.mxu0 %v1323
    %1467 = vmatmul.f32.gmra.mxu0 %v1319
    %v1468 = vpop.f32.mrf.mxu0
    %v1469 = vadd.f32 0.0, %v1468
    %1470 = vdwg.mxu0
    %1471 = vmatpush.msra.mxu0 %v1385
    %1472 = vmatpush.msra.mxu0 %v1383
    %1473 = vmatpush.msra.mxu0 %v1381
    %1474 = vmatpush.msra.mxu0 %v1379
    %1475 = vmatpush.msra.mxu0 %v1377
    %1476 = vmatpush.msra.mxu0 %v1375
    %1477 = vmatpush.msra.mxu0 %v1373
    %1478 = vmatpush.msra.mxu0 %v1371
    %1479 = vmatpush.msra.mxu0 %v1369
    %1480 = vmatpush.msra.mxu0 %v1367
    %1481 = vmatpush.msra.mxu0 %v1365
    %1482 = vmatpush.msra.mxu0 %v1363
    %1483 = vmatpush.msra.mxu0 %v1361
    %1484 = vmatpush.msra.mxu0 %v1359
    %1485 = vmatpush.msra.mxu0 %v1357
    %1486 = vmatpush.msra.mxu0 %v1355
    %1487 = vmatmul.f32.gmra.mxu0 %v1320
    %v1488 = vpop.f32.mrf.mxu0
    %v1489 = vadd.f32 %v1469, %v1488
    %1490 = vdwg.mxu0
    %1491 = vmatpush.msra.mxu0 %v1417
    %1492 = vmatpush.msra.mxu0 %v1415
    %1493 = vmatpush.msra.mxu0 %v1413
    %1494 = vmatpush.msra.mxu0 %v1411
    %1495 = vmatpush.msra.mxu0 %v1409
    %1496 = vmatpush.msra.mxu0 %v1407
    %1497 = vmatpush.msra.mxu0 %v1405
    %1498 = vmatpush.msra.mxu0 %v1403
    %1499 = vmatpush.msra.mxu0 %v1401
    %1500 = vmatpush.msra.mxu0 %v1399
    %1501 = vmatpush.msra.mxu0 %v1397
    %1502 = vmatpush.msra.mxu0 %v1395
    %1503 = vmatpush.msra.mxu0 %v1393
    %1504 = vmatpush.msra.mxu0 %v1391
    %1505 = vmatpush.msra.mxu0 %v1389
    %1506 = vmatpush.msra.mxu0 %v1387
    %1507 = vmatmul.f32.gmra.mxu0 %v1321
    %v1508 = vpop.f32.mrf.mxu0
    %v1509 = vadd.f32 %v1489, %v1508
    %1510 = vdwg.mxu0
    %1511 = vmatpush.msra.mxu0 %v1449
    %1512 = vmatpush.msra.mxu0 %v1447
    %1513 = vmatpush.msra.mxu0 %v1445
    %1514 = vmatpush.msra.mxu0 %v1443
    %1515 = vmatpush.msra.mxu0 %v1441
    %1516 = vmatpush.msra.mxu0 %v1439
    %1517 = vmatpush.msra.mxu0 %v1437
    %1518 = vmatpush.msra.mxu0 %v1435
    %1519 = vmatpush.msra.mxu0 %v1433
    %1520 = vmatpush.msra.mxu0 %v1431
    %1521 = vmatpush.msra.mxu0 %v1429
    %1522 = vmatpush.msra.mxu0 %v1427
    %1523 = vmatpush.msra.mxu0 %v1425
    %1524 = vmatpush.msra.mxu0 %v1423
    %1525 = vmatpush.msra.mxu0 %v1421
    %1526 = vmatpush.msra.mxu0 %v1419
    %1527 = vmatmul.f32.gmra.mxu0 %v1322
    %v1528 = vpop.f32.mrf.mxu0
    %v1529 = vadd.f32 %v1509, %v1528
    %1530 = vdwg.mxu0
    %1531 = vmatpush.msra.mxu0 %v1354
    %1532 = vmatpush.msra.mxu0 %v1352
    %1533 = vmatpush.msra.mxu0 %v1350
    %1534 = vmatpush.msra.mxu0 %v1348
    %1535 = vmatpush.msra.mxu0 %v1346
    %1536 = vmatpush.msra.mxu0 %v1344
    %1537 = vmatpush.msra.mxu0 %v1342
    %1538 = vmatpush.msra.mxu0 %v1340
    %1539 = vmatpush.msra.mxu0 %v1338
    %1540 = vmatpush.msra.mxu0 %v1336
    %1541 = vmatpush.msra.mxu0 %v1334
    %1542 = vmatpush.msra.mxu0 %v1332
    %1543 = vmatpush.msra.mxu0 %v1330
    %1544 = vmatpush.msra.mxu0 %v1328
    %1545 = vmatpush.msra.mxu0 %v1326
    %1546 = vmatpush.msra.mxu0 %v1324
    %1547 = vmatmul.f32.gmra.mxu0 %v1319
    %v1548 = vpop.f32.mrf.mxu0
    %v1549 = vadd.f32 0.0, %v1548
    %1550 = vdwg.mxu0
    %1551 = vmatpush.msra.mxu0 %v1386
    %1552 = vmatpush.msra.mxu0 %v1384
    %1553 = vmatpush.msra.mxu0 %v1382
    %1554 = vmatpush.msra.mxu0 %v1380
    %1555 = vmatpush.msra.mxu0 %v1378
    %1556 = vmatpush.msra.mxu0 %v1376
    %1557 = vmatpush.msra.mxu0 %v1374
    %1558 = vmatpush.msra.mxu0 %v1372
    %1559 = vmatpush.msra.mxu0 %v1370
    %1560 = vmatpush.msra.mxu0 %v1368
    %1561 = vmatpush.msra.mxu0 %v1366
    %1562 = vmatpush.msra.mxu0 %v1364
    %1563 = vmatpush.msra.mxu0 %v1362
    %1564 = vmatpush.msra.mxu0 %v1360
    %1565 = vmatpush.msra.mxu0 %v1358
    %1566 = vmatpush.msra.mxu0 %v1356
    %1567 = vmatmul.f32.gmra.mxu0 %v1320
    %v1568 = vpop.f32.mrf.mxu0
    %v1569 = vadd.f32 %v1549, %v1568
    %1570 = vdwg.mxu0
    %1571 = vmatpush.msra.mxu0 %v1418
    %1572 = vmatpush.msra.mxu0 %v1416
    %1573 = vmatpush.msra.mxu0 %v1414
    %1574 = vmatpush.msra.mxu0 %v1412
    %1575 = vmatpush.msra.mxu0 %v1410
    %1576 = vmatpush.msra.mxu0 %v1408
    %1577 = vmatpush.msra.mxu0 %v1406
    %1578 = vmatpush.msra.mxu0 %v1404
    %1579 = vmatpush.msra.mxu0 %v1402
    %1580 = vmatpush.msra.mxu0 %v1400
    %1581 = vmatpush.msra.mxu0 %v1398
    %1582 = vmatpush.msra.mxu0 %v1396
    %1583 = vmatpush.msra.mxu0 %v1394
    %1584 = vmatpush.msra.mxu0 %v1392
    %1585 = vmatpush.msra.mxu0 %v1390
    %1586 = vmatpush.msra.mxu0 %v1388
    %1587 = vmatmul.f32.gmra.mxu0 %v1321
    %v1588 = vpop.f32.mrf.mxu0
    %v1589 = vadd.f32 %v1569, %v1588
    %1590 = vdwg.mxu0
    %1591 = vmatpush.msra.mxu0 %v1450
    %1592 = vmatpush.msra.mxu0 %v1448
    %1593 = vmatpush.msra.mxu0 %v1446
    %1594 = vmatpush.msra.mxu0 %v1444
    %1595 = vmatpush.msra.mxu0 %v1442
    %1596 = vmatpush.msra.mxu0 %v1440
    %1597 = vmatpush.msra.mxu0 %v1438
    %1598 = vmatpush.msra.mxu0 %v1436
    %1599 = vmatpush.msra.mxu0 %v1434
    %1600 = vmatpush.msra.mxu0 %v1432
    %1601 = vmatpush.msra.mxu0 %v1430
    %1602 = vmatpush.msra.mxu0 %v1428
    %1603 = vmatpush.msra.mxu0 %v1426
    %1604 = vmatpush.msra.mxu0 %v1424
    %1605 = vmatpush.msra.mxu0 %v1422
    %1606 = vmatpush.msra.mxu0 %v1420
    %1607 = vmatmul.f32.gmra.mxu0 %v1322
    %v1608 = vpop.f32.mrf.mxu0
    %v1609 = vadd.f32 %v1589, %v1608
    %1610 = vdwg.mxu0
    %v1611 = vld [vmem:[#allocation9] sm:$0x3]
    %v1613 = vperm.slane %v1611, 0
    %v1614 = vperm.slane %v1611, 1
    %v1617 = vmul.f32 %v1529, %v1613
    %v1618 = vmul.f32 %v1609, %v1614
    %v1619 = vld [vmem:[#allocation10] sm:$0x3]
    %v1621 = vperm.slane %v1619, 0
    %v1622 = vperm.slane %v1619, 1
    %v1625 = vadd.f32 %v1617, %v1621
    %v1626 = vadd.f32 %v1618, %v1622
    %v1627 = vmax.f32 %v1625, 0.0
    %v1628 = vmax.f32 %v1626, 0.0
    %v1629 = vld [vmem:[%s7] sm:$0xff]
    %v1630 = vld [vmem:[%s7 + $0x8] sm:$0xff]
    %v1631 = vld [vmem:[%s7 + $0x10] sm:$0xff]
    %v1632 = vld [vmem:[%s7 + $0x18] sm:$0xff]
    %v1633 = vld [vmem:[%s7 + $0x20] sm:$0xff]
    %v1634 = vld [vmem:[%s7 + $0x28] sm:$0xff]
    %v1635 = vld [vmem:[%s7 + $0x30] sm:$0xff]
    %v1636 = vld [vmem:[%s7 + $0x38] sm:$0xff]
    %v1637 = vld [vmem:[%s7 + $0x40] sm:$0xff]
    %v1638 = vld [vmem:[%s7 + $0x48] sm:$0xff]
    %v1639 = vld [vmem:[%s7 + $0x50] sm:$0xff]
    %v1640 = vld [vmem:[%s7 + $0x58] sm:$0xff]
    %v1641 = vld [vmem:[%s7 + $0x60] sm:$0xff]
    %v1642 = vld [vmem:[%s7 + $0x68] sm:$0xff]
    %v1643 = vld [vmem:[%s7 + $0x70] sm:$0xff]
    %v1644 = vld [vmem:[%s7 + $0x78] sm:$0xff]
    %v1645 = vld [vmem:[%s7 + $0x80] sm:$0xff]
    %v1646 = vld [vmem:[%s7 + $0x88] sm:$0xff]
    %v1647 = vld [vmem:[%s7 + $0x90] sm:$0xff]
    %v1648 = vld [vmem:[%s7 + $0x98] sm:$0xff]
    %v1649 = vld [vmem:[%s7 + $0xa0] sm:$0xff]
    %v1650 = vld [vmem:[%s7 + $0xa8] sm:$0xff]
    %v1651 = vld [vmem:[%s7 + $0xb0] sm:$0xff]
    %v1652 = vld [vmem:[%s7 + $0xb8] sm:$0xff]
    %v1653 = vld [vmem:[%s7 + $0xc0] sm:$0xff]
    %v1654 = vld [vmem:[%s7 + $0xc8] sm:$0xff]
    %v1655 = vld [vmem:[%s7 + $0xd0] sm:$0xff]
    %v1656 = vld [vmem:[%s7 + $0xd8] sm:$0xff]
    %v1657 = vld [vmem:[%s7 + $0xe0] sm:$0xff]
    %v1658 = vld [vmem:[%s7 + $0xe8] sm:$0xff]
    %v1659 = vld [vmem:[%s7 + $0xf0] sm:$0xff]
    %v1660 = vld [vmem:[%s7 + $0xf8] sm:$0xff]
    %v1661 = vld [vmem:[#allocation12] sm:$0x1]
    %v1663 = vperm.slane %v1661, 0
    %1665 = vmatpush.msra.mxu0 %v1644
    %1666 = vmatpush.msra.mxu0 %v1643
    %1667 = vmatpush.msra.mxu0 %v1642
    %1668 = vmatpush.msra.mxu0 %v1641
    %1669 = vmatpush.msra.mxu0 %v1640
    %1670 = vmatpush.msra.mxu0 %v1639
    %1671 = vmatpush.msra.mxu0 %v1638
    %1672 = vmatpush.msra.mxu0 %v1637
    %1673 = vmatpush.msra.mxu0 %v1636
    %1674 = vmatpush.msra.mxu0 %v1635
    %1675 = vmatpush.msra.mxu0 %v1634
    %1676 = vmatpush.msra.mxu0 %v1633
    %1677 = vmatpush.msra.mxu0 %v1632
    %1678 = vmatpush.msra.mxu0 %v1631
    %1679 = vmatpush.msra.mxu0 %v1630
    %1680 = vmatpush.msra.mxu0 %v1629
    %1681 = vmatmul.f32.gmra.mxu0 %v1627
    %v1682 = vpop.f32.mrf.mxu0
    %v1683 = vadd.f32 %v1663, %v1682
    %1684 = vdwg.mxu0
    %1685 = vmatpush.msra.mxu0 %v1660
    %1686 = vmatpush.msra.mxu0 %v1659
    %1687 = vmatpush.msra.mxu0 %v1658
    %1688 = vmatpush.msra.mxu0 %v1657
    %1689 = vmatpush.msra.mxu0 %v1656
    %1690 = vmatpush.msra.mxu0 %v1655
    %1691 = vmatpush.msra.mxu0 %v1654
    %1692 = vmatpush.msra.mxu0 %v1653
    %1693 = vmatpush.msra.mxu0 %v1652
    %1694 = vmatpush.msra.mxu0 %v1651
    %1695 = vmatpush.msra.mxu0 %v1650
    %1696 = vmatpush.msra.mxu0 %v1649
    %1697 = vmatpush.msra.mxu0 %v1648
    %1698 = vmatpush.msra.mxu0 %v1647
    %1699 = vmatpush.msra.mxu0 %v1646
    %1700 = vmatpush.msra.mxu0 %v1645
    %1701 = vmatmul.f32.gmra.mxu0 %v1628
    %v1702 = vpop.f32.mrf.mxu0
    %v1703 = vadd.f32 %v1683, %v1702
    %1704 = vdwg.mxu0
    %vm1705 = vcmask 72704
    %1706 = vst.msk [vmem:[%s9] sm:$0xff] %vm1705, %v1703
    // Predicated region
    $region66: #{pointnet_encoder.4} parent=1 // pred_check
      _
    $region67: #{pointnet_encoder.4} parent=1 // pred_check_branch
      %1708 = sbr.rel (0) target = $region69
    $region68: #{pointnet_encoder.4} parent=1 // pred_region
      _
    $region69: #{pointnet_encoder.4} parent=1 // pred_fallthru
      _
    // Predicated region
    $region70: #{pointnet_encoder.4} parent=1 // pred_check
      _
    $region71: #{pointnet_encoder.4} parent=1 // pred_check_branch
      %1710 = sbr.rel (0) target = $region73
    $region72: #{pointnet_encoder.4} parent=1 // pred_region
      _
    $region73: #{pointnet_encoder.4} parent=1 // pred_fallthru
      _
    %1711 = vsyncpa [#allocation3], 1
    %1712 = vsyncpa [#allocation5], 1
    %1713 = vsyncpa [#allocation8], 1
    %1714 = vsyncpa [#allocation11], 1

</llo_original>
